<compile_context>
chip_gen: v5e
topology: v5e:2x2
jax: 0.10.0
libtpu: 0.0.40
codegen_flags: <defaults>
</compile_context>

<pallas_src>
import jax
import jax.numpy as jnp
from jax import lax
from jax.experimental import pallas as pl
from jax.experimental.pallas import tpu as pltpu


# -----------------------------------------------------------------------------
# Kernel 1: 3x3 conv (9-tap in-kernel accumulation) + BN shift/scale + ReLU
#           + 1x1 classification conv.  grid = (N, Cin_tiles).
# -----------------------------------------------------------------------------
def _make_conv_kernel(WP, LQ):
    def kernel(x_ref, w9_ref, scale_ref, shift_ref, w1_ref, b1_ref,
               out_ref, acc_ref):
        k = pl.program_id(1)

        @pl.when(k == 0)
        def _():
            acc_ref[...] = jnp.zeros_like(acc_ref)

        # 3x3 conv over this Cin tile: 9 accumulating MXU matmuls, one per
        # tap.  Each tap reads a contiguous lane-shifted slice of the flat
        # padded input (shift = dy*WP + dx) -- no im2col slab.
        acc = acc_ref[...]
        for t in range(9):
            dy, dx = divmod(t, 3)
            s = dy * WP + dx
            x_tap = x_ref[:, s:s + LQ]                       # (cin_tile, LQ) bf16
            acc = acc + jnp.dot(w9_ref[t], x_tap,
                                preferred_element_type=jnp.float32)
        acc_ref[...] = acc

        @pl.when(k == pl.num_programs(1) - 1)
        def _():
            # BatchNorm (inference: per-channel scale + shift) + ReLU, in f32.
            yt = jnp.maximum(acc_ref[...] * scale_ref[...] + shift_ref[...],
                             0.0)
            # Dropout2d: identity in eval mode.
            # 1x1 classification conv (+ bias), f32 (negligible FLOPs).
            zt = jnp.dot(w1_ref[...], yt,
                         preferred_element_type=jnp.float32) + b1_ref[...]
            out_ref[...] = zt.astype(out_ref.dtype)

    return kernel


# -----------------------------------------------------------------------------
# Kernel 2: separable bilinear upsample (align_corners=True).  grid = (N,).
# -----------------------------------------------------------------------------
def _make_upsample_kernel(H, NC):
    def kernel(z_ref, rw_ref, rh_ref, out_ref):
        # W-direction upsample for all classes / rows in one lane-dense
        # matmul; garbage pad columns multiply zero rows of rw^T.
        zw = jnp.dot(z_ref[...], rw_ref[...],
                     preferred_element_type=jnp.float32)     # (NCpad*H, Wout)
        rhm = rh_ref[...]                                    # (Hout, H)
        # H-direction upsample per class; NC->NCpad padding is dropped here.
        for c in range(NC):
            out_ref[c] = jnp.dot(rhm, zw[c * H:(c + 1) * H, :],
                                 preferred_element_type=jnp.float32
                                 ).astype(out_ref.dtype)

    return kernel


def _interp_matrix(n_out, n_in, dtype=jnp.float32):
    """Row-stochastic (n_out, n_in) matrix for 1-D linear interp, align_corners=True."""
    if n_out == 1:
        src = jnp.zeros((1,), jnp.float32)
    else:
        scale = (n_in - 1) / (n_out - 1)
        src = jnp.arange(n_out, dtype=jnp.float32) * scale
    i0 = jnp.clip(jnp.floor(src).astype(jnp.int32), 0, n_in - 1)
    i1 = jnp.clip(i0 + 1, 0, n_in - 1)
    w1 = src - i0.astype(jnp.float32)
    w0 = 1.0 - w1
    m = (w0[:, None] * jax.nn.one_hot(i0, n_in, dtype=jnp.float32)
         + w1[:, None] * jax.nn.one_hot(i1, n_in, dtype=jnp.float32))
    return m.astype(dtype)


def auxiliary_ps_players(x_nchw, params, height, width):
    """Forward pass of AuxiliaryPSPlayers.  x_nchw: (N, Cin, H, W) f32, returns NCHW f32."""
    N, Cin, H, W = x_nchw.shape
    w3 = params['w3']                 # (Cmid, Cin, 3, 3), Cmid = 256
    Cmid = w3.shape[0]
    w1 = params['w1']                 # (NC, Cmid, 1, 1)
    NC = w1.shape[0]
    b1 = params['b1']                 # (NC,)
    eps = 1e-5

    WP = W + 2                        # width incl. left/right conv padding
    HP = H + 3                        # height incl. top pad + 2 bottom pad rows
    LF = HP * WP                      # flat padded-input length
    LQ = H * WP                       # flat conv-output length (2 garbage cols / row)
    NCpad = ((NC + 7) // 8) * 8

    # Cin tiling for the trailing "arbitrary" (reduction) grid axis.
    if Cin % 512 == 0:
        cin_tile = 512
    elif Cin % 256 == 0:
        cin_tile = 256
    elif Cin % 128 == 0:
        cin_tile = 128
    else:
        cin_tile = Cin
    kt = Cin // cin_tile

    # ---- weights ----
    scale = (params['bn_gamma'] / jnp.sqrt(params['bn_var'] + eps)).astype(jnp.float32)
    shift = (params['bn_beta'] - params['bn_mean'] * scale).astype(jnp.float32)
    scale_col = scale.reshape(Cmid, 1)
    shift_col = shift.reshape(Cmid, 1)

    # (Cmid, Cin, 3, 3) -> (9, Cmid, Cin), tap-major, bf16 MXU operand.
    w9 = jnp.transpose(w3, (2, 3, 0, 1)).reshape(9, Cmid, Cin).astype(jnp.bfloat16)

    w1_mat = jnp.pad(w1.reshape(NC, Cmid).astype(jnp.float32),
                     ((0, NCpad - NC), (0, 0)))               # (NCpad, Cmid) f32
    b1_col = jnp.pad(b1.astype(jnp.float32), (0, NCpad - NC)).reshape(NCpad, 1)

    # Flat padded input (top=1, bottom=2, left=1, right=1), bf16, streamed once.
    x_pad = jnp.pad(x_nchw.astype(jnp.bfloat16), ((0, 0), (0, 0), (1, 2), (1, 1)))
    x_flat = x_pad.reshape(N, Cin, LF)

    conv_kernel = _make_conv_kernel(WP, LQ)
    cost1 = pl.CostEstimate(
        flops=int(N * (2 * 9 * Cin * Cmid * LQ + 2 * NCpad * Cmid * LQ)),
        transcendentals=0,
        bytes_accessed=int(N * Cin * LF * 2 + 9 * Cmid * Cin * 2
                           + N * NCpad * LQ * 4
                           + (2 * Cmid + NCpad * Cmid + NCpad) * 4))

    z_flat = pl.pallas_call(
        conv_kernel,
        out_shape=jax.ShapeDtypeStruct((N, NCpad, LQ), jnp.float32),
        grid_spec=pltpu.PrefetchScalarGridSpec(
            num_scalar_prefetch=0,
            grid=(N, kt),
            in_specs=[
                pl.BlockSpec((None, cin_tile, LF), lambda n, k: (n, k, 0)),
                pl.BlockSpec((9, Cmid, cin_tile), lambda n, k: (0, 0, k)),
                pl.BlockSpec((Cmid, 1), lambda n, k: (0, 0)),
                pl.BlockSpec((Cmid, 1), lambda n, k: (0, 0)),
                pl.BlockSpec((NCpad, Cmid), lambda n, k: (0, 0)),
                pl.BlockSpec((NCpad, 1), lambda n, k: (0, 0)),
            ],
            out_specs=pl.BlockSpec((None, NCpad, LQ), lambda n, k: (n, 0, 0)),
            scratch_shapes=[pltpu.VMEM((Cmid, LQ), jnp.float32)],
        ),
        compiler_params=pltpu.CompilerParams(
            dimension_semantics=("parallel", "arbitrary"),
            vmem_limit_bytes=48 * 1024 * 1024),
        cost_estimate=cost1,
    )(x_flat, w9, scale_col, shift_col, w1_mat, b1_col)

    # (N, NCpad, H*WP) -> (N, NCpad*H, WP): free, contiguous reshape.
    z2 = z_flat.reshape(N, NCpad * H, WP)

    # Separable bilinear upsample weights (align_corners=True).
    rh = _interp_matrix(height, H)                            # (Hout, H)
    rw = _interp_matrix(width, W)                             # (Wout, W)
    rwT = jnp.pad(rw.T, ((0, WP - W), (0, 0)))                # (WP, Wout), zero pad rows

    up_kernel = _make_upsample_kernel(H, NC)
    cost2 = pl.CostEstimate(
        flops=int(N * (2 * NCpad * H * WP * width + 2 * NC * height * H * width)),
        transcendentals=0,
        bytes_accessed=int(N * NCpad * LQ * 4 + N * NC * height * width * 4
                           + (WP * width + height * H) * 4))

    out = pl.pallas_call(
        up_kernel,
        out_shape=jax.ShapeDtypeStruct((N, NC, height, width), jnp.float32),
        grid_spec=pltpu.PrefetchScalarGridSpec(
            num_scalar_prefetch=0,
            grid=(N,),
            in_specs=[
                pl.BlockSpec((None, NCpad * H, WP), lambda n: (n, 0, 0)),
                pl.BlockSpec((WP, width), lambda n: (0, 0)),
                pl.BlockSpec((height, H), lambda n: (0, 0)),
            ],
            out_specs=pl.BlockSpec((None, NC, height, width),
                                   lambda n: (n, 0, 0, 0)),
        ),
        compiler_params=pltpu.CompilerParams(
            dimension_semantics=("parallel",),
            vmem_limit_bytes=48 * 1024 * 1024),
        cost_estimate=cost2,
    )(z2, rwT, rh)

    return out


def _reference(x_nchw, params, height, width):
    """Pure-JAX f32 reference (inference semantics), NCHW in/out."""
    eps = 1e-5
    x = jnp.transpose(x_nchw, (0, 2, 3, 1)).astype(jnp.float32)          # NHWC
    w3 = jnp.transpose(params['w3'], (2, 3, 1, 0)).astype(jnp.float32)   # HWIO
    y = lax.conv_general_dilated(
        x, w3, window_strides=(1, 1), padding=((1, 1), (1, 1)),
        dimension_numbers=('NHWC', 'HWIO', 'NHWC'))
    scale = params['bn_gamma'] / jnp.sqrt(params['bn_var'] + eps)
    shift = params['bn_beta'] - params['bn_mean'] * scale
    y = jnp.maximum(y * scale + shift, 0.0)
    w1 = params['w1'].reshape(params['w1'].shape[0], -1).T.astype(jnp.float32)
    z = jnp.einsum('nhwc,cm->nhwm', y, w1) + params['b1']
    rh = _interp_matrix(height, x.shape[1])
    rw = _interp_matrix(width, x.shape[2])
    out = jnp.einsum('oh,nhwc->nowc', rh, z)
    out = jnp.einsum('pw,nowc->nopc', rw, out)
    return jnp.transpose(out, (0, 3, 1, 2))


if __name__ == "__main__":
    # Small shapes consistent with the module.
    N, Cin, H, W = 2, 4, 16, 16
    n_classes = 5
    height, width = 32, 32      # F.interpolate target size
    Cmid = 256

    key = jax.random.PRNGKey(0)
    keys = jax.random.split(key, 8)
    x = jax.random.normal(keys[0], (N, Cin, H, W), jnp.float32)

    params = {
        'w3': 0.1 * jax.random.normal(keys[1], (Cmid, Cin, 3, 3), jnp.float32),
        'bn_gamma': 1.0 + 0.1 * jax.random.normal(keys[2], (Cmid,), jnp.float32),
        'bn_beta': 0.1 * jax.random.normal(keys[3], (Cmid,), jnp.float32),
        'bn_mean': 0.1 * jax.random.normal(keys[4], (Cmid,), jnp.float32),
        'bn_var': 1.0 + 0.1 * jnp.abs(jax.random.normal(keys[5], (Cmid,), jnp.float32)),
        'w1': 0.1 * jax.random.normal(keys[6], (n_classes, Cmid, 1, 1), jnp.float32),
        'b1': 0.1 * jax.random.normal(keys[7], (n_classes,), jnp.float32),
    }

    out = auxiliary_ps_players(x, params, height, width)
    out = jax.block_until_ready(out)

    ref = jax.block_until_ready(_reference(x, params, height, width))
    assert out.shape == (N, n_classes, height, width), out.shape
    # bf16 MXU operands for the 3x3 conv -> relaxed tolerance (f32 accumulation).
    max_err = float(jnp.max(jnp.abs(out - ref)))
    assert jnp.allclose(out, ref, rtol=5e-2, atol=5e-2), max_err

    print("KERNEL_OK")
</pallas_src>

<mosaic_0001>
module attributes {stable_mosaic.version = 11 : i64} {
  func.func @kernel(%arg0: i32, %arg1: i32, %arg2: memref<1x4x342xbf16, #tpu.memory_space<vmem>>, %arg3: memref<9x256x4xbf16, #tpu.memory_space<vmem>>, %arg4: memref<256x1xf32, #tpu.memory_space<vmem>>, %arg5: memref<256x1xf32, #tpu.memory_space<vmem>>, %arg6: memref<8x256xf32, #tpu.memory_space<vmem>>, %arg7: memref<8x1xf32, #tpu.memory_space<vmem>>, %arg8: memref<1x8x288xf32, #tpu.memory_space<vmem>>, %arg9: memref<256x288xf32, #tpu.memory_space<vmem>>) attributes {dimension_semantics = [#tpu.dimension_semantics<parallel>, #tpu.dimension_semantics<arbitrary>], iteration_bounds = array<i64: 2, 1>, scalar_prefetch = 0 : i64, scratch_operands = 1 : i64, tpu.core_type = #tpu.core_type<tc>, window_params = [{transform_indices = @transform_0, window_bounds = array<i64: 1, 4, 342>}, {transform_indices = @transform_1, window_bounds = array<i64: 9, 256, 4>}, {pipeline_mode = #tpu.pipeline_mode<synchronous>, transform_indices = @transform_2, window_bounds = array<i64: 256, 1>}, {pipeline_mode = #tpu.pipeline_mode<synchronous>, transform_indices = @transform_3, window_bounds = array<i64: 256, 1>}, {pipeline_mode = #tpu.pipeline_mode<synchronous>, transform_indices = @transform_4, window_bounds = array<i64: 8, 256>}, {pipeline_mode = #tpu.pipeline_mode<synchronous>, transform_indices = @transform_5, window_bounds = array<i64: 8, 1>}, {transform_indices = @transform_6, window_bounds = array<i64: 1, 8, 288>}]} {
    %c0_i32 = arith.constant 0 : i32
    %0 = arith.cmpi eq, %arg1, %c0_i32 : i32
    %1 = arith.extui %0 : i1 to i32
    %c0_i32_0 = arith.constant 0 : i32
    %2 = arith.cmpi ne, %1, %c0_i32_0 : i32
    scf.if %2 {
      %cst_54 = arith.constant 0.000000e+00 : f32
      %62 = vector.broadcast %cst_54 : f32 to vector<256x288xf32>
      %c0_55 = arith.constant 0 : index
      %c0_56 = arith.constant 0 : index
      %63 = vector.load %arg9[%c0_55, %c0_56] : memref<256x288xf32, #tpu.memory_space<vmem>>, vector<256x288xf32>
      tpu.vector_store %arg9[%c0_55, %c0_56], %62 {strides = array<i32>} : memref<256x288xf32, #tpu.memory_space<vmem>>, vector<256x288xf32>,
    } else {
    }
    %c0 = arith.constant 0 : index
    %c0_1 = arith.constant 0 : index
    %3 = vector.load %arg9[%c0, %c0_1] : memref<256x288xf32, #tpu.memory_space<vmem>>, vector<256x288xf32>
    %c0_2 = arith.constant 0 : index
    %c0_3 = arith.constant 0 : index
    %c0_4 = arith.constant 0 : index
    %4 = vector.load %arg2[%c0_2, %c0_3, %c0_4] : memref<1x4x342xbf16, #tpu.memory_space<vmem>>, vector<1x4x288xbf16>
    %5 = vector.shape_cast %4 : vector<1x4x288xbf16> to vector<4x288xbf16>
    %c0_5 = arith.constant 0 : index
    %c0_6 = arith.constant 0 : index
    %c0_7 = arith.constant 0 : index
    %6 = vector.load %arg3[%c0_5, %c0_6, %c0_7] : memref<9x256x4xbf16, #tpu.memory_space<vmem>>, vector<1x256x4xbf16>
    %7 = vector.shape_cast %6 : vector<1x256x4xbf16> to vector<256x4xbf16>
    %cst = arith.constant dense<0.000000e+00> : vector<256x288xf32>
    %8 = tpu.matmul %7, %5, %cst {dimension_numbers = #tpu.dot_dimension_numbers<[1], [0], [0], [1], [0, 0, 1, 1], [], []>} : vector<256x4xbf16>, vector<4x288xbf16>, vector<256x288xf32> -> vector<256x288xf32>
    %9 = arith.addf %3, %8 : vector<256x288xf32>
    %c0_8 = arith.constant 0 : index
    %c0_9 = arith.constant 0 : index
    %c1 = arith.constant 1 : index
    %10 = vector.load %arg2[%c0_8, %c0_9, %c1] : memref<1x4x342xbf16, #tpu.memory_space<vmem>>, vector<1x4x288xbf16>
    %11 = vector.shape_cast %10 : vector<1x4x288xbf16> to vector<4x288xbf16>
    %c1_10 = arith.constant 1 : index
    %c0_11 = arith.constant 0 : index
    %c0_12 = arith.constant 0 : index
    %12 = vector.load %arg3[%c1_10, %c0_11, %c0_12] : memref<9x256x4xbf16, #tpu.memory_space<vmem>>, vector<1x256x4xbf16>
    %13 = vector.shape_cast %12 : vector<1x256x4xbf16> to vector<256x4xbf16>
    %cst_13 = arith.constant dense<0.000000e+00> : vector<256x288xf32>
    %14 = tpu.matmul %13, %11, %cst_13 {dimension_numbers = #tpu.dot_dimension_numbers<[1], [0], [0], [1], [0, 0, 1, 1], [], []>} : vector<256x4xbf16>, vector<4x288xbf16>, vector<256x288xf32> -> vector<256x288xf32>
    %15 = arith.addf %9, %14 : vector<256x288xf32>
    %c0_14 = arith.constant 0 : index
    %c0_15 = arith.constant 0 : index
    %c2 = arith.constant 2 : index
    %16 = vector.load %arg2[%c0_14, %c0_15, %c2] : memref<1x4x342xbf16, #tpu.memory_space<vmem>>, vector<1x4x288xbf16>
    %17 = vector.shape_cast %16 : vector<1x4x288xbf16> to vector<4x288xbf16>
    %c2_16 = arith.constant 2 : index
    %c0_17 = arith.constant 0 : index
    %c0_18 = arith.constant 0 : index
    %18 = vector.load %arg3[%c2_16, %c0_17, %c0_18] : memref<9x256x4xbf16, #tpu.memory_space<vmem>>, vector<1x256x4xbf16>
    %19 = vector.shape_cast %18 : vector<1x256x4xbf16> to vector<256x4xbf16>
    %cst_19 = arith.constant dense<0.000000e+00> : vector<256x288xf32>
    %20 = tpu.matmul %19, %17, %cst_19 {dimension_numbers = #tpu.dot_dimension_numbers<[1], [0], [0], [1], [0, 0, 1, 1], [], []>} : vector<256x4xbf16>, vector<4x288xbf16>, vector<256x288xf32> -> vector<256x288xf32>
    %21 = arith.addf %15, %20 : vector<256x288xf32>
    %c0_20 = arith.constant 0 : index
    %c0_21 = arith.constant 0 : index
    %c18 = arith.constant 18 : index
    %22 = vector.load %arg2[%c0_20, %c0_21, %c18] : memref<1x4x342xbf16, #tpu.memory_space<vmem>>, vector<1x4x288xbf16>
    %23 = vector.shape_cast %22 : vector<1x4x288xbf16> to vector<4x288xbf16>
    %c3 = arith.constant 3 : index
    %c0_22 = arith.constant 0 : index
    %c0_23 = arith.constant 0 : index
    %24 = vector.load %arg3[%c3, %c0_22, %c0_23] : memref<9x256x4xbf16, #tpu.memory_space<vmem>>, vector<1x256x4xbf16>
    %25 = vector.shape_cast %24 : vector<1x256x4xbf16> to vector<256x4xbf16>
    %cst_24 = arith.constant dense<0.000000e+00> : vector<256x288xf32>
    %26 = tpu.matmul %25, %23, %cst_24 {dimension_numbers = #tpu.dot_dimension_numbers<[1], [0], [0], [1], [0, 0, 1, 1], [], []>} : vector<256x4xbf16>, vector<4x288xbf16>, vector<256x288xf32> -> vector<256x288xf32>
    %27 = arith.addf %21, %26 : vector<256x288xf32>
    %c0_25 = arith.constant 0 : index
    %c0_26 = arith.constant 0 : index
    %c19 = arith.constant 19 : index
    %28 = vector.load %arg2[%c0_25, %c0_26, %c19] : memref<1x4x342xbf16, #tpu.memory_space<vmem>>, vector<1x4x288xbf16>
    %29 = vector.shape_cast %28 : vector<1x4x288xbf16> to vector<4x288xbf16>
    %c4 = arith.constant 4 : index
    %c0_27 = arith.constant 0 : index
    %c0_28 = arith.constant 0 : index
    %30 = vector.load %arg3[%c4, %c0_27, %c0_28] : memref<9x256x4xbf16, #tpu.memory_space<vmem>>, vector<1x256x4xbf16>
    %31 = vector.shape_cast %30 : vector<1x256x4xbf16> to vector<256x4xbf16>
    %cst_29 = arith.constant dense<0.000000e+00> : vector<256x288xf32>
    %32 = tpu.matmul %31, %29, %cst_29 {dimension_numbers = #tpu.dot_dimension_numbers<[1], [0], [0], [1], [0, 0, 1, 1], [], []>} : vector<256x4xbf16>, vector<4x288xbf16>, vector<256x288xf32> -> vector<256x288xf32>
    %33 = arith.addf %27, %32 : vector<256x288xf32>
    %c0_30 = arith.constant 0 : index
    %c0_31 = arith.constant 0 : index
    %c20 = arith.constant 20 : index
    %34 = vector.load %arg2[%c0_30, %c0_31, %c20] : memref<1x4x342xbf16, #tpu.memory_space<vmem>>, vector<1x4x288xbf16>
    %35 = vector.shape_cast %34 : vector<1x4x288xbf16> to vector<4x288xbf16>
    %c5 = arith.constant 5 : index
    %c0_32 = arith.constant 0 : index
    %c0_33 = arith.constant 0 : index
    %36 = vector.load %arg3[%c5, %c0_32, %c0_33] : memref<9x256x4xbf16, #tpu.memory_space<vmem>>, vector<1x256x4xbf16>
    %37 = vector.shape_cast %36 : vector<1x256x4xbf16> to vector<256x4xbf16>
    %cst_34 = arith.constant dense<0.000000e+00> : vector<256x288xf32>
    %38 = tpu.matmul %37, %35, %cst_34 {dimension_numbers = #tpu.dot_dimension_numbers<[1], [0], [0], [1], [0, 0, 1, 1], [], []>} : vector<256x4xbf16>, vector<4x288xbf16>, vector<256x288xf32> -> vector<256x288xf32>
    %39 = arith.addf %33, %38 : vector<256x288xf32>
    %c0_35 = arith.constant 0 : index
    %c0_36 = arith.constant 0 : index
    %c36 = arith.constant 36 : index
    %40 = vector.load %arg2[%c0_35, %c0_36, %c36] : memref<1x4x342xbf16, #tpu.memory_space<vmem>>, vector<1x4x288xbf16>
    %41 = vector.shape_cast %40 : vector<1x4x288xbf16> to vector<4x288xbf16>
    %c6 = arith.constant 6 : index
    %c0_37 = arith.constant 0 : index
    %c0_38 = arith.constant 0 : index
    %42 = vector.load %arg3[%c6, %c0_37, %c0_38] : memref<9x256x4xbf16, #tpu.memory_space<vmem>>, vector<1x256x4xbf16>
    %43 = vector.shape_cast %42 : vector<1x256x4xbf16> to vector<256x4xbf16>
    %cst_39 = arith.constant dense<0.000000e+00> : vector<256x288xf32>
    %44 = tpu.matmul %43, %41, %cst_39 {dimension_numbers = #tpu.dot_dimension_numbers<[1], [0], [0], [1], [0, 0, 1, 1], [], []>} : vector<256x4xbf16>, vector<4x288xbf16>, vector<256x288xf32> -> vector<256x288xf32>
    %45 = arith.addf %39, %44 : vector<256x288xf32>
    %c0_40 = arith.constant 0 : index
    %c0_41 = arith.constant 0 : index
    %c37 = arith.constant 37 : index
    %46 = vector.load %arg2[%c0_40, %c0_41, %c37] : memref<1x4x342xbf16, #tpu.memory_space<vmem>>, vector<1x4x288xbf16>
    %47 = vector.shape_cast %46 : vector<1x4x288xbf16> to vector<4x288xbf16>
    %c7 = arith.constant 7 : index
    %c0_42 = arith.constant 0 : index
    %c0_43 = arith.constant 0 : index
    %48 = vector.load %arg3[%c7, %c0_42, %c0_43] : memref<9x256x4xbf16, #tpu.memory_space<vmem>>, vector<1x256x4xbf16>
    %49 = vector.shape_cast %48 : vector<1x256x4xbf16> to vector<256x4xbf16>
    %cst_44 = arith.constant dense<0.000000e+00> : vector<256x288xf32>
    %50 = tpu.matmul %49, %47, %cst_44 {dimension_numbers = #tpu.dot_dimension_numbers<[1], [0], [0], [1], [0, 0, 1, 1], [], []>} : vector<256x4xbf16>, vector<4x288xbf16>, vector<256x288xf32> -> vector<256x288xf32>
    %51 = arith.addf %45, %50 : vector<256x288xf32>
    %c0_45 = arith.constant 0 : index
    %c0_46 = arith.constant 0 : index
    %c38 = arith.constant 38 : index
    %52 = vector.load %arg2[%c0_45, %c0_46, %c38] : memref<1x4x342xbf16, #tpu.memory_space<vmem>>, vector<1x4x288xbf16>
    %53 = vector.shape_cast %52 : vector<1x4x288xbf16> to vector<4x288xbf16>
    %c8 = arith.constant 8 : index
    %c0_47 = arith.constant 0 : index
    %c0_48 = arith.constant 0 : index
    %54 = vector.load %arg3[%c8, %c0_47, %c0_48] : memref<9x256x4xbf16, #tpu.memory_space<vmem>>, vector<1x256x4xbf16>
    %55 = vector.shape_cast %54 : vector<1x256x4xbf16> to vector<256x4xbf16>
    %cst_49 = arith.constant dense<0.000000e+00> : vector<256x288xf32>
    %56 = tpu.matmul %55, %53, %cst_49 {dimension_numbers = #tpu.dot_dimension_numbers<[1], [0], [0], [1], [0, 0, 1, 1], [], []>} : vector<256x4xbf16>, vector<4x288xbf16>, vector<256x288xf32> -> vector<256x288xf32>
    %57 = arith.addf %51, %56 : vector<256x288xf32>
    %c0_50 = arith.constant 0 : index
    %c0_51 = arith.constant 0 : index
    %58 = vector.load %arg9[%c0_50, %c0_51] : memref<256x288xf32, #tpu.memory_space<vmem>>, vector<256x288xf32>
    tpu.vector_store %arg9[%c0_50, %c0_51], %57 {strides = array<i32>} : memref<256x288xf32, #tpu.memory_space<vmem>>, vector<256x288xf32>,
    %c0_i32_52 = arith.constant 0 : i32
    %59 = arith.cmpi eq, %arg1, %c0_i32_52 : i32
    %60 = arith.extui %59 : i1 to i32
    %c0_i32_53 = arith.constant 0 : i32
    %61 = arith.cmpi ne, %60, %c0_i32_53 : i32
    scf.if %61 {
      %c0_54 = arith.constant 0 : index
      %c0_55 = arith.constant 0 : index
      %62 = vector.load %arg9[%c0_54, %c0_55] : memref<256x288xf32, #tpu.memory_space<vmem>>, vector<256x288xf32>
      %c0_56 = arith.constant 0 : index
      %c0_57 = arith.constant 0 : index
      %63 = vector.load %arg4[%c0_56, %c0_57] : memref<256x1xf32, #tpu.memory_space<vmem>>, vector<256x1xf32>
      %64 = vector.broadcast %63 : vector<256x1xf32> to vector<256x288xf32>
      %65 = arith.mulf %62, %64 : vector<256x288xf32>
      %c0_58 = arith.constant 0 : index
      %c0_59 = arith.constant 0 : index
      %66 = vector.load %arg5[%c0_58, %c0_59] : memref<256x1xf32, #tpu.memory_space<vmem>>, vector<256x1xf32>
      %67 = vector.broadcast %66 : vector<256x1xf32> to vector<256x288xf32>
      %68 = arith.addf %65, %67 : vector<256x288xf32>
      %cst_60 = arith.constant 0.000000e+00 : f32
      %69 = vector.broadcast %cst_60 : f32 to vector<256x288xf32>
      %70 = arith.maximumf %68, %69 : vector<256x288xf32>
      %c0_61 = arith.constant 0 : index
      %c0_62 = arith.constant 0 : index
      %71 = vector.load %arg6[%c0_61, %c0_62] : memref<8x256xf32, #tpu.memory_space<vmem>>, vector<8x256xf32>
      %cst_63 = arith.constant dense<0.000000e+00> : vector<8x288xf32>
      %72 = tpu.matmul %71, %70, %cst_63 {dimension_numbers = #tpu.dot_dimension_numbers<[1], [0], [0], [1], [0, 0, 1, 1], [], []>} : vector<8x256xf32>, vector<256x288xf32>, vector<8x288xf32> -> vector<8x288xf32>
      %c0_64 = arith.constant 0 : index
      %c0_65 = arith.constant 0 : index
      %73 = vector.load %arg7[%c0_64, %c0_65] : memref<8x1xf32, #tpu.memory_space<vmem>>, vector<8x1xf32>
      %74 = vector.broadcast %73 : vector<8x1xf32> to vector<8x288xf32>
      %75 = arith.addf %72, %74 : vector<8x288xf32>
      %c0_66 = arith.constant 0 : index
      %c0_67 = arith.constant 0 : index
      %c0_68 = arith.constant 0 : index
      %76 = vector.load %arg8[%c0_66, %c0_67, %c0_68] : memref<1x8x288xf32, #tpu.memory_space<vmem>>, vector<1x8x288xf32>
      %77 = vector.shape_cast %76 : vector<1x8x288xf32> to vector<8x288xf32>
      %78 = vector.shape_cast %75 : vector<8x288xf32> to vector<1x8x288xf32>
      tpu.vector_store %arg8[%c0_66, %c0_67, %c0_68], %78 {strides = array<i32>} : memref<1x8x288xf32, #tpu.memory_space<vmem>>, vector<1x8x288xf32>,
    } else {
    }
    return
  }
  func.func @transform_0(%arg0: i32, %arg1: i32) -> (i32, i32, i32) {
    %c0_i32 = arith.constant 0 : i32
    %c0_i32_0 = arith.constant 0 : i32
    return %arg0, %arg1, %c0_i32 : i32, i32, i32
  }
  func.func @transform_1(%arg0: i32, %arg1: i32) -> (i32, i32, i32) {
    %c0_i32 = arith.constant 0 : i32
    %c0_i32_0 = arith.constant 0 : i32
    %c0_i32_1 = arith.constant 0 : i32
    return %c0_i32, %c0_i32_0, %arg1 : i32, i32, i32
  }
  func.func @transform_2(%arg0: i32, %arg1: i32) -> (i32, i32) {
    %c0_i32 = arith.constant 0 : i32
    %c0_i32_0 = arith.constant 0 : i32
    %c0_i32_1 = arith.constant 0 : i32
    return %c0_i32, %c0_i32_0 : i32, i32
  }
  func.func @transform_3(%arg0: i32, %arg1: i32) -> (i32, i32) {
    %c0_i32 = arith.constant 0 : i32
    %c0_i32_0 = arith.constant 0 : i32
    %c0_i32_1 = arith.constant 0 : i32
    return %c0_i32, %c0_i32_0 : i32, i32
  }
  func.func @transform_4(%arg0: i32, %arg1: i32) -> (i32, i32) {
    %c0_i32 = arith.constant 0 : i32
    %c0_i32_0 = arith.constant 0 : i32
    %c0_i32_1 = arith.constant 0 : i32
    return %c0_i32, %c0_i32_0 : i32, i32
  }
  func.func @transform_5(%arg0: i32, %arg1: i32) -> (i32, i32) {
    %c0_i32 = arith.constant 0 : i32
    %c0_i32_0 = arith.constant 0 : i32
    %c0_i32_1 = arith.constant 0 : i32
    return %c0_i32, %c0_i32_0 : i32, i32
  }
  func.func @transform_6(%arg0: i32, %arg1: i32) -> (i32, i32, i32) {
    %c0_i32 = arith.constant 0 : i32
    %c0_i32_0 = arith.constant 0 : i32
    %c0_i32_1 = arith.constant 0 : i32
    return %arg0, %c0_i32, %c0_i32_0 : i32, i32, i32
  }
}

</mosaic_0001>

<llo_original>
// kernel: tpu_custom_call.1
$region0: #{tpu_custom_call.1}
  #allocation0 [shape = 'u32[]', space=smem, size = 0x4, offset = 0x4, fixed_abs, tag = 'smem constant byte address 0x4 - core index']
  #allocation1 [shape = 'u32[72,128]{1,0:T(1,128)}', space=vmem, size = 0x9000, scoped, tag = 'internal scratch']
  #allocation2 [shape = 'f32[256,288]{1,0:T(8,128)}', space=vmem, size = 0x60000, scoped, tag = 'scratch operand']
  %s0 = inlined_call_operand.vmem [shape: bf16[2,4,342], index: 0, kind: input, shape index: {}]
  %s1 = inlined_call_operand.vmem [shape: bf16[9,256,4], index: 1, kind: input, shape index: {}]
  %s2 = inlined_call_operand.vmem [shape: f32[256,1], index: 2, kind: input, shape index: {}]
  %s3 = inlined_call_operand.vmem [shape: f32[256,1], index: 3, kind: input, shape index: {}]
  %s4 = inlined_call_operand.vmem [shape: f32[8,256], index: 4, kind: input, shape index: {}]
  %s5 = inlined_call_operand.vmem [shape: f32[8,1], index: 5, kind: input, shape index: {}]
  %s6 = inlined_call_operand.hbm [shape: f32[2,8,288], index: 6, kind: output, shape index: {}]
  %s7 = sld [smem:[#allocation0]]
  $region65: #{tpu_custom_call.1} parent=0
    _
  %s9 = ssub.s32 1, %s7
  %s10 = scalar_select 0, %s9, %s7
  $region1: #{tpu_custom_call.1} parent=0
    #allocation3 [shape = 'u8[24576]{0}', space=vmem, size = 0x6000, scoped, tag = 'output window, operand 0']
    #allocation4 [shape = 's32[2]{0}', space=sflag, size = 0x8, scoped, tag = 'scoped memory for tpu_custom_call.1']
    %11 = vsyncpa [#allocation4], 0
    %s12 = scalar_lea.sflag [#allocation4], 1
    %13 = vsyncpa %s12, 0
    loop: start=0, step=1, limit=4
    $region2: #{tpu_custom_call.1} parent=1 // loop_pre_header
      _
    $region3: #{tpu_custom_call.1} parent=1 // loop_header
      %s15 = sphi 0, %s19
      %p16 = scmp.ge.s32.totalorder %s15, 4
      %s22 = sphi 0, %s34
      %s23 = sphi 0, %s30
      %s24 = sphi 0, %s22
      %s25 = sphi 0, %s23
      %s26 = sphi 0, %s24
      %s27 = sphi 0, %s25
      %s39 = sphi 0, %s41
      %s42 = sphi 0, %s39
      %s43 = sphi 0, %s42
      %s59 = sphi 0, %s43
      %s65 = sphi 0, %s67
      %s68 = sphi 0, %s65
      %s69 = sphi 0, %s68
      %s85 = sphi 0, %s69
      %s89 = sphi 0, %s89
      %s91 = sphi 0, %s89
      %s92 = sphi 0, %s91
      %s106 = sphi 0, %s92
      %s110 = sphi 0, %s110
      %s112 = sphi 0, %s110
      %s113 = sphi 0, %s112
      %s127 = sphi 0, %s113
      %s131 = sphi 0, %s131
      %s133 = sphi 0, %s131
      %s134 = sphi 0, %s133
      %s148 = sphi 0, %s134
      %s152 = sphi 0, %s152
      %s154 = sphi 0, %s152
      %s155 = sphi 0, %s154
      %s169 = sphi 0, %s155
      %s175 = sphi 0, %s177
      %s178 = sphi 0, %s175
      %s179 = sphi 0, %s178
      %s195 = sphi 0, %s179
    $region4: #{tpu_custom_call.1} parent=1 // loop_header_branch
      %18 = sbr.rel (%p16) target = $region8
    $region5: #{tpu_custom_call.1} parent=1 // loop_body
      %s20 = ssub.s32 %s15, 1
      %s21 = ssub.s32 %s15, 2
      %s28 = sadd.s32 1, %s23
      %p29 = scmp.ge.s32.totalorder %s28, 1
      %s30 = scalar_select %p29, 0, %s28
      %s31 = sadd.s32 1, %s22
      %s32 = scalar_select %p29, %s31, %s22
      %p33 = scmp.ge.s32.totalorder %s32, 2
      %s34 = scalar_select %p33, 0, %s32
      %s35 = ssub.s32 %s22, %s34
      %s36 = ssub.s32 %s23, %s30
      %s37 = sor.u32 %s35, %s36
      %p38 = scmp.eq.s32.totalorder %s37, 0
      %s40 = sadd.s32 %s39, 1
      %s41 = scalar_select %p38, %s39, %s40
      %p44 = pneg %p38
      %p45 = scmp.eq.s32.totalorder %s15, 1
      %p46 = por %p44, %p45
      %p47 = scmp.ne.s32.totalorder %s39, %s42
      %p48 = scmp.eq.s32.totalorder %s15, 0
      %p49 = por %p47, %p48
      %p50 = scmp.ne.s32.totalorder %s39, %s42
      %p51 = scmp.eq.s32.totalorder %s20, 1
      %p52 = por %p50, %p51
      %p53 = scmp.ne.s32.totalorder %s42, %s43
      %p54 = scmp.eq.s32.totalorder %s20, 0
      %p55 = por %p53, %p54
      %p56 = scmp.ne.s32.totalorder %s42, %s43
      %p57 = scmp.eq.s32.totalorder %s21, 1
      %p58 = por %p56, %p57
      %p60 = scmp.ne.s32.totalorder %s43, %s59
      %p61 = scmp.eq.s32.totalorder %s21, 0
      %p62 = por %p60, %p61
      %s63 = ssub.s32 %s23, %s30
      %p64 = scmp.eq.s32.totalorder %s63, 0
      %s66 = sadd.s32 %s65, 1
      %s67 = scalar_select %p64, %s65, %s66
      %p70 = pneg %p64
      %p71 = scmp.eq.s32.totalorder %s15, 1
      %p72 = por %p70, %p71
      %p73 = scmp.ne.s32.totalorder %s65, %s68
      %p74 = scmp.eq.s32.totalorder %s15, 0
      %p75 = por %p73, %p74
      %p76 = scmp.ne.s32.totalorder %s65, %s68
      %p77 = scmp.eq.s32.totalorder %s20, 1
      %p78 = por %p76, %p77
      %p79 = scmp.ne.s32.totalorder %s68, %s69
      %p80 = scmp.eq.s32.totalorder %s20, 0
      %p81 = por %p79, %p80
      %p82 = scmp.ne.s32.totalorder %s68, %s69
      %p83 = scmp.eq.s32.totalorder %s21, 1
      %p84 = por %p82, %p83
      %p86 = scmp.ne.s32.totalorder %s69, %s85
      %p87 = scmp.eq.s32.totalorder %s21, 0
      %p88 = por %p86, %p87
      %s90 = sadd.s32 %s89, 1
      %p93 = scmp.eq.s32.totalorder %s15, 1
      %p94 = scmp.ne.s32.totalorder %s89, %s91
      %p95 = scmp.eq.s32.totalorder %s15, 0
      %p96 = por %p94, %p95
      %p97 = scmp.ne.s32.totalorder %s89, %s91
      %p98 = scmp.eq.s32.totalorder %s20, 1
      %p99 = por %p97, %p98
      %p100 = scmp.ne.s32.totalorder %s91, %s92
      %p101 = scmp.eq.s32.totalorder %s20, 0
      %p102 = por %p100, %p101
      %p103 = scmp.ne.s32.totalorder %s91, %s92
      %p104 = scmp.eq.s32.totalorder %s21, 1
      %p105 = por %p103, %p104
      %p107 = scmp.ne.s32.totalorder %s92, %s106
      %p108 = scmp.eq.s32.totalorder %s21, 0
      %p109 = por %p107, %p108
      %s111 = sadd.s32 %s110, 1
      %p114 = scmp.eq.s32.totalorder %s15, 1
      %p115 = scmp.ne.s32.totalorder %s110, %s112
      %p116 = scmp.eq.s32.totalorder %s15, 0
      %p117 = por %p115, %p116
      %p118 = scmp.ne.s32.totalorder %s110, %s112
      %p119 = scmp.eq.s32.totalorder %s20, 1
      %p120 = por %p118, %p119
      %p121 = scmp.ne.s32.totalorder %s112, %s113
      %p122 = scmp.eq.s32.totalorder %s20, 0
      %p123 = por %p121, %p122
      %p124 = scmp.ne.s32.totalorder %s112, %s113
      %p125 = scmp.eq.s32.totalorder %s21, 1
      %p126 = por %p124, %p125
      %p128 = scmp.ne.s32.totalorder %s113, %s127
      %p129 = scmp.eq.s32.totalorder %s21, 0
      %p130 = por %p128, %p129
      %s132 = sadd.s32 %s131, 1
      %p135 = scmp.eq.s32.totalorder %s15, 1
      %p136 = scmp.ne.s32.totalorder %s131, %s133
      %p137 = scmp.eq.s32.totalorder %s15, 0
      %p138 = por %p136, %p137
      %p139 = scmp.ne.s32.totalorder %s131, %s133
      %p140 = scmp.eq.s32.totalorder %s20, 1
      %p141 = por %p139, %p140
      %p142 = scmp.ne.s32.totalorder %s133, %s134
      %p143 = scmp.eq.s32.totalorder %s20, 0
      %p144 = por %p142, %p143
      %p145 = scmp.ne.s32.totalorder %s133, %s134
      %p146 = scmp.eq.s32.totalorder %s21, 1
      %p147 = por %p145, %p146
      %p149 = scmp.ne.s32.totalorder %s134, %s148
      %p150 = scmp.eq.s32.totalorder %s21, 0
      %p151 = por %p149, %p150
      %s153 = sadd.s32 %s152, 1
      %p156 = scmp.eq.s32.totalorder %s15, 1
      %p157 = scmp.ne.s32.totalorder %s152, %s154
      %p158 = scmp.eq.s32.totalorder %s15, 0
      %p159 = por %p157, %p158
      %p160 = scmp.ne.s32.totalorder %s152, %s154
      %p161 = scmp.eq.s32.totalorder %s20, 1
      %p162 = por %p160, %p161
      %p163 = scmp.ne.s32.totalorder %s154, %s155
      %p164 = scmp.eq.s32.totalorder %s20, 0
      %p165 = por %p163, %p164
      %p166 = scmp.ne.s32.totalorder %s154, %s155
      %p167 = scmp.eq.s32.totalorder %s21, 1
      %p168 = por %p166, %p167
      %p170 = scmp.ne.s32.totalorder %s155, %s169
      %p171 = scmp.eq.s32.totalorder %s21, 0
      %p172 = por %p170, %p171
      %s173 = ssub.s32 %s22, %s34
      %p174 = scmp.eq.s32.totalorder %s173, 0
      %s176 = sadd.s32 %s175, 1
      %s177 = scalar_select %p174, %s175, %s176
      %p180 = pneg %p174
      %p181 = scmp.eq.s32.totalorder %s15, 1
      %p182 = por %p180, %p181
      %p183 = scmp.ne.s32.totalorder %s175, %s178
      %p184 = scmp.eq.s32.totalorder %s15, 0
      %p185 = por %p183, %p184
      %p186 = scmp.ne.s32.totalorder %s175, %s178
      %p187 = scmp.eq.s32.totalorder %s20, 1
      %p188 = por %p186, %p187
      %p189 = scmp.ne.s32.totalorder %s178, %s179
      %p190 = scmp.eq.s32.totalorder %s20, 0
      %p191 = por %p189, %p190
      %p192 = scmp.ne.s32.totalorder %s178, %s179
      %p193 = scmp.eq.s32.totalorder %s21, 1
      %p194 = por %p192, %p193
      %p196 = scmp.ne.s32.totalorder %s179, %s195
      %p197 = scmp.eq.s32.totalorder %s21, 0
      %p198 = por %p196, %p197
      %p199 = scmp.le.s32.totalorder 1, %s15
      %p200 = scmp.lt.s32.totalorder %s15, 3
      %p201 = pnand %p199, %p200
      %p202 = pneg %p201
      // Predicated region
      $region9: #{tpu_custom_call.1} parent=5 // pred_check
        _
      $region10: #{tpu_custom_call.1} parent=5 // pred_check_branch
        %204 = sbr.rel (%p201) target = $region12
      $region11: #{tpu_custom_call.1} parent=5 // pred_region
        %s205 = ssub.s32 %s15, 1
        // Predicated region
        $region13: #{tpu_custom_call.1} parent=11 // pred_check
          %p206 = pneg %p81
        $region14: #{tpu_custom_call.1} parent=11 // pred_check_branch
          %208 = sbr.rel (%p206) target = $region16
        $region15: #{tpu_custom_call.1} parent=11 // pred_region
          %p209 = scmp.lt.s32.totalorder %s25, 0
          %s210 = scalar_select %p209, %s25, 0
          %s211 = smul.addr %s210, 4
          %s212 = scalar_lea.vmem %s1, %s211
        $region16: #{tpu_custom_call.1} parent=11 // pred_fallthru
          _
        // Predicated region
        $region17: #{tpu_custom_call.1} parent=11 // pred_check
          %p213 = pneg %p102
        $region18: #{tpu_custom_call.1} parent=11 // pred_check_branch
          %215 = sbr.rel (%p213) target = $region20
        $region19: #{tpu_custom_call.1} parent=11 // pred_region
          _
        $region20: #{tpu_custom_call.1} parent=11 // pred_fallthru
          _
        // Predicated region
        $region21: #{tpu_custom_call.1} parent=11 // pred_check
          %p216 = pneg %p123
        $region22: #{tpu_custom_call.1} parent=11 // pred_check_branch
          %218 = sbr.rel (%p216) target = $region24
        $region23: #{tpu_custom_call.1} parent=11 // pred_region
          _
        $region24: #{tpu_custom_call.1} parent=11 // pred_fallthru
          _
        // Predicated region
        $region25: #{tpu_custom_call.1} parent=11 // pred_check
          %p219 = pneg %p144
        $region26: #{tpu_custom_call.1} parent=11 // pred_check_branch
          %221 = sbr.rel (%p219) target = $region28
        $region27: #{tpu_custom_call.1} parent=11 // pred_region
          _
        $region28: #{tpu_custom_call.1} parent=11 // pred_fallthru
          _
        // Predicated region
        $region29: #{tpu_custom_call.1} parent=11 // pred_check
          %p222 = pneg %p165
        $region30: #{tpu_custom_call.1} parent=11 // pred_check_branch
          %224 = sbr.rel (%p222) target = $region32
        $region31: #{tpu_custom_call.1} parent=11 // pred_region
          _
        $region32: #{tpu_custom_call.1} parent=11 // pred_fallthru
          _
      $region12: #{tpu_custom_call.1} parent=5 // pred_fallthru
        _
      %p225 = scmp.lt.s32.totalorder %s15, 2
      // Predicated region
      $region33: #{tpu_custom_call.1} parent=5 // pred_check
        %p226 = pneg %p225
      $region34: #{tpu_custom_call.1} parent=5 // pred_check_branch
        %228 = sbr.rel (%p226) target = $region36
      $region35: #{tpu_custom_call.1} parent=5 // pred_region
        // Predicated region
        $region37: #{tpu_custom_call.1} parent=35 // pred_check
          %p229 = pneg %p49
        $region38: #{tpu_custom_call.1} parent=35 // pred_check_branch
          %231 = sbr.rel (%p229) target = $region40
        $region39: #{tpu_custom_call.1} parent=35 // pred_region
          %p232 = scmp.lt.s32.totalorder %s22, 1
          %s233 = scalar_select %p232, %s22, 1
          %p234 = scmp.lt.s32.totalorder %s23, 0
          %s235 = scalar_select %p234, %s23, 0
          %s236 = smul.addr %s235, 3
          %s237 = smul.addr %s233, 3
          %s238 = sadd.s32 %s236, %s237
          %s239 = smul.addr %s238, 2
          %s240 = scalar_lea.vmem %s0, %s239
        $region40: #{tpu_custom_call.1} parent=35 // pred_fallthru
          _
      $region36: #{tpu_custom_call.1} parent=5 // pred_fallthru
        _
      %p241 = scmp.le.s32.totalorder 1, %s15
      %p242 = scmp.lt.s32.totalorder %s15, 3
      %p243 = pnand %p241, %p242
      %p244 = pneg %p243
      // Predicated region
      $region41: #{tpu_custom_call.1} parent=5 // pred_check
        _
      $region42: #{tpu_custom_call.1} parent=5 // pred_check_branch
        %246 = sbr.rel (%p243) target = $region44
      $region43: #{tpu_custom_call.1} parent=5 // pred_region
        %s247 = ssub.s32 %s15, 1
        %p248 = scmp.lt.s32.totalorder %s24, 1
        %s249 = scalar_select %p248, %s24, 1
        %p250 = scmp.lt.s32.totalorder %s25, 0
        %s251 = scalar_select %p250, %s25, 0
        %s252 = smul.addr %s251, 3
        %s253 = smul.addr %s249, 3
        %s254 = sadd.s32 %s252, %s253
        %s255 = smul.addr %s254, 2
        %s256 = scalar_lea.vmem %s0, %s255
        %p257 = pneg %p55
        %p258 = pneg %p52
        %p259 = scmp.lt.s32.totalorder %s25, 0
        %s260 = scalar_select %p259, %s25, 0
        %s261 = smul.addr %s260, 4
        %s262 = scalar_lea.vmem %s1, %s261
        %p263 = pneg %p81
        %p264 = pneg %p78
        %p265 = pneg %p102
        %p266 = pneg %p99
        %p267 = pneg %p123
        %p268 = pneg %p120
        %p269 = pneg %p144
        %p270 = pneg %p141
        %p271 = pneg %p165
        %p272 = pneg %p162
        %p273 = pneg %p191
        %p274 = pneg %p188
        %s275 = sand.u32 %s178, 1
        %s276 = scalar_lea.sflag [#allocation4], %s275
        %s277 = sand.u32 %s178, 1
        %s278 = smul.addr %s277, 24
        %s279 = scalar_lea.vmem [#allocation3], %s278
        %p280 = scmp.lt.s32.totalorder %s24, 1
        %s281 = scalar_select %p280, %s24, 1
        %p282 = scmp.lt.s32.totalorder %s25, 0
        %s283 = scalar_select %p282, %s25, 0
        %s284 = smul.addr %s283, 3
        %s285 = smul.addr %s281, 3
        %s286 = sadd.s32 %s284, %s285
        %s287 = smul.addr %s286, 2
        %s288 = scalar_lea.vmem %s0, %s287
        %p289 = scmp.lt.s32.totalorder %s25, 0
        %s290 = scalar_select %p289, %s25, 0
        %s291 = smul.addr %s290, 4
        %s292 = scalar_lea.vmem %s1, %s291
        %p294 = scmp.eq.s32.totalorder %s25, 0
        // Predicated region
        $region45: #{tpu_custom_call.1} parent=43 // pred_check
          %p295 = pneg %p294
        $region46: #{tpu_custom_call.1} parent=43 // pred_check_branch
          %297 = sbr.rel (%p295) target = $region48
        $region47: #{tpu_custom_call.1} parent=43 // pred_region
          %298 = vst [vmem:[#allocation2] sm:$0xff] 0.0
          %299 = vst [vmem:[#allocation2 + $0x8] sm:$0xff] 0.0
          %vm300 = vcmask 261120
          %301 = vst.msk [vmem:[#allocation2 + $0x10] sm:$0xff] %vm300, 0.0
          %302 = vst [vmem:[#allocation2 + $0x18] sm:$0xff] 0.0
          %303 = vst [vmem:[#allocation2 + $0x20] sm:$0xff] 0.0
          %304 = vst.msk [vmem:[#allocation2 + $0x28] sm:$0xff] %vm300, 0.0
          %305 = vst [vmem:[#allocation2 + $0x30] sm:$0xff] 0.0
          %306 = vst [vmem:[#allocation2 + $0x38] sm:$0xff] 0.0
          %307 = vst.msk [vmem:[#allocation2 + $0x40] sm:$0xff] %vm300, 0.0
          %308 = vst [vmem:[#allocation2 + $0x48] sm:$0xff] 0.0
          %309 = vst [vmem:[#allocation2 + $0x50] sm:$0xff] 0.0
          %310 = vst.msk [vmem:[#allocation2 + $0x58] sm:$0xff] %vm300, 0.0
          %311 = vst [vmem:[#allocation2 + $0x60] sm:$0xff] 0.0
          %312 = vst [vmem:[#allocation2 + $0x68] sm:$0xff] 0.0
          %313 = vst.msk [vmem:[#allocation2 + $0x70] sm:$0xff] %vm300, 0.0
          %314 = vst [vmem:[#allocation2 + $0x78] sm:$0xff] 0.0
          %315 = vst [vmem:[#allocation2 + $0x80] sm:$0xff] 0.0
          %316 = vst.msk [vmem:[#allocation2 + $0x88] sm:$0xff] %vm300, 0.0
          %317 = vst [vmem:[#allocation2 + $0x90] sm:$0xff] 0.0
          %318 = vst [vmem:[#allocation2 + $0x98] sm:$0xff] 0.0
          %319 = vst.msk [vmem:[#allocation2 + $0xa0] sm:$0xff] %vm300, 0.0
          %320 = vst [vmem:[#allocation2 + $0xa8] sm:$0xff] 0.0
          %321 = vst [vmem:[#allocation2 + $0xb0] sm:$0xff] 0.0
          %322 = vst.msk [vmem:[#allocation2 + $0xb8] sm:$0xff] %vm300, 0.0
          %323 = vst [vmem:[#allocation2 + $0xc0] sm:$0xff] 0.0
          %324 = vst [vmem:[#allocation2 + $0xc8] sm:$0xff] 0.0
          %325 = vst.msk [vmem:[#allocation2 + $0xd0] sm:$0xff] %vm300, 0.0
          %326 = vst [vmem:[#allocation2 + $0xd8] sm:$0xff] 0.0
          %327 = vst [vmem:[#allocation2 + $0xe0] sm:$0xff] 0.0
          %328 = vst.msk [vmem:[#allocation2 + $0xe8] sm:$0xff] %vm300, 0.0
          %329 = vst [vmem:[#allocation2 + $0xf0] sm:$0xff] 0.0
          %330 = vst [vmem:[#allocation2 + $0xf8] sm:$0xff] 0.0
          %331 = vst.msk [vmem:[#allocation2 + $0x100] sm:$0xff] %vm300, 0.0
          %332 = vst [vmem:[#allocation2 + $0x108] sm:$0xff] 0.0
          %333 = vst [vmem:[#allocation2 + $0x110] sm:$0xff] 0.0
          %334 = vst.msk [vmem:[#allocation2 + $0x118] sm:$0xff] %vm300, 0.0
          %335 = vst [vmem:[#allocation2 + $0x120] sm:$0xff] 0.0
          %336 = vst [vmem:[#allocation2 + $0x128] sm:$0xff] 0.0
          %337 = vst.msk [vmem:[#allocation2 + $0x130] sm:$0xff] %vm300, 0.0
          %338 = vst [vmem:[#allocation2 + $0x138] sm:$0xff] 0.0
          %339 = vst [vmem:[#allocation2 + $0x140] sm:$0xff] 0.0
          %340 = vst.msk [vmem:[#allocation2 + $0x148] sm:$0xff] %vm300, 0.0
          %341 = vst [vmem:[#allocation2 + $0x150] sm:$0xff] 0.0
          %342 = vst [vmem:[#allocation2 + $0x158] sm:$0xff] 0.0
          %343 = vst.msk [vmem:[#allocation2 + $0x160] sm:$0xff] %vm300, 0.0
          %344 = vst [vmem:[#allocation2 + $0x168] sm:$0xff] 0.0
          %345 = vst [vmem:[#allocation2 + $0x170] sm:$0xff] 0.0
          %346 = vst.msk [vmem:[#allocation2 + $0x178] sm:$0xff] %vm300, 0.0
          %347 = vst [vmem:[#allocation2 + $0x180] sm:$0xff] 0.0
          %348 = vst [vmem:[#allocation2 + $0x188] sm:$0xff] 0.0
          %349 = vst.msk [vmem:[#allocation2 + $0x190] sm:$0xff] %vm300, 0.0
          %350 = vst [vmem:[#allocation2 + $0x198] sm:$0xff] 0.0
          %351 = vst [vmem:[#allocation2 + $0x1a0] sm:$0xff] 0.0
          %352 = vst.msk [vmem:[#allocation2 + $0x1a8] sm:$0xff] %vm300, 0.0
          %353 = vst [vmem:[#allocation2 + $0x1b0] sm:$0xff] 0.0
          %354 = vst [vmem:[#allocation2 + $0x1b8] sm:$0xff] 0.0
          %355 = vst.msk [vmem:[#allocation2 + $0x1c0] sm:$0xff] %vm300, 0.0
          %356 = vst [vmem:[#allocation2 + $0x1c8] sm:$0xff] 0.0
          %357 = vst [vmem:[#allocation2 + $0x1d0] sm:$0xff] 0.0
          %358 = vst.msk [vmem:[#allocation2 + $0x1d8] sm:$0xff] %vm300, 0.0
          %359 = vst [vmem:[#allocation2 + $0x1e0] sm:$0xff] 0.0
          %360 = vst [vmem:[#allocation2 + $0x1e8] sm:$0xff] 0.0
          %361 = vst.msk [vmem:[#allocation2 + $0x1f0] sm:$0xff] %vm300, 0.0
          %362 = vst [vmem:[#allocation2 + $0x1f8] sm:$0xff] 0.0
          %363 = vst [vmem:[#allocation2 + $0x200] sm:$0xff] 0.0
          %364 = vst.msk [vmem:[#allocation2 + $0x208] sm:$0xff] %vm300, 0.0
          %365 = vst [vmem:[#allocation2 + $0x210] sm:$0xff] 0.0
          %366 = vst [vmem:[#allocation2 + $0x218] sm:$0xff] 0.0
          %367 = vst.msk [vmem:[#allocation2 + $0x220] sm:$0xff] %vm300, 0.0
          %368 = vst [vmem:[#allocation2 + $0x228] sm:$0xff] 0.0
          %369 = vst [vmem:[#allocation2 + $0x230] sm:$0xff] 0.0
          %370 = vst.msk [vmem:[#allocation2 + $0x238] sm:$0xff] %vm300, 0.0
          %371 = vst [vmem:[#allocation2 + $0x240] sm:$0xff] 0.0
          %372 = vst [vmem:[#allocation2 + $0x248] sm:$0xff] 0.0
          %373 = vst.msk [vmem:[#allocation2 + $0x250] sm:$0xff] %vm300, 0.0
          %374 = vst [vmem:[#allocation2 + $0x258] sm:$0xff] 0.0
          %375 = vst [vmem:[#allocation2 + $0x260] sm:$0xff] 0.0
          %376 = vst.msk [vmem:[#allocation2 + $0x268] sm:$0xff] %vm300, 0.0
          %377 = vst [vmem:[#allocation2 + $0x270] sm:$0xff] 0.0
          %378 = vst [vmem:[#allocation2 + $0x278] sm:$0xff] 0.0
          %379 = vst.msk [vmem:[#allocation2 + $0x280] sm:$0xff] %vm300, 0.0
          %380 = vst [vmem:[#allocation2 + $0x288] sm:$0xff] 0.0
          %381 = vst [vmem:[#allocation2 + $0x290] sm:$0xff] 0.0
          %382 = vst.msk [vmem:[#allocation2 + $0x298] sm:$0xff] %vm300, 0.0
          %383 = vst [vmem:[#allocation2 + $0x2a0] sm:$0xff] 0.0
          %384 = vst [vmem:[#allocation2 + $0x2a8] sm:$0xff] 0.0
          %385 = vst.msk [vmem:[#allocation2 + $0x2b0] sm:$0xff] %vm300, 0.0
          %386 = vst [vmem:[#allocation2 + $0x2b8] sm:$0xff] 0.0
          %387 = vst [vmem:[#allocation2 + $0x2c0] sm:$0xff] 0.0
          %388 = vst.msk [vmem:[#allocation2 + $0x2c8] sm:$0xff] %vm300, 0.0
          %389 = vst [vmem:[#allocation2 + $0x2d0] sm:$0xff] 0.0
          %390 = vst [vmem:[#allocation2 + $0x2d8] sm:$0xff] 0.0
          %391 = vst.msk [vmem:[#allocation2 + $0x2e0] sm:$0xff] %vm300, 0.0
          %392 = vst [vmem:[#allocation2 + $0x2e8] sm:$0xff] 0.0
          %393 = vst [vmem:[#allocation2 + $0x2f0] sm:$0xff] 0.0
          %394 = vst.msk [vmem:[#allocation2 + $0x2f8] sm:$0xff] %vm300, 0.0
        $region48: #{tpu_custom_call.1} parent=43 // pred_fallthru
          _
        %v395 = vld [vmem:[#allocation2] sm:$0xff]
        %v396 = vld [vmem:[#allocation2 + $0x8] sm:$0xff]
        %v397 = vld [vmem:[#allocation2 + $0x10] sm:$0xff]
        %v398 = vld [vmem:[#allocation2 + $0x18] sm:$0xff]
        %v399 = vld [vmem:[#allocation2 + $0x20] sm:$0xff]
        %v400 = vld [vmem:[#allocation2 + $0x28] sm:$0xff]
        %v401 = vld [vmem:[#allocation2 + $0x30] sm:$0xff]
        %v402 = vld [vmem:[#allocation2 + $0x38] sm:$0xff]
        %v403 = vld [vmem:[#allocation2 + $0x40] sm:$0xff]
        %v404 = vld [vmem:[#allocation2 + $0x48] sm:$0xff]
        %v405 = vld [vmem:[#allocation2 + $0x50] sm:$0xff]
        %v406 = vld [vmem:[#allocation2 + $0x58] sm:$0xff]
        %v407 = vld [vmem:[#allocation2 + $0x60] sm:$0xff]
        %v408 = vld [vmem:[#allocation2 + $0x68] sm:$0xff]
        %v409 = vld [vmem:[#allocation2 + $0x70] sm:$0xff]
        %v410 = vld [vmem:[#allocation2 + $0x78] sm:$0xff]
        %v411 = vld [vmem:[#allocation2 + $0x80] sm:$0xff]
        %v412 = vld [vmem:[#allocation2 + $0x88] sm:$0xff]
        %v413 = vld [vmem:[#allocation2 + $0x90] sm:$0xff]
        %v414 = vld [vmem:[#allocation2 + $0x98] sm:$0xff]
        %v415 = vld [vmem:[#allocation2 + $0xa0] sm:$0xff]
        %v416 = vld [vmem:[#allocation2 + $0xa8] sm:$0xff]
        %v417 = vld [vmem:[#allocation2 + $0xb0] sm:$0xff]
        %v418 = vld [vmem:[#allocation2 + $0xb8] sm:$0xff]
        %v419 = vld [vmem:[#allocation2 + $0xc0] sm:$0xff]
        %v420 = vld [vmem:[#allocation2 + $0xc8] sm:$0xff]
        %v421 = vld [vmem:[#allocation2 + $0xd0] sm:$0xff]
        %v422 = vld [vmem:[#allocation2 + $0xd8] sm:$0xff]
        %v423 = vld [vmem:[#allocation2 + $0xe0] sm:$0xff]
        %v424 = vld [vmem:[#allocation2 + $0xe8] sm:$0xff]
        %v425 = vld [vmem:[#allocation2 + $0xf0] sm:$0xff]
        %v426 = vld [vmem:[#allocation2 + $0xf8] sm:$0xff]
        %v427 = vld [vmem:[#allocation2 + $0x100] sm:$0xff]
        %v428 = vld [vmem:[#allocation2 + $0x108] sm:$0xff]
        %v429 = vld [vmem:[#allocation2 + $0x110] sm:$0xff]
        %v430 = vld [vmem:[#allocation2 + $0x118] sm:$0xff]
        %v431 = vld [vmem:[#allocation2 + $0x120] sm:$0xff]
        %v432 = vld [vmem:[#allocation2 + $0x128] sm:$0xff]
        %v433 = vld [vmem:[#allocation2 + $0x130] sm:$0xff]
        %v434 = vld [vmem:[#allocation2 + $0x138] sm:$0xff]
        %v435 = vld [vmem:[#allocation2 + $0x140] sm:$0xff]
        %v436 = vld [vmem:[#allocation2 + $0x148] sm:$0xff]
        %v437 = vld [vmem:[#allocation2 + $0x150] sm:$0xff]
        %v438 = vld [vmem:[#allocation2 + $0x158] sm:$0xff]
        %v439 = vld [vmem:[#allocation2 + $0x160] sm:$0xff]
        %v440 = vld [vmem:[#allocation2 + $0x168] sm:$0xff]
        %v441 = vld [vmem:[#allocation2 + $0x170] sm:$0xff]
        %v442 = vld [vmem:[#allocation2 + $0x178] sm:$0xff]
        %v443 = vld [vmem:[#allocation2 + $0x180] sm:$0xff]
        %v444 = vld [vmem:[#allocation2 + $0x188] sm:$0xff]
        %v445 = vld [vmem:[#allocation2 + $0x190] sm:$0xff]
        %v446 = vld [vmem:[#allocation2 + $0x198] sm:$0xff]
        %v447 = vld [vmem:[#allocation2 + $0x1a0] sm:$0xff]
        %v448 = vld [vmem:[#allocation2 + $0x1a8] sm:$0xff]
        %v449 = vld [vmem:[#allocation2 + $0x1b0] sm:$0xff]
        %v450 = vld [vmem:[#allocation2 + $0x1b8] sm:$0xff]
        %v451 = vld [vmem:[#allocation2 + $0x1c0] sm:$0xff]
        %v452 = vld [vmem:[#allocation2 + $0x1c8] sm:$0xff]
        %v453 = vld [vmem:[#allocation2 + $0x1d0] sm:$0xff]
        %v454 = vld [vmem:[#allocation2 + $0x1d8] sm:$0xff]
        %v455 = vld [vmem:[#allocation2 + $0x1e0] sm:$0xff]
        %v456 = vld [vmem:[#allocation2 + $0x1e8] sm:$0xff]
        %v457 = vld [vmem:[#allocation2 + $0x1f0] sm:$0xff]
        %v458 = vld [vmem:[#allocation2 + $0x1f8] sm:$0xff]
        %v459 = vld [vmem:[#allocation2 + $0x200] sm:$0xff]
        %v460 = vld [vmem:[#allocation2 + $0x208] sm:$0xff]
        %v461 = vld [vmem:[#allocation2 + $0x210] sm:$0xff]
        %v462 = vld [vmem:[#allocation2 + $0x218] sm:$0xff]
        %v463 = vld [vmem:[#allocation2 + $0x220] sm:$0xff]
        %v464 = vld [vmem:[#allocation2 + $0x228] sm:$0xff]
        %v465 = vld [vmem:[#allocation2 + $0x230] sm:$0xff]
        %v466 = vld [vmem:[#allocation2 + $0x238] sm:$0xff]
        %v467 = vld [vmem:[#allocation2 + $0x240] sm:$0xff]
        %v468 = vld [vmem:[#allocation2 + $0x248] sm:$0xff]
        %v469 = vld [vmem:[#allocation2 + $0x250] sm:$0xff]
        %v470 = vld [vmem:[#allocation2 + $0x258] sm:$0xff]
        %v471 = vld [vmem:[#allocation2 + $0x260] sm:$0xff]
        %v472 = vld [vmem:[#allocation2 + $0x268] sm:$0xff]
        %v473 = vld [vmem:[#allocation2 + $0x270] sm:$0xff]
        %v474 = vld [vmem:[#allocation2 + $0x278] sm:$0xff]
        %v475 = vld [vmem:[#allocation2 + $0x280] sm:$0xff]
        %v476 = vld [vmem:[#allocation2 + $0x288] sm:$0xff]
        %v477 = vld [vmem:[#allocation2 + $0x290] sm:$0xff]
        %v478 = vld [vmem:[#allocation2 + $0x298] sm:$0xff]
        %v479 = vld [vmem:[#allocation2 + $0x2a0] sm:$0xff]
        %v480 = vld [vmem:[#allocation2 + $0x2a8] sm:$0xff]
        %v481 = vld [vmem:[#allocation2 + $0x2b0] sm:$0xff]
        %v482 = vld [vmem:[#allocation2 + $0x2b8] sm:$0xff]
        %v483 = vld [vmem:[#allocation2 + $0x2c0] sm:$0xff]
        %v484 = vld [vmem:[#allocation2 + $0x2c8] sm:$0xff]
        %v485 = vld [vmem:[#allocation2 + $0x2d0] sm:$0xff]
        %v486 = vld [vmem:[#allocation2 + $0x2d8] sm:$0xff]
        %v487 = vld [vmem:[#allocation2 + $0x2e0] sm:$0xff]
        %v488 = vld [vmem:[#allocation2 + $0x2e8] sm:$0xff]
        %v489 = vld [vmem:[#allocation2 + $0x2f0] sm:$0xff]
        %v490 = vld [vmem:[#allocation2 + $0x2f8] sm:$0xff]
        %v491 = vld [vmem:[%s288] sm:$0x3f]
        %v492 = vld [vmem:[%s292] sm:$0xf]
        %v493 = vld [vmem:[%s292 + $0x4] sm:$0xf]
        %v494 = vld [vmem:[%s292 + $0x8] sm:$0xf]
        %v495 = vld [vmem:[%s292 + $0xc] sm:$0xf]
        %v496 = vld [vmem:[%s292 + $0x10] sm:$0xf]
        %v497 = vld [vmem:[%s292 + $0x14] sm:$0xf]
        %v498 = vld [vmem:[%s292 + $0x18] sm:$0xf]
        %v499 = vld [vmem:[%s292 + $0x1c] sm:$0xf]
        %v500 = vld [vmem:[%s292 + $0x20] sm:$0xf]
        %v501 = vld [vmem:[%s292 + $0x24] sm:$0xf]
        %v502 = vld [vmem:[%s292 + $0x28] sm:$0xf]
        %v503 = vld [vmem:[%s292 + $0x2c] sm:$0xf]
        %v504 = vld [vmem:[%s292 + $0x30] sm:$0xf]
        %v505 = vld [vmem:[%s292 + $0x34] sm:$0xf]
        %v506 = vld [vmem:[%s292 + $0x38] sm:$0xf]
        %v507 = vld [vmem:[%s292 + $0x3c] sm:$0xf]
        %v508 = vld [vmem:[%s292 + $0x40] sm:$0xf]
        %v509 = vld [vmem:[%s292 + $0x44] sm:$0xf]
        %v510 = vld [vmem:[%s292 + $0x48] sm:$0xf]
        %v511 = vld [vmem:[%s292 + $0x4c] sm:$0xf]
        %v512 = vld [vmem:[%s292 + $0x50] sm:$0xf]
        %v513 = vld [vmem:[%s292 + $0x54] sm:$0xf]
        %v514 = vld [vmem:[%s292 + $0x58] sm:$0xf]
        %v515 = vld [vmem:[%s292 + $0x5c] sm:$0xf]
        %v516 = vld [vmem:[%s292 + $0x60] sm:$0xf]
        %v517 = vld [vmem:[%s292 + $0x64] sm:$0xf]
        %v518 = vld [vmem:[%s292 + $0x68] sm:$0xf]
        %v519 = vld [vmem:[%s292 + $0x6c] sm:$0xf]
        %v520 = vld [vmem:[%s292 + $0x70] sm:$0xf]
        %v521 = vld [vmem:[%s292 + $0x74] sm:$0xf]
        %v522 = vld [vmem:[%s292 + $0x78] sm:$0xf]
        %v523 = vld [vmem:[%s292 + $0x7c] sm:$0xf]
        %v556 = vunpack.c.l.b16 %v492
        %v557 = vunpack.c.l.b16 %v493
        %v558 = vunpack.c.l.b16 %v494
        %v559 = vunpack.c.l.b16 %v495
        %v560 = vunpack.c.l.b16 %v496
        %v561 = vunpack.c.l.b16 %v497
        %v562 = vunpack.c.l.b16 %v498
        %v563 = vunpack.c.l.b16 %v499
        %v564 = vunpack.c.l.b16 %v500
        %v565 = vunpack.c.l.b16 %v501
        %v566 = vunpack.c.l.b16 %v502
        %v567 = vunpack.c.l.b16 %v503
        %v568 = vunpack.c.l.b16 %v504
        %v569 = vunpack.c.l.b16 %v505
        %v570 = vunpack.c.l.b16 %v506
        %v571 = vunpack.c.l.b16 %v507
        %v572 = vunpack.c.l.b16 %v508
        %v573 = vunpack.c.l.b16 %v509
        %v574 = vunpack.c.l.b16 %v510
        %v575 = vunpack.c.l.b16 %v511
        %v576 = vunpack.c.l.b16 %v512
        %v577 = vunpack.c.l.b16 %v513
        %v578 = vunpack.c.l.b16 %v514
        %v579 = vunpack.c.l.b16 %v515
        %v580 = vunpack.c.l.b16 %v516
        %v581 = vunpack.c.l.b16 %v517
        %v582 = vunpack.c.l.b16 %v518
        %v583 = vunpack.c.l.b16 %v519
        %v584 = vunpack.c.l.b16 %v520
        %v585 = vunpack.c.l.b16 %v521
        %v586 = vunpack.c.l.b16 %v522
        %v587 = vunpack.c.l.b16 %v523
        %v588 = vpack.c.b16 %v557, %v556
        %v589 = vpack.c.b16 %v559, %v558
        %v590 = vpack.c.b16 %v561, %v560
        %v591 = vpack.c.b16 %v563, %v562
        %v592 = vpack.c.b16 %v565, %v564
        %v593 = vpack.c.b16 %v567, %v566
        %v594 = vpack.c.b16 %v569, %v568
        %v595 = vpack.c.b16 %v571, %v570
        %v596 = vpack.c.b16 %v573, %v572
        %v597 = vpack.c.b16 %v575, %v574
        %v598 = vpack.c.b16 %v577, %v576
        %v599 = vpack.c.b16 %v579, %v578
        %v600 = vpack.c.b16 %v581, %v580
        %v601 = vpack.c.b16 %v583, %v582
        %v602 = vpack.c.b16 %v585, %v584
        %v603 = vpack.c.b16 %v587, %v586
        %605 = vst [vmem:[#allocation1] ss:$4 sm:$0xff] %v491
        %v606 = vld.sshfl [vmem:[#allocation1] sm:$0xff pattern:$0x73625140]
        %v607 = vld.sshfl [vmem:[#allocation1 + $0x8] sm:$0xff pattern:$0x73625140]
        %v608 = vld.sshfl [vmem:[#allocation1 + $0x10] sm:$0xff pattern:$0x73625140]
        %vm609 = vcmask 31744
        %v611 = vsel %vm609, %v588, 0
        %v614 = vsel %vm609, %v589, 0
        %v617 = vsel %vm609, %v590, 0
        %v620 = vsel %vm609, %v591, 0
        %v623 = vsel %vm609, %v592, 0
        %v626 = vsel %vm609, %v593, 0
        %v629 = vsel %vm609, %v594, 0
        %v632 = vsel %vm609, %v595, 0
        %v635 = vsel %vm609, %v596, 0
        %v638 = vsel %vm609, %v597, 0
        %v641 = vsel %vm609, %v598, 0
        %v644 = vsel %vm609, %v599, 0
        %v647 = vsel %vm609, %v600, 0
        %v650 = vsel %vm609, %v601, 0
        %v653 = vsel %vm609, %v602, 0
        %v656 = vsel %vm609, %v603, 0
        %vm658 = vcmask 1041408
        %v659 = vsel %vm658, %v606, 0
        %v661 = vsel %vm658, %v607, 0
        %v663 = vsel %vm658, %v608, 0
        %665 = vmatpush.bf16.msra.mxu0 0
        %666 = vmatpush.bf16.msra.mxu0 0
        %667 = vmatpush.bf16.msra.mxu0 0
        %668 = vmatpush.bf16.msra.mxu0 0
        %669 = vmatpush.bf16.msra.mxu0 0
        %670 = vmatpush.bf16.msra.mxu0 0
        %671 = vmatpush.bf16.msra.mxu0 0
        %672 = vmatpush.bf16.msra.mxu0 %v659
        %673 = vmatmul.bf16.gmra.mxu0 %v611
        %v674 = vpop.f32.mrf.mxu0
        %v675 = vadd.f32 0.0, %v674
        %v676 = vpop.f32.mrf.mxu0
        %v677 = vadd.f32 0.0, %v676
        %678 = vmatmul.bf16.gmra.mxu0 %v614
        %v679 = vpop.f32.mrf.mxu0
        %v680 = vadd.f32 0.0, %v679
        %v681 = vpop.f32.mrf.mxu0
        %v682 = vadd.f32 0.0, %v681
        %683 = vmatmul.bf16.gmra.mxu0 %v617
        %v684 = vpop.f32.mrf.mxu0
        %v685 = vadd.f32 0.0, %v684
        %v686 = vpop.f32.mrf.mxu0
        %v687 = vadd.f32 0.0, %v686
        %688 = vmatmul.bf16.gmra.mxu0 %v620
        %v689 = vpop.f32.mrf.mxu0
        %v690 = vadd.f32 0.0, %v689
        %v691 = vpop.f32.mrf.mxu0
        %v692 = vadd.f32 0.0, %v691
        %693 = vmatmul.bf16.gmra.mxu0 %v623
        %v694 = vpop.f32.mrf.mxu0
        %v695 = vadd.f32 0.0, %v694
        %v696 = vpop.f32.mrf.mxu0
        %v697 = vadd.f32 0.0, %v696
        %698 = vmatmul.bf16.gmra.mxu0 %v626
        %v699 = vpop.f32.mrf.mxu0
        %v700 = vadd.f32 0.0, %v699
        %v701 = vpop.f32.mrf.mxu0
        %v702 = vadd.f32 0.0, %v701
        %703 = vmatmul.bf16.gmra.mxu0 %v629
        %v704 = vpop.f32.mrf.mxu0
        %v705 = vadd.f32 0.0, %v704
        %v706 = vpop.f32.mrf.mxu0
        %v707 = vadd.f32 0.0, %v706
        %708 = vmatmul.bf16.gmra.mxu0 %v632
        %v709 = vpop.f32.mrf.mxu0
        %v710 = vadd.f32 0.0, %v709
        %v711 = vpop.f32.mrf.mxu0
        %v712 = vadd.f32 0.0, %v711
        %713 = vmatmul.bf16.gmra.mxu0 %v635
        %v714 = vpop.f32.mrf.mxu0
        %v715 = vadd.f32 0.0, %v714
        %v716 = vpop.f32.mrf.mxu0
        %v717 = vadd.f32 0.0, %v716
        %718 = vmatmul.bf16.gmra.mxu0 %v638
        %v719 = vpop.f32.mrf.mxu0
        %v720 = vadd.f32 0.0, %v719
        %v721 = vpop.f32.mrf.mxu0
        %v722 = vadd.f32 0.0, %v721
        %723 = vmatmul.bf16.gmra.mxu0 %v641
        %v724 = vpop.f32.mrf.mxu0
        %v725 = vadd.f32 0.0, %v724
        %v726 = vpop.f32.mrf.mxu0
        %v727 = vadd.f32 0.0, %v726
        %728 = vmatmul.bf16.gmra.mxu0 %v644
        %v729 = vpop.f32.mrf.mxu0
        %v730 = vadd.f32 0.0, %v729
        %v731 = vpop.f32.mrf.mxu0
        %v732 = vadd.f32 0.0, %v731
        %733 = vmatmul.bf16.gmra.mxu0 %v647
        %v734 = vpop.f32.mrf.mxu0
        %v735 = vadd.f32 0.0, %v734
        %v736 = vpop.f32.mrf.mxu0
        %v737 = vadd.f32 0.0, %v736
        %738 = vmatmul.bf16.gmra.mxu0 %v650
        %v739 = vpop.f32.mrf.mxu0
        %v740 = vadd.f32 0.0, %v739
        %v741 = vpop.f32.mrf.mxu0
        %v742 = vadd.f32 0.0, %v741
        %743 = vmatmul.bf16.gmra.mxu0 %v653
        %v744 = vpop.f32.mrf.mxu0
        %v745 = vadd.f32 0.0, %v744
        %v746 = vpop.f32.mrf.mxu0
        %v747 = vadd.f32 0.0, %v746
        %748 = vmatmul.bf16.gmra.mxu0 %v656
        %v749 = vpop.f32.mrf.mxu0
        %v750 = vadd.f32 0.0, %v749
        %v751 = vpop.f32.mrf.mxu0
        %v752 = vadd.f32 0.0, %v751
        %753 = vdwg.mxu0
        %754 = vmatpush.bf16.msra.mxu0 0
        %755 = vmatpush.bf16.msra.mxu0 0
        %756 = vmatpush.bf16.msra.mxu0 0
        %757 = vmatpush.bf16.msra.mxu0 0
        %758 = vmatpush.bf16.msra.mxu0 0
        %759 = vmatpush.bf16.msra.mxu0 0
        %760 = vmatpush.bf16.msra.mxu0 0
        %761 = vmatpush.bf16.msra.mxu0 %v661
        %762 = vmatmul.bf16.gmra.mxu0 %v611
        %v763 = vpop.f32.mrf.mxu0
        %v764 = vadd.f32 0.0, %v763
        %v765 = vpop.f32.mrf.mxu0
        %v766 = vadd.f32 0.0, %v765
        %767 = vmatmul.bf16.gmra.mxu0 %v614
        %v768 = vpop.f32.mrf.mxu0
        %v769 = vadd.f32 0.0, %v768
        %v770 = vpop.f32.mrf.mxu0
        %v771 = vadd.f32 0.0, %v770
        %772 = vmatmul.bf16.gmra.mxu0 %v617
        %v773 = vpop.f32.mrf.mxu0
        %v774 = vadd.f32 0.0, %v773
        %v775 = vpop.f32.mrf.mxu0
        %v776 = vadd.f32 0.0, %v775
        %777 = vmatmul.bf16.gmra.mxu0 %v620
        %v778 = vpop.f32.mrf.mxu0
        %v779 = vadd.f32 0.0, %v778
        %v780 = vpop.f32.mrf.mxu0
        %v781 = vadd.f32 0.0, %v780
        %782 = vmatmul.bf16.gmra.mxu0 %v623
        %v783 = vpop.f32.mrf.mxu0
        %v784 = vadd.f32 0.0, %v783
        %v785 = vpop.f32.mrf.mxu0
        %v786 = vadd.f32 0.0, %v785
        %787 = vmatmul.bf16.gmra.mxu0 %v626
        %v788 = vpop.f32.mrf.mxu0
        %v789 = vadd.f32 0.0, %v788
        %v790 = vpop.f32.mrf.mxu0
        %v791 = vadd.f32 0.0, %v790
        %792 = vmatmul.bf16.gmra.mxu0 %v629
        %v793 = vpop.f32.mrf.mxu0
        %v794 = vadd.f32 0.0, %v793
        %v795 = vpop.f32.mrf.mxu0
        %v796 = vadd.f32 0.0, %v795
        %797 = vmatmul.bf16.gmra.mxu0 %v632
        %v798 = vpop.f32.mrf.mxu0
        %v799 = vadd.f32 0.0, %v798
        %v800 = vpop.f32.mrf.mxu0
        %v801 = vadd.f32 0.0, %v800
        %802 = vmatmul.bf16.gmra.mxu0 %v635
        %v803 = vpop.f32.mrf.mxu0
        %v804 = vadd.f32 0.0, %v803
        %v805 = vpop.f32.mrf.mxu0
        %v806 = vadd.f32 0.0, %v805
        %807 = vmatmul.bf16.gmra.mxu0 %v638
        %v808 = vpop.f32.mrf.mxu0
        %v809 = vadd.f32 0.0, %v808
        %v810 = vpop.f32.mrf.mxu0
        %v811 = vadd.f32 0.0, %v810
        %812 = vmatmul.bf16.gmra.mxu0 %v641
        %v813 = vpop.f32.mrf.mxu0
        %v814 = vadd.f32 0.0, %v813
        %v815 = vpop.f32.mrf.mxu0
        %v816 = vadd.f32 0.0, %v815
        %817 = vmatmul.bf16.gmra.mxu0 %v644
        %v818 = vpop.f32.mrf.mxu0
        %v819 = vadd.f32 0.0, %v818
        %v820 = vpop.f32.mrf.mxu0
        %v821 = vadd.f32 0.0, %v820
        %822 = vmatmul.bf16.gmra.mxu0 %v647
        %v823 = vpop.f32.mrf.mxu0
        %v824 = vadd.f32 0.0, %v823
        %v825 = vpop.f32.mrf.mxu0
        %v826 = vadd.f32 0.0, %v825
        %827 = vmatmul.bf16.gmra.mxu0 %v650
        %v828 = vpop.f32.mrf.mxu0
        %v829 = vadd.f32 0.0, %v828
        %v830 = vpop.f32.mrf.mxu0
        %v831 = vadd.f32 0.0, %v830
        %832 = vmatmul.bf16.gmra.mxu0 %v653
        %v833 = vpop.f32.mrf.mxu0
        %v834 = vadd.f32 0.0, %v833
        %v835 = vpop.f32.mrf.mxu0
        %v836 = vadd.f32 0.0, %v835
        %837 = vmatmul.bf16.gmra.mxu0 %v656
        %v838 = vpop.f32.mrf.mxu0
        %v839 = vadd.f32 0.0, %v838
        %v840 = vpop.f32.mrf.mxu0
        %v841 = vadd.f32 0.0, %v840
        %842 = vdwg.mxu0
        %843 = vmatpush.bf16.msra.mxu0 0
        %844 = vmatpush.bf16.msra.mxu0 0
        %845 = vmatpush.bf16.msra.mxu0 0
        %846 = vmatpush.bf16.msra.mxu0 0
        %847 = vmatpush.bf16.msra.mxu0 0
        %848 = vmatpush.bf16.msra.mxu0 0
        %849 = vmatpush.bf16.msra.mxu0 0
        %850 = vmatpush.bf16.msra.mxu0 %v663
        %851 = vmatmul.bf16.gmra.mxu0 %v611
        %v852 = vpop.f32.mrf.mxu0
        %v853 = vadd.f32 0.0, %v852
        %v854 = vpop.f32.mrf.mxu0
        %v855 = vadd.f32 0.0, %v854
        %856 = vmatmul.bf16.gmra.mxu0 %v614
        %v857 = vpop.f32.mrf.mxu0
        %v858 = vadd.f32 0.0, %v857
        %v859 = vpop.f32.mrf.mxu0
        %v860 = vadd.f32 0.0, %v859
        %861 = vmatmul.bf16.gmra.mxu0 %v617
        %v862 = vpop.f32.mrf.mxu0
        %v863 = vadd.f32 0.0, %v862
        %v864 = vpop.f32.mrf.mxu0
        %v865 = vadd.f32 0.0, %v864
        %866 = vmatmul.bf16.gmra.mxu0 %v620
        %v867 = vpop.f32.mrf.mxu0
        %v868 = vadd.f32 0.0, %v867
        %v869 = vpop.f32.mrf.mxu0
        %v870 = vadd.f32 0.0, %v869
        %871 = vmatmul.bf16.gmra.mxu0 %v623
        %v872 = vpop.f32.mrf.mxu0
        %v873 = vadd.f32 0.0, %v872
        %v874 = vpop.f32.mrf.mxu0
        %v875 = vadd.f32 0.0, %v874
        %876 = vmatmul.bf16.gmra.mxu0 %v626
        %v877 = vpop.f32.mrf.mxu0
        %v878 = vadd.f32 0.0, %v877
        %v879 = vpop.f32.mrf.mxu0
        %v880 = vadd.f32 0.0, %v879
        %881 = vmatmul.bf16.gmra.mxu0 %v629
        %v882 = vpop.f32.mrf.mxu0
        %v883 = vadd.f32 0.0, %v882
        %v884 = vpop.f32.mrf.mxu0
        %v885 = vadd.f32 0.0, %v884
        %886 = vmatmul.bf16.gmra.mxu0 %v632
        %v887 = vpop.f32.mrf.mxu0
        %v888 = vadd.f32 0.0, %v887
        %v889 = vpop.f32.mrf.mxu0
        %v890 = vadd.f32 0.0, %v889
        %891 = vmatmul.bf16.gmra.mxu0 %v635
        %v892 = vpop.f32.mrf.mxu0
        %v893 = vadd.f32 0.0, %v892
        %v894 = vpop.f32.mrf.mxu0
        %v895 = vadd.f32 0.0, %v894
        %896 = vmatmul.bf16.gmra.mxu0 %v638
        %v897 = vpop.f32.mrf.mxu0
        %v898 = vadd.f32 0.0, %v897
        %v899 = vpop.f32.mrf.mxu0
        %v900 = vadd.f32 0.0, %v899
        %901 = vmatmul.bf16.gmra.mxu0 %v641
        %v902 = vpop.f32.mrf.mxu0
        %v903 = vadd.f32 0.0, %v902
        %v904 = vpop.f32.mrf.mxu0
        %v905 = vadd.f32 0.0, %v904
        %906 = vmatmul.bf16.gmra.mxu0 %v644
        %v907 = vpop.f32.mrf.mxu0
        %v908 = vadd.f32 0.0, %v907
        %v909 = vpop.f32.mrf.mxu0
        %v910 = vadd.f32 0.0, %v909
        %911 = vmatmul.bf16.gmra.mxu0 %v647
        %v912 = vpop.f32.mrf.mxu0
        %v913 = vadd.f32 0.0, %v912
        %v914 = vpop.f32.mrf.mxu0
        %v915 = vadd.f32 0.0, %v914
        %916 = vmatmul.bf16.gmra.mxu0 %v650
        %v917 = vpop.f32.mrf.mxu0
        %v918 = vadd.f32 0.0, %v917
        %v919 = vpop.f32.mrf.mxu0
        %v920 = vadd.f32 0.0, %v919
        %921 = vmatmul.bf16.gmra.mxu0 %v653
        %v922 = vpop.f32.mrf.mxu0
        %v923 = vadd.f32 0.0, %v922
        %v924 = vpop.f32.mrf.mxu0
        %v925 = vadd.f32 0.0, %v924
        %926 = vmatmul.bf16.gmra.mxu0 %v656
        %v927 = vpop.f32.mrf.mxu0
        %v928 = vadd.f32 0.0, %v927
        %v929 = vpop.f32.mrf.mxu0
        %v930 = vadd.f32 0.0, %v929
        %931 = vdwg.mxu0
        %v932 = vadd.f32 %v395, %v675
        %v933 = vadd.f32 %v396, %v764
        %v934 = vadd.f32 %v397, %v853
        %v935 = vadd.f32 %v398, %v677
        %v936 = vadd.f32 %v399, %v766
        %v937 = vadd.f32 %v400, %v855
        %v938 = vadd.f32 %v401, %v680
        %v939 = vadd.f32 %v402, %v769
        %v940 = vadd.f32 %v403, %v858
        %v941 = vadd.f32 %v404, %v682
        %v942 = vadd.f32 %v405, %v771
        %v943 = vadd.f32 %v406, %v860
        %v944 = vadd.f32 %v407, %v685
        %v945 = vadd.f32 %v408, %v774
        %v946 = vadd.f32 %v409, %v863
        %v947 = vadd.f32 %v410, %v687
        %v948 = vadd.f32 %v411, %v776
        %v949 = vadd.f32 %v412, %v865
        %v950 = vadd.f32 %v413, %v690
        %v951 = vadd.f32 %v414, %v779
        %v952 = vadd.f32 %v415, %v868
        %v953 = vadd.f32 %v416, %v692
        %v954 = vadd.f32 %v417, %v781
        %v955 = vadd.f32 %v418, %v870
        %v956 = vadd.f32 %v419, %v695
        %v957 = vadd.f32 %v420, %v784
        %v958 = vadd.f32 %v421, %v873
        %v959 = vadd.f32 %v422, %v697
        %v960 = vadd.f32 %v423, %v786
        %v961 = vadd.f32 %v424, %v875
        %v962 = vadd.f32 %v425, %v700
        %v963 = vadd.f32 %v426, %v789
        %v964 = vadd.f32 %v427, %v878
        %v965 = vadd.f32 %v428, %v702
        %v966 = vadd.f32 %v429, %v791
        %v967 = vadd.f32 %v430, %v880
        %v968 = vadd.f32 %v431, %v705
        %v969 = vadd.f32 %v432, %v794
        %v970 = vadd.f32 %v433, %v883
        %v971 = vadd.f32 %v434, %v707
        %v972 = vadd.f32 %v435, %v796
        %v973 = vadd.f32 %v436, %v885
        %v974 = vadd.f32 %v437, %v710
        %v975 = vadd.f32 %v438, %v799
        %v976 = vadd.f32 %v439, %v888
        %v977 = vadd.f32 %v440, %v712
        %v978 = vadd.f32 %v441, %v801
        %v979 = vadd.f32 %v442, %v890
        %v980 = vadd.f32 %v443, %v715
        %v981 = vadd.f32 %v444, %v804
        %v982 = vadd.f32 %v445, %v893
        %v983 = vadd.f32 %v446, %v717
        %v984 = vadd.f32 %v447, %v806
        %v985 = vadd.f32 %v448, %v895
        %v986 = vadd.f32 %v449, %v720
        %v987 = vadd.f32 %v450, %v809
        %v988 = vadd.f32 %v451, %v898
        %v989 = vadd.f32 %v452, %v722
        %v990 = vadd.f32 %v453, %v811
        %v991 = vadd.f32 %v454, %v900
        %v992 = vadd.f32 %v455, %v725
        %v993 = vadd.f32 %v456, %v814
        %v994 = vadd.f32 %v457, %v903
        %v995 = vadd.f32 %v458, %v727
        %v996 = vadd.f32 %v459, %v816
        %v997 = vadd.f32 %v460, %v905
        %v998 = vadd.f32 %v461, %v730
        %v999 = vadd.f32 %v462, %v819
        %v1000 = vadd.f32 %v463, %v908
        %v1001 = vadd.f32 %v464, %v732
        %v1002 = vadd.f32 %v465, %v821
        %v1003 = vadd.f32 %v466, %v910
        %v1004 = vadd.f32 %v467, %v735
        %v1005 = vadd.f32 %v468, %v824
        %v1006 = vadd.f32 %v469, %v913
        %v1007 = vadd.f32 %v470, %v737
        %v1008 = vadd.f32 %v471, %v826
        %v1009 = vadd.f32 %v472, %v915
        %v1010 = vadd.f32 %v473, %v740
        %v1011 = vadd.f32 %v474, %v829
        %v1012 = vadd.f32 %v475, %v918
        %v1013 = vadd.f32 %v476, %v742
        %v1014 = vadd.f32 %v477, %v831
        %v1015 = vadd.f32 %v478, %v920
        %v1016 = vadd.f32 %v479, %v745
        %v1017 = vadd.f32 %v480, %v834
        %v1018 = vadd.f32 %v481, %v923
        %v1019 = vadd.f32 %v482, %v747
        %v1020 = vadd.f32 %v483, %v836
        %v1021 = vadd.f32 %v484, %v925
        %v1022 = vadd.f32 %v485, %v750
        %v1023 = vadd.f32 %v486, %v839
        %v1024 = vadd.f32 %v487, %v928
        %v1025 = vadd.f32 %v488, %v752
        %v1026 = vadd.f32 %v489, %v841
        %v1027 = vadd.f32 %v490, %v930
        %v1028 = vld [vmem:[%s288] sm:$0x3f]
        %s1029 = scalar_lea.vmem %s292, 128
        %v1030 = vld [vmem:[%s1029] sm:$0xf]
        %v1031 = vld [vmem:[%s1029 + $0x4] sm:$0xf]
        %v1032 = vld [vmem:[%s1029 + $0x8] sm:$0xf]
        %v1033 = vld [vmem:[%s1029 + $0xc] sm:$0xf]
        %v1034 = vld [vmem:[%s1029 + $0x10] sm:$0xf]
        %v1035 = vld [vmem:[%s1029 + $0x14] sm:$0xf]
        %v1036 = vld [vmem:[%s1029 + $0x18] sm:$0xf]
        %v1037 = vld [vmem:[%s1029 + $0x1c] sm:$0xf]
        %v1038 = vld [vmem:[%s1029 + $0x20] sm:$0xf]
        %v1039 = vld [vmem:[%s1029 + $0x24] sm:$0xf]
        %v1040 = vld [vmem:[%s1029 + $0x28] sm:$0xf]
        %v1041 = vld [vmem:[%s1029 + $0x2c] sm:$0xf]
        %v1042 = vld [vmem:[%s1029 + $0x30] sm:$0xf]
        %v1043 = vld [vmem:[%s1029 + $0x34] sm:$0xf]
        %v1044 = vld [vmem:[%s1029 + $0x38] sm:$0xf]
        %v1045 = vld [vmem:[%s1029 + $0x3c] sm:$0xf]
        %v1046 = vld [vmem:[%s1029 + $0x40] sm:$0xf]
        %v1047 = vld [vmem:[%s1029 + $0x44] sm:$0xf]
        %v1048 = vld [vmem:[%s1029 + $0x48] sm:$0xf]
        %v1049 = vld [vmem:[%s1029 + $0x4c] sm:$0xf]
        %v1050 = vld [vmem:[%s1029 + $0x50] sm:$0xf]
        %v1051 = vld [vmem:[%s1029 + $0x54] sm:$0xf]
        %v1052 = vld [vmem:[%s1029 + $0x58] sm:$0xf]
        %v1053 = vld [vmem:[%s1029 + $0x5c] sm:$0xf]
        %v1054 = vld [vmem:[%s1029 + $0x60] sm:$0xf]
        %v1055 = vld [vmem:[%s1029 + $0x64] sm:$0xf]
        %v1056 = vld [vmem:[%s1029 + $0x68] sm:$0xf]
        %v1057 = vld [vmem:[%s1029 + $0x6c] sm:$0xf]
        %v1058 = vld [vmem:[%s1029 + $0x70] sm:$0xf]
        %v1059 = vld [vmem:[%s1029 + $0x74] sm:$0xf]
        %v1060 = vld [vmem:[%s1029 + $0x78] sm:$0xf]
        %v1061 = vld [vmem:[%s1029 + $0x7c] sm:$0xf]
        %v1094 = vunpack.c.l.b16 %v1030
        %v1095 = vunpack.c.l.b16 %v1031
        %v1096 = vunpack.c.l.b16 %v1032
        %v1097 = vunpack.c.l.b16 %v1033
        %v1098 = vunpack.c.l.b16 %v1034
        %v1099 = vunpack.c.l.b16 %v1035
        %v1100 = vunpack.c.l.b16 %v1036
        %v1101 = vunpack.c.l.b16 %v1037
        %v1102 = vunpack.c.l.b16 %v1038
        %v1103 = vunpack.c.l.b16 %v1039
        %v1104 = vunpack.c.l.b16 %v1040
        %v1105 = vunpack.c.l.b16 %v1041
        %v1106 = vunpack.c.l.b16 %v1042
        %v1107 = vunpack.c.l.b16 %v1043
        %v1108 = vunpack.c.l.b16 %v1044
        %v1109 = vunpack.c.l.b16 %v1045
        %v1110 = vunpack.c.l.b16 %v1046
        %v1111 = vunpack.c.l.b16 %v1047
        %v1112 = vunpack.c.l.b16 %v1048
        %v1113 = vunpack.c.l.b16 %v1049
        %v1114 = vunpack.c.l.b16 %v1050
        %v1115 = vunpack.c.l.b16 %v1051
        %v1116 = vunpack.c.l.b16 %v1052
        %v1117 = vunpack.c.l.b16 %v1053
        %v1118 = vunpack.c.l.b16 %v1054
        %v1119 = vunpack.c.l.b16 %v1055
        %v1120 = vunpack.c.l.b16 %v1056
        %v1121 = vunpack.c.l.b16 %v1057
        %v1122 = vunpack.c.l.b16 %v1058
        %v1123 = vunpack.c.l.b16 %v1059
        %v1124 = vunpack.c.l.b16 %v1060
        %v1125 = vunpack.c.l.b16 %v1061
        %v1126 = vpack.c.b16 %v1095, %v1094
        %v1127 = vpack.c.b16 %v1097, %v1096
        %v1128 = vpack.c.b16 %v1099, %v1098
        %v1129 = vpack.c.b16 %v1101, %v1100
        %v1130 = vpack.c.b16 %v1103, %v1102
        %v1131 = vpack.c.b16 %v1105, %v1104
        %v1132 = vpack.c.b16 %v1107, %v1106
        %v1133 = vpack.c.b16 %v1109, %v1108
        %v1134 = vpack.c.b16 %v1111, %v1110
        %v1135 = vpack.c.b16 %v1113, %v1112
        %v1136 = vpack.c.b16 %v1115, %v1114
        %v1137 = vpack.c.b16 %v1117, %v1116
        %v1138 = vpack.c.b16 %v1119, %v1118
        %v1139 = vpack.c.b16 %v1121, %v1120
        %v1140 = vpack.c.b16 %v1123, %v1122
        %v1141 = vpack.c.b16 %v1125, %v1124
        %1143 = vst [vmem:[#allocation1] ss:$4 sm:$0xff] %v1028
        %v1144 = vld.sshfl [vmem:[#allocation1] sm:$0xff pattern:$0x73625140]
        %v1146 = vld.sshfl [vmem:[#allocation1 + $0x8] sm:$0xff pattern:$0x73625140]
        %v1148 = vld.sshfl [vmem:[#allocation1 + $0x10] sm:$0xff pattern:$0x73625140]
        %1150 = vrot.lane.b32.xlu0 %v1144, 127
        %v1151 = vpop.permute.xlu0 %1150
        %1152 = vrot.lane.b32.xlu0 %v1146, 127
        %v1153 = vpop.permute.xlu0 %1152
        %1154 = vrot.lane.b32.xlu0 %v1148, 127
        %v1155 = vpop.permute.xlu0 %1154
        %vm1156 = vcmask 1039360
        %v1157 = vsel %vm1156, %v1151, %v1153
        %v1158 = vsel %vm1156, %v1153, %v1155
        %v1160 = vsel %vm609, %v1126, 0
        %v1163 = vsel %vm609, %v1127, 0
        %v1166 = vsel %vm609, %v1128, 0
        %v1169 = vsel %vm609, %v1129, 0
        %v1172 = vsel %vm609, %v1130, 0
        %v1175 = vsel %vm609, %v1131, 0
        %v1178 = vsel %vm609, %v1132, 0
        %v1181 = vsel %vm609, %v1133, 0
        %v1184 = vsel %vm609, %v1134, 0
        %v1187 = vsel %vm609, %v1135, 0
        %v1190 = vsel %vm609, %v1136, 0
        %v1193 = vsel %vm609, %v1137, 0
        %v1196 = vsel %vm609, %v1138, 0
        %v1199 = vsel %vm609, %v1139, 0
        %v1202 = vsel %vm609, %v1140, 0
        %v1205 = vsel %vm609, %v1141, 0
        %v1208 = vsel %vm658, %v1157, 0
        %v1211 = vsel %vm658, %v1158, 0
        %v1214 = vsel %vm658, %v1155, 0
        %1216 = vmatpush.bf16.msra.mxu0 0
        %1217 = vmatpush.bf16.msra.mxu0 0
        %1218 = vmatpush.bf16.msra.mxu0 0
        %1219 = vmatpush.bf16.msra.mxu0 0
        %1220 = vmatpush.bf16.msra.mxu0 0
        %1221 = vmatpush.bf16.msra.mxu0 0
        %1222 = vmatpush.bf16.msra.mxu0 0
        %1223 = vmatpush.bf16.msra.mxu0 %v1208
        %1224 = vmatmul.bf16.gmra.mxu0 %v1160
        %v1225 = vpop.f32.mrf.mxu0
        %v1226 = vadd.f32 0.0, %v1225
        %v1227 = vpop.f32.mrf.mxu0
        %v1228 = vadd.f32 0.0, %v1227
        %1229 = vmatmul.bf16.gmra.mxu0 %v1163
        %v1230 = vpop.f32.mrf.mxu0
        %v1231 = vadd.f32 0.0, %v1230
        %v1232 = vpop.f32.mrf.mxu0
        %v1233 = vadd.f32 0.0, %v1232
        %1234 = vmatmul.bf16.gmra.mxu0 %v1166
        %v1235 = vpop.f32.mrf.mxu0
        %v1236 = vadd.f32 0.0, %v1235
        %v1237 = vpop.f32.mrf.mxu0
        %v1238 = vadd.f32 0.0, %v1237
        %1239 = vmatmul.bf16.gmra.mxu0 %v1169
        %v1240 = vpop.f32.mrf.mxu0
        %v1241 = vadd.f32 0.0, %v1240
        %v1242 = vpop.f32.mrf.mxu0
        %v1243 = vadd.f32 0.0, %v1242
        %1244 = vmatmul.bf16.gmra.mxu0 %v1172
        %v1245 = vpop.f32.mrf.mxu0
        %v1246 = vadd.f32 0.0, %v1245
        %v1247 = vpop.f32.mrf.mxu0
        %v1248 = vadd.f32 0.0, %v1247
        %1249 = vmatmul.bf16.gmra.mxu0 %v1175
        %v1250 = vpop.f32.mrf.mxu0
        %v1251 = vadd.f32 0.0, %v1250
        %v1252 = vpop.f32.mrf.mxu0
        %v1253 = vadd.f32 0.0, %v1252
        %1254 = vmatmul.bf16.gmra.mxu0 %v1178
        %v1255 = vpop.f32.mrf.mxu0
        %v1256 = vadd.f32 0.0, %v1255
        %v1257 = vpop.f32.mrf.mxu0
        %v1258 = vadd.f32 0.0, %v1257
        %1259 = vmatmul.bf16.gmra.mxu0 %v1181
        %v1260 = vpop.f32.mrf.mxu0
        %v1261 = vadd.f32 0.0, %v1260
        %v1262 = vpop.f32.mrf.mxu0
        %v1263 = vadd.f32 0.0, %v1262
        %1264 = vmatmul.bf16.gmra.mxu0 %v1184
        %v1265 = vpop.f32.mrf.mxu0
        %v1266 = vadd.f32 0.0, %v1265
        %v1267 = vpop.f32.mrf.mxu0
        %v1268 = vadd.f32 0.0, %v1267
        %1269 = vmatmul.bf16.gmra.mxu0 %v1187
        %v1270 = vpop.f32.mrf.mxu0
        %v1271 = vadd.f32 0.0, %v1270
        %v1272 = vpop.f32.mrf.mxu0
        %v1273 = vadd.f32 0.0, %v1272
        %1274 = vmatmul.bf16.gmra.mxu0 %v1190
        %v1275 = vpop.f32.mrf.mxu0
        %v1276 = vadd.f32 0.0, %v1275
        %v1277 = vpop.f32.mrf.mxu0
        %v1278 = vadd.f32 0.0, %v1277
        %1279 = vmatmul.bf16.gmra.mxu0 %v1193
        %v1280 = vpop.f32.mrf.mxu0
        %v1281 = vadd.f32 0.0, %v1280
        %v1282 = vpop.f32.mrf.mxu0
        %v1283 = vadd.f32 0.0, %v1282
        %1284 = vmatmul.bf16.gmra.mxu0 %v1196
        %v1285 = vpop.f32.mrf.mxu0
        %v1286 = vadd.f32 0.0, %v1285
        %v1287 = vpop.f32.mrf.mxu0
        %v1288 = vadd.f32 0.0, %v1287
        %1289 = vmatmul.bf16.gmra.mxu0 %v1199
        %v1290 = vpop.f32.mrf.mxu0
        %v1291 = vadd.f32 0.0, %v1290
        %v1292 = vpop.f32.mrf.mxu0
        %v1293 = vadd.f32 0.0, %v1292
        %1294 = vmatmul.bf16.gmra.mxu0 %v1202
        %v1295 = vpop.f32.mrf.mxu0
        %v1296 = vadd.f32 0.0, %v1295
        %v1297 = vpop.f32.mrf.mxu0
        %v1298 = vadd.f32 0.0, %v1297
        %1299 = vmatmul.bf16.gmra.mxu0 %v1205
        %v1300 = vpop.f32.mrf.mxu0
        %v1301 = vadd.f32 0.0, %v1300
        %v1302 = vpop.f32.mrf.mxu0
        %v1303 = vadd.f32 0.0, %v1302
        %1304 = vdwg.mxu0
        %1305 = vmatpush.bf16.msra.mxu0 0
        %1306 = vmatpush.bf16.msra.mxu0 0
        %1307 = vmatpush.bf16.msra.mxu0 0
        %1308 = vmatpush.bf16.msra.mxu0 0
        %1309 = vmatpush.bf16.msra.mxu0 0
        %1310 = vmatpush.bf16.msra.mxu0 0
        %1311 = vmatpush.bf16.msra.mxu0 0
        %1312 = vmatpush.bf16.msra.mxu0 %v1211
        %1313 = vmatmul.bf16.gmra.mxu0 %v1160
        %v1314 = vpop.f32.mrf.mxu0
        %v1315 = vadd.f32 0.0, %v1314
        %v1316 = vpop.f32.mrf.mxu0
        %v1317 = vadd.f32 0.0, %v1316
        %1318 = vmatmul.bf16.gmra.mxu0 %v1163
        %v1319 = vpop.f32.mrf.mxu0
        %v1320 = vadd.f32 0.0, %v1319
        %v1321 = vpop.f32.mrf.mxu0
        %v1322 = vadd.f32 0.0, %v1321
        %1323 = vmatmul.bf16.gmra.mxu0 %v1166
        %v1324 = vpop.f32.mrf.mxu0
        %v1325 = vadd.f32 0.0, %v1324
        %v1326 = vpop.f32.mrf.mxu0
        %v1327 = vadd.f32 0.0, %v1326
        %1328 = vmatmul.bf16.gmra.mxu0 %v1169
        %v1329 = vpop.f32.mrf.mxu0
        %v1330 = vadd.f32 0.0, %v1329
        %v1331 = vpop.f32.mrf.mxu0
        %v1332 = vadd.f32 0.0, %v1331
        %1333 = vmatmul.bf16.gmra.mxu0 %v1172
        %v1334 = vpop.f32.mrf.mxu0
        %v1335 = vadd.f32 0.0, %v1334
        %v1336 = vpop.f32.mrf.mxu0
        %v1337 = vadd.f32 0.0, %v1336
        %1338 = vmatmul.bf16.gmra.mxu0 %v1175
        %v1339 = vpop.f32.mrf.mxu0
        %v1340 = vadd.f32 0.0, %v1339
        %v1341 = vpop.f32.mrf.mxu0
        %v1342 = vadd.f32 0.0, %v1341
        %1343 = vmatmul.bf16.gmra.mxu0 %v1178
        %v1344 = vpop.f32.mrf.mxu0
        %v1345 = vadd.f32 0.0, %v1344
        %v1346 = vpop.f32.mrf.mxu0
        %v1347 = vadd.f32 0.0, %v1346
        %1348 = vmatmul.bf16.gmra.mxu0 %v1181
        %v1349 = vpop.f32.mrf.mxu0
        %v1350 = vadd.f32 0.0, %v1349
        %v1351 = vpop.f32.mrf.mxu0
        %v1352 = vadd.f32 0.0, %v1351
        %1353 = vmatmul.bf16.gmra.mxu0 %v1184
        %v1354 = vpop.f32.mrf.mxu0
        %v1355 = vadd.f32 0.0, %v1354
        %v1356 = vpop.f32.mrf.mxu0
        %v1357 = vadd.f32 0.0, %v1356
        %1358 = vmatmul.bf16.gmra.mxu0 %v1187
        %v1359 = vpop.f32.mrf.mxu0
        %v1360 = vadd.f32 0.0, %v1359
        %v1361 = vpop.f32.mrf.mxu0
        %v1362 = vadd.f32 0.0, %v1361
        %1363 = vmatmul.bf16.gmra.mxu0 %v1190
        %v1364 = vpop.f32.mrf.mxu0
        %v1365 = vadd.f32 0.0, %v1364
        %v1366 = vpop.f32.mrf.mxu0
        %v1367 = vadd.f32 0.0, %v1366
        %1368 = vmatmul.bf16.gmra.mxu0 %v1193
        %v1369 = vpop.f32.mrf.mxu0
        %v1370 = vadd.f32 0.0, %v1369
        %v1371 = vpop.f32.mrf.mxu0
        %v1372 = vadd.f32 0.0, %v1371
        %1373 = vmatmul.bf16.gmra.mxu0 %v1196
        %v1374 = vpop.f32.mrf.mxu0
        %v1375 = vadd.f32 0.0, %v1374
        %v1376 = vpop.f32.mrf.mxu0
        %v1377 = vadd.f32 0.0, %v1376
        %1378 = vmatmul.bf16.gmra.mxu0 %v1199
        %v1379 = vpop.f32.mrf.mxu0
        %v1380 = vadd.f32 0.0, %v1379
        %v1381 = vpop.f32.mrf.mxu0
        %v1382 = vadd.f32 0.0, %v1381
        %1383 = vmatmul.bf16.gmra.mxu0 %v1202
        %v1384 = vpop.f32.mrf.mxu0
        %v1385 = vadd.f32 0.0, %v1384
        %v1386 = vpop.f32.mrf.mxu0
        %v1387 = vadd.f32 0.0, %v1386
        %1388 = vmatmul.bf16.gmra.mxu0 %v1205
        %v1389 = vpop.f32.mrf.mxu0
        %v1390 = vadd.f32 0.0, %v1389
        %v1391 = vpop.f32.mrf.mxu0
        %v1392 = vadd.f32 0.0, %v1391
        %1393 = vdwg.mxu0
        %1394 = vmatpush.bf16.msra.mxu0 0
        %1395 = vmatpush.bf16.msra.mxu0 0
        %1396 = vmatpush.bf16.msra.mxu0 0
        %1397 = vmatpush.bf16.msra.mxu0 0
        %1398 = vmatpush.bf16.msra.mxu0 0
        %1399 = vmatpush.bf16.msra.mxu0 0
        %1400 = vmatpush.bf16.msra.mxu0 0
        %1401 = vmatpush.bf16.msra.mxu0 %v1214
        %1402 = vmatmul.bf16.gmra.mxu0 %v1160
        %v1403 = vpop.f32.mrf.mxu0
        %v1404 = vadd.f32 0.0, %v1403
        %v1405 = vpop.f32.mrf.mxu0
        %v1406 = vadd.f32 0.0, %v1405
        %1407 = vmatmul.bf16.gmra.mxu0 %v1163
        %v1408 = vpop.f32.mrf.mxu0
        %v1409 = vadd.f32 0.0, %v1408
        %v1410 = vpop.f32.mrf.mxu0
        %v1411 = vadd.f32 0.0, %v1410
        %1412 = vmatmul.bf16.gmra.mxu0 %v1166
        %v1413 = vpop.f32.mrf.mxu0
        %v1414 = vadd.f32 0.0, %v1413
        %v1415 = vpop.f32.mrf.mxu0
        %v1416 = vadd.f32 0.0, %v1415
        %1417 = vmatmul.bf16.gmra.mxu0 %v1169
        %v1418 = vpop.f32.mrf.mxu0
        %v1419 = vadd.f32 0.0, %v1418
        %v1420 = vpop.f32.mrf.mxu0
        %v1421 = vadd.f32 0.0, %v1420
        %1422 = vmatmul.bf16.gmra.mxu0 %v1172
        %v1423 = vpop.f32.mrf.mxu0
        %v1424 = vadd.f32 0.0, %v1423
        %v1425 = vpop.f32.mrf.mxu0
        %v1426 = vadd.f32 0.0, %v1425
        %1427 = vmatmul.bf16.gmra.mxu0 %v1175
        %v1428 = vpop.f32.mrf.mxu0
        %v1429 = vadd.f32 0.0, %v1428
        %v1430 = vpop.f32.mrf.mxu0
        %v1431 = vadd.f32 0.0, %v1430
        %1432 = vmatmul.bf16.gmra.mxu0 %v1178
        %v1433 = vpop.f32.mrf.mxu0
        %v1434 = vadd.f32 0.0, %v1433
        %v1435 = vpop.f32.mrf.mxu0
        %v1436 = vadd.f32 0.0, %v1435
        %1437 = vmatmul.bf16.gmra.mxu0 %v1181
        %v1438 = vpop.f32.mrf.mxu0
        %v1439 = vadd.f32 0.0, %v1438
        %v1440 = vpop.f32.mrf.mxu0
        %v1441 = vadd.f32 0.0, %v1440
        %1442 = vmatmul.bf16.gmra.mxu0 %v1184
        %v1443 = vpop.f32.mrf.mxu0
        %v1444 = vadd.f32 0.0, %v1443
        %v1445 = vpop.f32.mrf.mxu0
        %v1446 = vadd.f32 0.0, %v1445
        %1447 = vmatmul.bf16.gmra.mxu0 %v1187
        %v1448 = vpop.f32.mrf.mxu0
        %v1449 = vadd.f32 0.0, %v1448
        %v1450 = vpop.f32.mrf.mxu0
        %v1451 = vadd.f32 0.0, %v1450
        %1452 = vmatmul.bf16.gmra.mxu0 %v1190
        %v1453 = vpop.f32.mrf.mxu0
        %v1454 = vadd.f32 0.0, %v1453
        %v1455 = vpop.f32.mrf.mxu0
        %v1456 = vadd.f32 0.0, %v1455
        %1457 = vmatmul.bf16.gmra.mxu0 %v1193
        %v1458 = vpop.f32.mrf.mxu0
        %v1459 = vadd.f32 0.0, %v1458
        %v1460 = vpop.f32.mrf.mxu0
        %v1461 = vadd.f32 0.0, %v1460
        %1462 = vmatmul.bf16.gmra.mxu0 %v1196
        %v1463 = vpop.f32.mrf.mxu0
        %v1464 = vadd.f32 0.0, %v1463
        %v1465 = vpop.f32.mrf.mxu0
        %v1466 = vadd.f32 0.0, %v1465
        %1467 = vmatmul.bf16.gmra.mxu0 %v1199
        %v1468 = vpop.f32.mrf.mxu0
        %v1469 = vadd.f32 0.0, %v1468
        %v1470 = vpop.f32.mrf.mxu0
        %v1471 = vadd.f32 0.0, %v1470
        %1472 = vmatmul.bf16.gmra.mxu0 %v1202
        %v1473 = vpop.f32.mrf.mxu0
        %v1474 = vadd.f32 0.0, %v1473
        %v1475 = vpop.f32.mrf.mxu0
        %v1476 = vadd.f32 0.0, %v1475
        %1477 = vmatmul.bf16.gmra.mxu0 %v1205
        %v1478 = vpop.f32.mrf.mxu0
        %v1479 = vadd.f32 0.0, %v1478
        %v1480 = vpop.f32.mrf.mxu0
        %v1481 = vadd.f32 0.0, %v1480
        %1482 = vdwg.mxu0
        %v1483 = vadd.f32 %v932, %v1226
        %v1484 = vadd.f32 %v933, %v1315
        %v1485 = vadd.f32 %v934, %v1404
        %v1486 = vadd.f32 %v935, %v1228
        %v1487 = vadd.f32 %v936, %v1317
        %v1488 = vadd.f32 %v937, %v1406
        %v1489 = vadd.f32 %v938, %v1231
        %v1490 = vadd.f32 %v939, %v1320
        %v1491 = vadd.f32 %v940, %v1409
        %v1492 = vadd.f32 %v941, %v1233
        %v1493 = vadd.f32 %v942, %v1322
        %v1494 = vadd.f32 %v943, %v1411
        %v1495 = vadd.f32 %v944, %v1236
        %v1496 = vadd.f32 %v945, %v1325
        %v1497 = vadd.f32 %v946, %v1414
        %v1498 = vadd.f32 %v947, %v1238
        %v1499 = vadd.f32 %v948, %v1327
        %v1500 = vadd.f32 %v949, %v1416
        %v1501 = vadd.f32 %v950, %v1241
        %v1502 = vadd.f32 %v951, %v1330
        %v1503 = vadd.f32 %v952, %v1419
        %v1504 = vadd.f32 %v953, %v1243
        %v1505 = vadd.f32 %v954, %v1332
        %v1506 = vadd.f32 %v955, %v1421
        %v1507 = vadd.f32 %v956, %v1246
        %v1508 = vadd.f32 %v957, %v1335
        %v1509 = vadd.f32 %v958, %v1424
        %v1510 = vadd.f32 %v959, %v1248
        %v1511 = vadd.f32 %v960, %v1337
        %v1512 = vadd.f32 %v961, %v1426
        %v1513 = vadd.f32 %v962, %v1251
        %v1514 = vadd.f32 %v963, %v1340
        %v1515 = vadd.f32 %v964, %v1429
        %v1516 = vadd.f32 %v965, %v1253
        %v1517 = vadd.f32 %v966, %v1342
        %v1518 = vadd.f32 %v967, %v1431
        %v1519 = vadd.f32 %v968, %v1256
        %v1520 = vadd.f32 %v969, %v1345
        %v1521 = vadd.f32 %v970, %v1434
        %v1522 = vadd.f32 %v971, %v1258
        %v1523 = vadd.f32 %v972, %v1347
        %v1524 = vadd.f32 %v973, %v1436
        %v1525 = vadd.f32 %v974, %v1261
        %v1526 = vadd.f32 %v975, %v1350
        %v1527 = vadd.f32 %v976, %v1439
        %v1528 = vadd.f32 %v977, %v1263
        %v1529 = vadd.f32 %v978, %v1352
        %v1530 = vadd.f32 %v979, %v1441
        %v1531 = vadd.f32 %v980, %v1266
        %v1532 = vadd.f32 %v981, %v1355
        %v1533 = vadd.f32 %v982, %v1444
        %v1534 = vadd.f32 %v983, %v1268
        %v1535 = vadd.f32 %v984, %v1357
        %v1536 = vadd.f32 %v985, %v1446
        %v1537 = vadd.f32 %v986, %v1271
        %v1538 = vadd.f32 %v987, %v1360
        %v1539 = vadd.f32 %v988, %v1449
        %v1540 = vadd.f32 %v989, %v1273
        %v1541 = vadd.f32 %v990, %v1362
        %v1542 = vadd.f32 %v991, %v1451
        %v1543 = vadd.f32 %v992, %v1276
        %v1544 = vadd.f32 %v993, %v1365
        %v1545 = vadd.f32 %v994, %v1454
        %v1546 = vadd.f32 %v995, %v1278
        %v1547 = vadd.f32 %v996, %v1367
        %v1548 = vadd.f32 %v997, %v1456
        %v1549 = vadd.f32 %v998, %v1281
        %v1550 = vadd.f32 %v999, %v1370
        %v1551 = vadd.f32 %v1000, %v1459
        %v1552 = vadd.f32 %v1001, %v1283
        %v1553 = vadd.f32 %v1002, %v1372
        %v1554 = vadd.f32 %v1003, %v1461
        %v1555 = vadd.f32 %v1004, %v1286
        %v1556 = vadd.f32 %v1005, %v1375
        %v1557 = vadd.f32 %v1006, %v1464
        %v1558 = vadd.f32 %v1007, %v1288
        %v1559 = vadd.f32 %v1008, %v1377
        %v1560 = vadd.f32 %v1009, %v1466
        %v1561 = vadd.f32 %v1010, %v1291
        %v1562 = vadd.f32 %v1011, %v1380
        %v1563 = vadd.f32 %v1012, %v1469
        %v1564 = vadd.f32 %v1013, %v1293
        %v1565 = vadd.f32 %v1014, %v1382
        %v1566 = vadd.f32 %v1015, %v1471
        %v1567 = vadd.f32 %v1016, %v1296
        %v1568 = vadd.f32 %v1017, %v1385
        %v1569 = vadd.f32 %v1018, %v1474
        %v1570 = vadd.f32 %v1019, %v1298
        %v1571 = vadd.f32 %v1020, %v1387
        %v1572 = vadd.f32 %v1021, %v1476
        %v1573 = vadd.f32 %v1022, %v1301
        %v1574 = vadd.f32 %v1023, %v1390
        %v1575 = vadd.f32 %v1024, %v1479
        %v1576 = vadd.f32 %v1025, %v1303
        %v1577 = vadd.f32 %v1026, %v1392
        %v1578 = vadd.f32 %v1027, %v1481
        %v1579 = vld [vmem:[%s288] sm:$0x3f]
        %s1580 = scalar_lea.vmem %s292, 256
        %v1581 = vld [vmem:[%s1580] sm:$0xf]
        %v1582 = vld [vmem:[%s1580 + $0x4] sm:$0xf]
        %v1583 = vld [vmem:[%s1580 + $0x8] sm:$0xf]
        %v1584 = vld [vmem:[%s1580 + $0xc] sm:$0xf]
        %v1585 = vld [vmem:[%s1580 + $0x10] sm:$0xf]
        %v1586 = vld [vmem:[%s1580 + $0x14] sm:$0xf]
        %v1587 = vld [vmem:[%s1580 + $0x18] sm:$0xf]
        %v1588 = vld [vmem:[%s1580 + $0x1c] sm:$0xf]
        %v1589 = vld [vmem:[%s1580 + $0x20] sm:$0xf]
        %v1590 = vld [vmem:[%s1580 + $0x24] sm:$0xf]
        %v1591 = vld [vmem:[%s1580 + $0x28] sm:$0xf]
        %v1592 = vld [vmem:[%s1580 + $0x2c] sm:$0xf]
        %v1593 = vld [vmem:[%s1580 + $0x30] sm:$0xf]
        %v1594 = vld [vmem:[%s1580 + $0x34] sm:$0xf]
        %v1595 = vld [vmem:[%s1580 + $0x38] sm:$0xf]
        %v1596 = vld [vmem:[%s1580 + $0x3c] sm:$0xf]
        %v1597 = vld [vmem:[%s1580 + $0x40] sm:$0xf]
        %v1598 = vld [vmem:[%s1580 + $0x44] sm:$0xf]
        %v1599 = vld [vmem:[%s1580 + $0x48] sm:$0xf]
        %v1600 = vld [vmem:[%s1580 + $0x4c] sm:$0xf]
        %v1601 = vld [vmem:[%s1580 + $0x50] sm:$0xf]
        %v1602 = vld [vmem:[%s1580 + $0x54] sm:$0xf]
        %v1603 = vld [vmem:[%s1580 + $0x58] sm:$0xf]
        %v1604 = vld [vmem:[%s1580 + $0x5c] sm:$0xf]
        %v1605 = vld [vmem:[%s1580 + $0x60] sm:$0xf]
        %v1606 = vld [vmem:[%s1580 + $0x64] sm:$0xf]
        %v1607 = vld [vmem:[%s1580 + $0x68] sm:$0xf]
        %v1608 = vld [vmem:[%s1580 + $0x6c] sm:$0xf]
        %v1609 = vld [vmem:[%s1580 + $0x70] sm:$0xf]
        %v1610 = vld [vmem:[%s1580 + $0x74] sm:$0xf]
        %v1611 = vld [vmem:[%s1580 + $0x78] sm:$0xf]
        %v1612 = vld [vmem:[%s1580 + $0x7c] sm:$0xf]
        %v1645 = vunpack.c.l.b16 %v1581
        %v1646 = vunpack.c.l.b16 %v1582
        %v1647 = vunpack.c.l.b16 %v1583
        %v1648 = vunpack.c.l.b16 %v1584
        %v1649 = vunpack.c.l.b16 %v1585
        %v1650 = vunpack.c.l.b16 %v1586
        %v1651 = vunpack.c.l.b16 %v1587
        %v1652 = vunpack.c.l.b16 %v1588
        %v1653 = vunpack.c.l.b16 %v1589
        %v1654 = vunpack.c.l.b16 %v1590
        %v1655 = vunpack.c.l.b16 %v1591
        %v1656 = vunpack.c.l.b16 %v1592
        %v1657 = vunpack.c.l.b16 %v1593
        %v1658 = vunpack.c.l.b16 %v1594
        %v1659 = vunpack.c.l.b16 %v1595
        %v1660 = vunpack.c.l.b16 %v1596
        %v1661 = vunpack.c.l.b16 %v1597
        %v1662 = vunpack.c.l.b16 %v1598
        %v1663 = vunpack.c.l.b16 %v1599
        %v1664 = vunpack.c.l.b16 %v1600
        %v1665 = vunpack.c.l.b16 %v1601
        %v1666 = vunpack.c.l.b16 %v1602
        %v1667 = vunpack.c.l.b16 %v1603
        %v1668 = vunpack.c.l.b16 %v1604
        %v1669 = vunpack.c.l.b16 %v1605
        %v1670 = vunpack.c.l.b16 %v1606
        %v1671 = vunpack.c.l.b16 %v1607
        %v1672 = vunpack.c.l.b16 %v1608
        %v1673 = vunpack.c.l.b16 %v1609
        %v1674 = vunpack.c.l.b16 %v1610
        %v1675 = vunpack.c.l.b16 %v1611
        %v1676 = vunpack.c.l.b16 %v1612
        %v1677 = vpack.c.b16 %v1646, %v1645
        %v1678 = vpack.c.b16 %v1648, %v1647
        %v1679 = vpack.c.b16 %v1650, %v1649
        %v1680 = vpack.c.b16 %v1652, %v1651
        %v1681 = vpack.c.b16 %v1654, %v1653
        %v1682 = vpack.c.b16 %v1656, %v1655
        %v1683 = vpack.c.b16 %v1658, %v1657
        %v1684 = vpack.c.b16 %v1660, %v1659
        %v1685 = vpack.c.b16 %v1662, %v1661
        %v1686 = vpack.c.b16 %v1664, %v1663
        %v1687 = vpack.c.b16 %v1666, %v1665
        %v1688 = vpack.c.b16 %v1668, %v1667
        %v1689 = vpack.c.b16 %v1670, %v1669
        %v1690 = vpack.c.b16 %v1672, %v1671
        %v1691 = vpack.c.b16 %v1674, %v1673
        %v1692 = vpack.c.b16 %v1676, %v1675
        %1694 = vst [vmem:[#allocation1] ss:$4 sm:$0xff] %v1579
        %v1695 = vld.sshfl [vmem:[#allocation1] sm:$0xff pattern:$0x73625140]
        %v1697 = vld.sshfl [vmem:[#allocation1 + $0x8] sm:$0xff pattern:$0x73625140]
        %v1699 = vld.sshfl [vmem:[#allocation1 + $0x10] sm:$0xff pattern:$0x73625140]
        %1701 = vrot.lane.b32.xlu0 %v1695, 126
        %v1702 = vpop.permute.xlu0 %1701
        %1703 = vrot.lane.b32.xlu0 %v1697, 126
        %v1704 = vpop.permute.xlu0 %1703
        %1705 = vrot.lane.b32.xlu0 %v1699, 126
        %v1706 = vpop.permute.xlu0 %1705
        %vm1707 = vcmask 1031168
        %v1708 = vsel %vm1707, %v1702, %v1704
        %v1709 = vsel %vm1707, %v1704, %v1706
        %v1711 = vsel %vm609, %v1677, 0
        %v1714 = vsel %vm609, %v1678, 0
        %v1717 = vsel %vm609, %v1679, 0
        %v1720 = vsel %vm609, %v1680, 0
        %v1723 = vsel %vm609, %v1681, 0
        %v1726 = vsel %vm609, %v1682, 0
        %v1729 = vsel %vm609, %v1683, 0
        %v1732 = vsel %vm609, %v1684, 0
        %v1735 = vsel %vm609, %v1685, 0
        %v1738 = vsel %vm609, %v1686, 0
        %v1741 = vsel %vm609, %v1687, 0
        %v1744 = vsel %vm609, %v1688, 0
        %v1747 = vsel %vm609, %v1689, 0
        %v1750 = vsel %vm609, %v1690, 0
        %v1753 = vsel %vm609, %v1691, 0
        %v1756 = vsel %vm609, %v1692, 0
        %v1759 = vsel %vm658, %v1708, 0
        %v1762 = vsel %vm658, %v1709, 0
        %v1765 = vsel %vm658, %v1706, 0
        %1767 = vmatpush.bf16.msra.mxu0 0
        %1768 = vmatpush.bf16.msra.mxu0 0
        %1769 = vmatpush.bf16.msra.mxu0 0
        %1770 = vmatpush.bf16.msra.mxu0 0
        %1771 = vmatpush.bf16.msra.mxu0 0
        %1772 = vmatpush.bf16.msra.mxu0 0
        %1773 = vmatpush.bf16.msra.mxu0 0
        %1774 = vmatpush.bf16.msra.mxu0 %v1759
        %1775 = vmatmul.bf16.gmra.mxu0 %v1711
        %v1776 = vpop.f32.mrf.mxu0
        %v1777 = vadd.f32 0.0, %v1776
        %v1778 = vpop.f32.mrf.mxu0
        %v1779 = vadd.f32 0.0, %v1778
        %1780 = vmatmul.bf16.gmra.mxu0 %v1714
        %v1781 = vpop.f32.mrf.mxu0
        %v1782 = vadd.f32 0.0, %v1781
        %v1783 = vpop.f32.mrf.mxu0
        %v1784 = vadd.f32 0.0, %v1783
        %1785 = vmatmul.bf16.gmra.mxu0 %v1717
        %v1786 = vpop.f32.mrf.mxu0
        %v1787 = vadd.f32 0.0, %v1786
        %v1788 = vpop.f32.mrf.mxu0
        %v1789 = vadd.f32 0.0, %v1788
        %1790 = vmatmul.bf16.gmra.mxu0 %v1720
        %v1791 = vpop.f32.mrf.mxu0
        %v1792 = vadd.f32 0.0, %v1791
        %v1793 = vpop.f32.mrf.mxu0
        %v1794 = vadd.f32 0.0, %v1793
        %1795 = vmatmul.bf16.gmra.mxu0 %v1723
        %v1796 = vpop.f32.mrf.mxu0
        %v1797 = vadd.f32 0.0, %v1796
        %v1798 = vpop.f32.mrf.mxu0
        %v1799 = vadd.f32 0.0, %v1798
        %1800 = vmatmul.bf16.gmra.mxu0 %v1726
        %v1801 = vpop.f32.mrf.mxu0
        %v1802 = vadd.f32 0.0, %v1801
        %v1803 = vpop.f32.mrf.mxu0
        %v1804 = vadd.f32 0.0, %v1803
        %1805 = vmatmul.bf16.gmra.mxu0 %v1729
        %v1806 = vpop.f32.mrf.mxu0
        %v1807 = vadd.f32 0.0, %v1806
        %v1808 = vpop.f32.mrf.mxu0
        %v1809 = vadd.f32 0.0, %v1808
        %1810 = vmatmul.bf16.gmra.mxu0 %v1732
        %v1811 = vpop.f32.mrf.mxu0
        %v1812 = vadd.f32 0.0, %v1811
        %v1813 = vpop.f32.mrf.mxu0
        %v1814 = vadd.f32 0.0, %v1813
        %1815 = vmatmul.bf16.gmra.mxu0 %v1735
        %v1816 = vpop.f32.mrf.mxu0
        %v1817 = vadd.f32 0.0, %v1816
        %v1818 = vpop.f32.mrf.mxu0
        %v1819 = vadd.f32 0.0, %v1818
        %1820 = vmatmul.bf16.gmra.mxu0 %v1738
        %v1821 = vpop.f32.mrf.mxu0
        %v1822 = vadd.f32 0.0, %v1821
        %v1823 = vpop.f32.mrf.mxu0
        %v1824 = vadd.f32 0.0, %v1823
        %1825 = vmatmul.bf16.gmra.mxu0 %v1741
        %v1826 = vpop.f32.mrf.mxu0
        %v1827 = vadd.f32 0.0, %v1826
        %v1828 = vpop.f32.mrf.mxu0
        %v1829 = vadd.f32 0.0, %v1828
        %1830 = vmatmul.bf16.gmra.mxu0 %v1744
        %v1831 = vpop.f32.mrf.mxu0
        %v1832 = vadd.f32 0.0, %v1831
        %v1833 = vpop.f32.mrf.mxu0
        %v1834 = vadd.f32 0.0, %v1833
        %1835 = vmatmul.bf16.gmra.mxu0 %v1747
        %v1836 = vpop.f32.mrf.mxu0
        %v1837 = vadd.f32 0.0, %v1836
        %v1838 = vpop.f32.mrf.mxu0
        %v1839 = vadd.f32 0.0, %v1838
        %1840 = vmatmul.bf16.gmra.mxu0 %v1750
        %v1841 = vpop.f32.mrf.mxu0
        %v1842 = vadd.f32 0.0, %v1841
        %v1843 = vpop.f32.mrf.mxu0
        %v1844 = vadd.f32 0.0, %v1843
        %1845 = vmatmul.bf16.gmra.mxu0 %v1753
        %v1846 = vpop.f32.mrf.mxu0
        %v1847 = vadd.f32 0.0, %v1846
        %v1848 = vpop.f32.mrf.mxu0
        %v1849 = vadd.f32 0.0, %v1848
        %1850 = vmatmul.bf16.gmra.mxu0 %v1756
        %v1851 = vpop.f32.mrf.mxu0
        %v1852 = vadd.f32 0.0, %v1851
        %v1853 = vpop.f32.mrf.mxu0
        %v1854 = vadd.f32 0.0, %v1853
        %1855 = vdwg.mxu0
        %1856 = vmatpush.bf16.msra.mxu0 0
        %1857 = vmatpush.bf16.msra.mxu0 0
        %1858 = vmatpush.bf16.msra.mxu0 0
        %1859 = vmatpush.bf16.msra.mxu0 0
        %1860 = vmatpush.bf16.msra.mxu0 0
        %1861 = vmatpush.bf16.msra.mxu0 0
        %1862 = vmatpush.bf16.msra.mxu0 0
        %1863 = vmatpush.bf16.msra.mxu0 %v1762
        %1864 = vmatmul.bf16.gmra.mxu0 %v1711
        %v1865 = vpop.f32.mrf.mxu0
        %v1866 = vadd.f32 0.0, %v1865
        %v1867 = vpop.f32.mrf.mxu0
        %v1868 = vadd.f32 0.0, %v1867
        %1869 = vmatmul.bf16.gmra.mxu0 %v1714
        %v1870 = vpop.f32.mrf.mxu0
        %v1871 = vadd.f32 0.0, %v1870
        %v1872 = vpop.f32.mrf.mxu0
        %v1873 = vadd.f32 0.0, %v1872
        %1874 = vmatmul.bf16.gmra.mxu0 %v1717
        %v1875 = vpop.f32.mrf.mxu0
        %v1876 = vadd.f32 0.0, %v1875
        %v1877 = vpop.f32.mrf.mxu0
        %v1878 = vadd.f32 0.0, %v1877
        %1879 = vmatmul.bf16.gmra.mxu0 %v1720
        %v1880 = vpop.f32.mrf.mxu0
        %v1881 = vadd.f32 0.0, %v1880
        %v1882 = vpop.f32.mrf.mxu0
        %v1883 = vadd.f32 0.0, %v1882
        %1884 = vmatmul.bf16.gmra.mxu0 %v1723
        %v1885 = vpop.f32.mrf.mxu0
        %v1886 = vadd.f32 0.0, %v1885
        %v1887 = vpop.f32.mrf.mxu0
        %v1888 = vadd.f32 0.0, %v1887
        %1889 = vmatmul.bf16.gmra.mxu0 %v1726
        %v1890 = vpop.f32.mrf.mxu0
        %v1891 = vadd.f32 0.0, %v1890
        %v1892 = vpop.f32.mrf.mxu0
        %v1893 = vadd.f32 0.0, %v1892
        %1894 = vmatmul.bf16.gmra.mxu0 %v1729
        %v1895 = vpop.f32.mrf.mxu0
        %v1896 = vadd.f32 0.0, %v1895
        %v1897 = vpop.f32.mrf.mxu0
        %v1898 = vadd.f32 0.0, %v1897
        %1899 = vmatmul.bf16.gmra.mxu0 %v1732
        %v1900 = vpop.f32.mrf.mxu0
        %v1901 = vadd.f32 0.0, %v1900
        %v1902 = vpop.f32.mrf.mxu0
        %v1903 = vadd.f32 0.0, %v1902
        %1904 = vmatmul.bf16.gmra.mxu0 %v1735
        %v1905 = vpop.f32.mrf.mxu0
        %v1906 = vadd.f32 0.0, %v1905
        %v1907 = vpop.f32.mrf.mxu0
        %v1908 = vadd.f32 0.0, %v1907
        %1909 = vmatmul.bf16.gmra.mxu0 %v1738
        %v1910 = vpop.f32.mrf.mxu0
        %v1911 = vadd.f32 0.0, %v1910
        %v1912 = vpop.f32.mrf.mxu0
        %v1913 = vadd.f32 0.0, %v1912
        %1914 = vmatmul.bf16.gmra.mxu0 %v1741
        %v1915 = vpop.f32.mrf.mxu0
        %v1916 = vadd.f32 0.0, %v1915
        %v1917 = vpop.f32.mrf.mxu0
        %v1918 = vadd.f32 0.0, %v1917
        %1919 = vmatmul.bf16.gmra.mxu0 %v1744
        %v1920 = vpop.f32.mrf.mxu0
        %v1921 = vadd.f32 0.0, %v1920
        %v1922 = vpop.f32.mrf.mxu0
        %v1923 = vadd.f32 0.0, %v1922
        %1924 = vmatmul.bf16.gmra.mxu0 %v1747
        %v1925 = vpop.f32.mrf.mxu0
        %v1926 = vadd.f32 0.0, %v1925
        %v1927 = vpop.f32.mrf.mxu0
        %v1928 = vadd.f32 0.0, %v1927
        %1929 = vmatmul.bf16.gmra.mxu0 %v1750
        %v1930 = vpop.f32.mrf.mxu0
        %v1931 = vadd.f32 0.0, %v1930
        %v1932 = vpop.f32.mrf.mxu0
        %v1933 = vadd.f32 0.0, %v1932
        %1934 = vmatmul.bf16.gmra.mxu0 %v1753
        %v1935 = vpop.f32.mrf.mxu0
        %v1936 = vadd.f32 0.0, %v1935
        %v1937 = vpop.f32.mrf.mxu0
        %v1938 = vadd.f32 0.0, %v1937
        %1939 = vmatmul.bf16.gmra.mxu0 %v1756
        %v1940 = vpop.f32.mrf.mxu0
        %v1941 = vadd.f32 0.0, %v1940
        %v1942 = vpop.f32.mrf.mxu0
        %v1943 = vadd.f32 0.0, %v1942
        %1944 = vdwg.mxu0
        %1945 = vmatpush.bf16.msra.mxu0 0
        %1946 = vmatpush.bf16.msra.mxu0 0
        %1947 = vmatpush.bf16.msra.mxu0 0
        %1948 = vmatpush.bf16.msra.mxu0 0
        %1949 = vmatpush.bf16.msra.mxu0 0
        %1950 = vmatpush.bf16.msra.mxu0 0
        %1951 = vmatpush.bf16.msra.mxu0 0
        %1952 = vmatpush.bf16.msra.mxu0 %v1765
        %1953 = vmatmul.bf16.gmra.mxu0 %v1711
        %v1954 = vpop.f32.mrf.mxu0
        %v1955 = vadd.f32 0.0, %v1954
        %v1956 = vpop.f32.mrf.mxu0
        %v1957 = vadd.f32 0.0, %v1956
        %1958 = vmatmul.bf16.gmra.mxu0 %v1714
        %v1959 = vpop.f32.mrf.mxu0
        %v1960 = vadd.f32 0.0, %v1959
        %v1961 = vpop.f32.mrf.mxu0
        %v1962 = vadd.f32 0.0, %v1961
        %1963 = vmatmul.bf16.gmra.mxu0 %v1717
        %v1964 = vpop.f32.mrf.mxu0
        %v1965 = vadd.f32 0.0, %v1964
        %v1966 = vpop.f32.mrf.mxu0
        %v1967 = vadd.f32 0.0, %v1966
        %1968 = vmatmul.bf16.gmra.mxu0 %v1720
        %v1969 = vpop.f32.mrf.mxu0
        %v1970 = vadd.f32 0.0, %v1969
        %v1971 = vpop.f32.mrf.mxu0
        %v1972 = vadd.f32 0.0, %v1971
        %1973 = vmatmul.bf16.gmra.mxu0 %v1723
        %v1974 = vpop.f32.mrf.mxu0
        %v1975 = vadd.f32 0.0, %v1974
        %v1976 = vpop.f32.mrf.mxu0
        %v1977 = vadd.f32 0.0, %v1976
        %1978 = vmatmul.bf16.gmra.mxu0 %v1726
        %v1979 = vpop.f32.mrf.mxu0
        %v1980 = vadd.f32 0.0, %v1979
        %v1981 = vpop.f32.mrf.mxu0
        %v1982 = vadd.f32 0.0, %v1981
        %1983 = vmatmul.bf16.gmra.mxu0 %v1729
        %v1984 = vpop.f32.mrf.mxu0
        %v1985 = vadd.f32 0.0, %v1984
        %v1986 = vpop.f32.mrf.mxu0
        %v1987 = vadd.f32 0.0, %v1986
        %1988 = vmatmul.bf16.gmra.mxu0 %v1732
        %v1989 = vpop.f32.mrf.mxu0
        %v1990 = vadd.f32 0.0, %v1989
        %v1991 = vpop.f32.mrf.mxu0
        %v1992 = vadd.f32 0.0, %v1991
        %1993 = vmatmul.bf16.gmra.mxu0 %v1735
        %v1994 = vpop.f32.mrf.mxu0
        %v1995 = vadd.f32 0.0, %v1994
        %v1996 = vpop.f32.mrf.mxu0
        %v1997 = vadd.f32 0.0, %v1996
        %1998 = vmatmul.bf16.gmra.mxu0 %v1738
        %v1999 = vpop.f32.mrf.mxu0
        %v2000 = vadd.f32 0.0, %v1999
        %v2001 = vpop.f32.mrf.mxu0
        %v2002 = vadd.f32 0.0, %v2001
        %2003 = vmatmul.bf16.gmra.mxu0 %v1741
        %v2004 = vpop.f32.mrf.mxu0
        %v2005 = vadd.f32 0.0, %v2004
        %v2006 = vpop.f32.mrf.mxu0
        %v2007 = vadd.f32 0.0, %v2006
        %2008 = vmatmul.bf16.gmra.mxu0 %v1744
        %v2009 = vpop.f32.mrf.mxu0
        %v2010 = vadd.f32 0.0, %v2009
        %v2011 = vpop.f32.mrf.mxu0
        %v2012 = vadd.f32 0.0, %v2011
        %2013 = vmatmul.bf16.gmra.mxu0 %v1747
        %v2014 = vpop.f32.mrf.mxu0
        %v2015 = vadd.f32 0.0, %v2014
        %v2016 = vpop.f32.mrf.mxu0
        %v2017 = vadd.f32 0.0, %v2016
        %2018 = vmatmul.bf16.gmra.mxu0 %v1750
        %v2019 = vpop.f32.mrf.mxu0
        %v2020 = vadd.f32 0.0, %v2019
        %v2021 = vpop.f32.mrf.mxu0
        %v2022 = vadd.f32 0.0, %v2021
        %2023 = vmatmul.bf16.gmra.mxu0 %v1753
        %v2024 = vpop.f32.mrf.mxu0
        %v2025 = vadd.f32 0.0, %v2024
        %v2026 = vpop.f32.mrf.mxu0
        %v2027 = vadd.f32 0.0, %v2026
        %2028 = vmatmul.bf16.gmra.mxu0 %v1756
        %v2029 = vpop.f32.mrf.mxu0
        %v2030 = vadd.f32 0.0, %v2029
        %v2031 = vpop.f32.mrf.mxu0
        %v2032 = vadd.f32 0.0, %v2031
        %2033 = vdwg.mxu0
        %v2034 = vadd.f32 %v1483, %v1777
        %v2035 = vadd.f32 %v1484, %v1866
        %v2036 = vadd.f32 %v1485, %v1955
        %v2037 = vadd.f32 %v1486, %v1779
        %v2038 = vadd.f32 %v1487, %v1868
        %v2039 = vadd.f32 %v1488, %v1957
        %v2040 = vadd.f32 %v1489, %v1782
        %v2041 = vadd.f32 %v1490, %v1871
        %v2042 = vadd.f32 %v1491, %v1960
        %v2043 = vadd.f32 %v1492, %v1784
        %v2044 = vadd.f32 %v1493, %v1873
        %v2045 = vadd.f32 %v1494, %v1962
        %v2046 = vadd.f32 %v1495, %v1787
        %v2047 = vadd.f32 %v1496, %v1876
        %v2048 = vadd.f32 %v1497, %v1965
        %v2049 = vadd.f32 %v1498, %v1789
        %v2050 = vadd.f32 %v1499, %v1878
        %v2051 = vadd.f32 %v1500, %v1967
        %v2052 = vadd.f32 %v1501, %v1792
        %v2053 = vadd.f32 %v1502, %v1881
        %v2054 = vadd.f32 %v1503, %v1970
        %v2055 = vadd.f32 %v1504, %v1794
        %v2056 = vadd.f32 %v1505, %v1883
        %v2057 = vadd.f32 %v1506, %v1972
        %v2058 = vadd.f32 %v1507, %v1797
        %v2059 = vadd.f32 %v1508, %v1886
        %v2060 = vadd.f32 %v1509, %v1975
        %v2061 = vadd.f32 %v1510, %v1799
        %v2062 = vadd.f32 %v1511, %v1888
        %v2063 = vadd.f32 %v1512, %v1977
        %v2064 = vadd.f32 %v1513, %v1802
        %v2065 = vadd.f32 %v1514, %v1891
        %v2066 = vadd.f32 %v1515, %v1980
        %v2067 = vadd.f32 %v1516, %v1804
        %v2068 = vadd.f32 %v1517, %v1893
        %v2069 = vadd.f32 %v1518, %v1982
        %v2070 = vadd.f32 %v1519, %v1807
        %v2071 = vadd.f32 %v1520, %v1896
        %v2072 = vadd.f32 %v1521, %v1985
        %v2073 = vadd.f32 %v1522, %v1809
        %v2074 = vadd.f32 %v1523, %v1898
        %v2075 = vadd.f32 %v1524, %v1987
        %v2076 = vadd.f32 %v1525, %v1812
        %v2077 = vadd.f32 %v1526, %v1901
        %v2078 = vadd.f32 %v1527, %v1990
        %v2079 = vadd.f32 %v1528, %v1814
        %v2080 = vadd.f32 %v1529, %v1903
        %v2081 = vadd.f32 %v1530, %v1992
        %v2082 = vadd.f32 %v1531, %v1817
        %v2083 = vadd.f32 %v1532, %v1906
        %v2084 = vadd.f32 %v1533, %v1995
        %v2085 = vadd.f32 %v1534, %v1819
        %v2086 = vadd.f32 %v1535, %v1908
        %v2087 = vadd.f32 %v1536, %v1997
        %v2088 = vadd.f32 %v1537, %v1822
        %v2089 = vadd.f32 %v1538, %v1911
        %v2090 = vadd.f32 %v1539, %v2000
        %v2091 = vadd.f32 %v1540, %v1824
        %v2092 = vadd.f32 %v1541, %v1913
        %v2093 = vadd.f32 %v1542, %v2002
        %v2094 = vadd.f32 %v1543, %v1827
        %v2095 = vadd.f32 %v1544, %v1916
        %v2096 = vadd.f32 %v1545, %v2005
        %v2097 = vadd.f32 %v1546, %v1829
        %v2098 = vadd.f32 %v1547, %v1918
        %v2099 = vadd.f32 %v1548, %v2007
        %v2100 = vadd.f32 %v1549, %v1832
        %v2101 = vadd.f32 %v1550, %v1921
        %v2102 = vadd.f32 %v1551, %v2010
        %v2103 = vadd.f32 %v1552, %v1834
        %v2104 = vadd.f32 %v1553, %v1923
        %v2105 = vadd.f32 %v1554, %v2012
        %v2106 = vadd.f32 %v1555, %v1837
        %v2107 = vadd.f32 %v1556, %v1926
        %v2108 = vadd.f32 %v1557, %v2015
        %v2109 = vadd.f32 %v1558, %v1839
        %v2110 = vadd.f32 %v1559, %v1928
        %v2111 = vadd.f32 %v1560, %v2017
        %v2112 = vadd.f32 %v1561, %v1842
        %v2113 = vadd.f32 %v1562, %v1931
        %v2114 = vadd.f32 %v1563, %v2020
        %v2115 = vadd.f32 %v1564, %v1844
        %v2116 = vadd.f32 %v1565, %v1933
        %v2117 = vadd.f32 %v1566, %v2022
        %v2118 = vadd.f32 %v1567, %v1847
        %v2119 = vadd.f32 %v1568, %v1936
        %v2120 = vadd.f32 %v1569, %v2025
        %v2121 = vadd.f32 %v1570, %v1849
        %v2122 = vadd.f32 %v1571, %v1938
        %v2123 = vadd.f32 %v1572, %v2027
        %v2124 = vadd.f32 %v1573, %v1852
        %v2125 = vadd.f32 %v1574, %v1941
        %v2126 = vadd.f32 %v1575, %v2030
        %v2127 = vadd.f32 %v1576, %v1854
        %v2128 = vadd.f32 %v1577, %v1943
        %v2129 = vadd.f32 %v1578, %v2032
        %v2130 = vld [vmem:[%s288] sm:$0x3f]
        %s2131 = scalar_lea.vmem %s292, 384
        %v2132 = vld [vmem:[%s2131] sm:$0xf]
        %v2133 = vld [vmem:[%s2131 + $0x4] sm:$0xf]
        %v2134 = vld [vmem:[%s2131 + $0x8] sm:$0xf]
        %v2135 = vld [vmem:[%s2131 + $0xc] sm:$0xf]
        %v2136 = vld [vmem:[%s2131 + $0x10] sm:$0xf]
        %v2137 = vld [vmem:[%s2131 + $0x14] sm:$0xf]
        %v2138 = vld [vmem:[%s2131 + $0x18] sm:$0xf]
        %v2139 = vld [vmem:[%s2131 + $0x1c] sm:$0xf]
        %v2140 = vld [vmem:[%s2131 + $0x20] sm:$0xf]
        %v2141 = vld [vmem:[%s2131 + $0x24] sm:$0xf]
        %v2142 = vld [vmem:[%s2131 + $0x28] sm:$0xf]
        %v2143 = vld [vmem:[%s2131 + $0x2c] sm:$0xf]
        %v2144 = vld [vmem:[%s2131 + $0x30] sm:$0xf]
        %v2145 = vld [vmem:[%s2131 + $0x34] sm:$0xf]
        %v2146 = vld [vmem:[%s2131 + $0x38] sm:$0xf]
        %v2147 = vld [vmem:[%s2131 + $0x3c] sm:$0xf]
        %v2148 = vld [vmem:[%s2131 + $0x40] sm:$0xf]
        %v2149 = vld [vmem:[%s2131 + $0x44] sm:$0xf]
        %v2150 = vld [vmem:[%s2131 + $0x48] sm:$0xf]
        %v2151 = vld [vmem:[%s2131 + $0x4c] sm:$0xf]
        %v2152 = vld [vmem:[%s2131 + $0x50] sm:$0xf]
        %v2153 = vld [vmem:[%s2131 + $0x54] sm:$0xf]
        %v2154 = vld [vmem:[%s2131 + $0x58] sm:$0xf]
        %v2155 = vld [vmem:[%s2131 + $0x5c] sm:$0xf]
        %v2156 = vld [vmem:[%s2131 + $0x60] sm:$0xf]
        %v2157 = vld [vmem:[%s2131 + $0x64] sm:$0xf]
        %v2158 = vld [vmem:[%s2131 + $0x68] sm:$0xf]
        %v2159 = vld [vmem:[%s2131 + $0x6c] sm:$0xf]
        %v2160 = vld [vmem:[%s2131 + $0x70] sm:$0xf]
        %v2161 = vld [vmem:[%s2131 + $0x74] sm:$0xf]
        %v2162 = vld [vmem:[%s2131 + $0x78] sm:$0xf]
        %v2163 = vld [vmem:[%s2131 + $0x7c] sm:$0xf]
        %v2196 = vunpack.c.l.b16 %v2132
        %v2197 = vunpack.c.l.b16 %v2133
        %v2198 = vunpack.c.l.b16 %v2134
        %v2199 = vunpack.c.l.b16 %v2135
        %v2200 = vunpack.c.l.b16 %v2136
        %v2201 = vunpack.c.l.b16 %v2137
        %v2202 = vunpack.c.l.b16 %v2138
        %v2203 = vunpack.c.l.b16 %v2139
        %v2204 = vunpack.c.l.b16 %v2140
        %v2205 = vunpack.c.l.b16 %v2141
        %v2206 = vunpack.c.l.b16 %v2142
        %v2207 = vunpack.c.l.b16 %v2143
        %v2208 = vunpack.c.l.b16 %v2144
        %v2209 = vunpack.c.l.b16 %v2145
        %v2210 = vunpack.c.l.b16 %v2146
        %v2211 = vunpack.c.l.b16 %v2147
        %v2212 = vunpack.c.l.b16 %v2148
        %v2213 = vunpack.c.l.b16 %v2149
        %v2214 = vunpack.c.l.b16 %v2150
        %v2215 = vunpack.c.l.b16 %v2151
        %v2216 = vunpack.c.l.b16 %v2152
        %v2217 = vunpack.c.l.b16 %v2153
        %v2218 = vunpack.c.l.b16 %v2154
        %v2219 = vunpack.c.l.b16 %v2155
        %v2220 = vunpack.c.l.b16 %v2156
        %v2221 = vunpack.c.l.b16 %v2157
        %v2222 = vunpack.c.l.b16 %v2158
        %v2223 = vunpack.c.l.b16 %v2159
        %v2224 = vunpack.c.l.b16 %v2160
        %v2225 = vunpack.c.l.b16 %v2161
        %v2226 = vunpack.c.l.b16 %v2162
        %v2227 = vunpack.c.l.b16 %v2163
        %v2228 = vpack.c.b16 %v2197, %v2196
        %v2229 = vpack.c.b16 %v2199, %v2198
        %v2230 = vpack.c.b16 %v2201, %v2200
        %v2231 = vpack.c.b16 %v2203, %v2202
        %v2232 = vpack.c.b16 %v2205, %v2204
        %v2233 = vpack.c.b16 %v2207, %v2206
        %v2234 = vpack.c.b16 %v2209, %v2208
        %v2235 = vpack.c.b16 %v2211, %v2210
        %v2236 = vpack.c.b16 %v2213, %v2212
        %v2237 = vpack.c.b16 %v2215, %v2214
        %v2238 = vpack.c.b16 %v2217, %v2216
        %v2239 = vpack.c.b16 %v2219, %v2218
        %v2240 = vpack.c.b16 %v2221, %v2220
        %v2241 = vpack.c.b16 %v2223, %v2222
        %v2242 = vpack.c.b16 %v2225, %v2224
        %v2243 = vpack.c.b16 %v2227, %v2226
        %2245 = vst [vmem:[#allocation1] ss:$4 sm:$0xff] %v2130
        %v2246 = vld.sshfl [vmem:[#allocation1] sm:$0xff pattern:$0x73625140]
        %v2248 = vld.sshfl [vmem:[#allocation1 + $0x8] sm:$0xff pattern:$0x73625140]
        %v2250 = vld.sshfl [vmem:[#allocation1 + $0x10] sm:$0xff pattern:$0x73625140]
        %2252 = vrot.lane.b32.xlu0 %v2246, 110
        %v2253 = vpop.permute.xlu0 %2252
        %2254 = vrot.lane.b32.xlu0 %v2248, 110
        %v2255 = vpop.permute.xlu0 %2254
        %2256 = vrot.lane.b32.xlu0 %v2250, 110
        %v2257 = vpop.permute.xlu0 %2256
        %vm2258 = vcmask 900096
        %v2259 = vsel %vm2258, %v2253, %v2255
        %v2260 = vsel %vm2258, %v2255, %v2257
        %v2262 = vsel %vm609, %v2228, 0
        %v2265 = vsel %vm609, %v2229, 0
        %v2268 = vsel %vm609, %v2230, 0
        %v2271 = vsel %vm609, %v2231, 0
        %v2274 = vsel %vm609, %v2232, 0
        %v2277 = vsel %vm609, %v2233, 0
        %v2280 = vsel %vm609, %v2234, 0
        %v2283 = vsel %vm609, %v2235, 0
        %v2286 = vsel %vm609, %v2236, 0
        %v2289 = vsel %vm609, %v2237, 0
        %v2292 = vsel %vm609, %v2238, 0
        %v2295 = vsel %vm609, %v2239, 0
        %v2298 = vsel %vm609, %v2240, 0
        %v2301 = vsel %vm609, %v2241, 0
        %v2304 = vsel %vm609, %v2242, 0
        %v2307 = vsel %vm609, %v2243, 0
        %v2310 = vsel %vm658, %v2259, 0
        %v2313 = vsel %vm658, %v2260, 0
        %v2316 = vsel %vm658, %v2257, 0
        %2318 = vmatpush.bf16.msra.mxu0 0
        %2319 = vmatpush.bf16.msra.mxu0 0
        %2320 = vmatpush.bf16.msra.mxu0 0
        %2321 = vmatpush.bf16.msra.mxu0 0
        %2322 = vmatpush.bf16.msra.mxu0 0
        %2323 = vmatpush.bf16.msra.mxu0 0
        %2324 = vmatpush.bf16.msra.mxu0 0
        %2325 = vmatpush.bf16.msra.mxu0 %v2310
        %2326 = vmatmul.bf16.gmra.mxu0 %v2262
        %v2327 = vpop.f32.mrf.mxu0
        %v2328 = vadd.f32 0.0, %v2327
        %v2329 = vpop.f32.mrf.mxu0
        %v2330 = vadd.f32 0.0, %v2329
        %2331 = vmatmul.bf16.gmra.mxu0 %v2265
        %v2332 = vpop.f32.mrf.mxu0
        %v2333 = vadd.f32 0.0, %v2332
        %v2334 = vpop.f32.mrf.mxu0
        %v2335 = vadd.f32 0.0, %v2334
        %2336 = vmatmul.bf16.gmra.mxu0 %v2268
        %v2337 = vpop.f32.mrf.mxu0
        %v2338 = vadd.f32 0.0, %v2337
        %v2339 = vpop.f32.mrf.mxu0
        %v2340 = vadd.f32 0.0, %v2339
        %2341 = vmatmul.bf16.gmra.mxu0 %v2271
        %v2342 = vpop.f32.mrf.mxu0
        %v2343 = vadd.f32 0.0, %v2342
        %v2344 = vpop.f32.mrf.mxu0
        %v2345 = vadd.f32 0.0, %v2344
        %2346 = vmatmul.bf16.gmra.mxu0 %v2274
        %v2347 = vpop.f32.mrf.mxu0
        %v2348 = vadd.f32 0.0, %v2347
        %v2349 = vpop.f32.mrf.mxu0
        %v2350 = vadd.f32 0.0, %v2349
        %2351 = vmatmul.bf16.gmra.mxu0 %v2277
        %v2352 = vpop.f32.mrf.mxu0
        %v2353 = vadd.f32 0.0, %v2352
        %v2354 = vpop.f32.mrf.mxu0
        %v2355 = vadd.f32 0.0, %v2354
        %2356 = vmatmul.bf16.gmra.mxu0 %v2280
        %v2357 = vpop.f32.mrf.mxu0
        %v2358 = vadd.f32 0.0, %v2357
        %v2359 = vpop.f32.mrf.mxu0
        %v2360 = vadd.f32 0.0, %v2359
        %2361 = vmatmul.bf16.gmra.mxu0 %v2283
        %v2362 = vpop.f32.mrf.mxu0
        %v2363 = vadd.f32 0.0, %v2362
        %v2364 = vpop.f32.mrf.mxu0
        %v2365 = vadd.f32 0.0, %v2364
        %2366 = vmatmul.bf16.gmra.mxu0 %v2286
        %v2367 = vpop.f32.mrf.mxu0
        %v2368 = vadd.f32 0.0, %v2367
        %v2369 = vpop.f32.mrf.mxu0
        %v2370 = vadd.f32 0.0, %v2369
        %2371 = vmatmul.bf16.gmra.mxu0 %v2289
        %v2372 = vpop.f32.mrf.mxu0
        %v2373 = vadd.f32 0.0, %v2372
        %v2374 = vpop.f32.mrf.mxu0
        %v2375 = vadd.f32 0.0, %v2374
        %2376 = vmatmul.bf16.gmra.mxu0 %v2292
        %v2377 = vpop.f32.mrf.mxu0
        %v2378 = vadd.f32 0.0, %v2377
        %v2379 = vpop.f32.mrf.mxu0
        %v2380 = vadd.f32 0.0, %v2379
        %2381 = vmatmul.bf16.gmra.mxu0 %v2295
        %v2382 = vpop.f32.mrf.mxu0
        %v2383 = vadd.f32 0.0, %v2382
        %v2384 = vpop.f32.mrf.mxu0
        %v2385 = vadd.f32 0.0, %v2384
        %2386 = vmatmul.bf16.gmra.mxu0 %v2298
        %v2387 = vpop.f32.mrf.mxu0
        %v2388 = vadd.f32 0.0, %v2387
        %v2389 = vpop.f32.mrf.mxu0
        %v2390 = vadd.f32 0.0, %v2389
        %2391 = vmatmul.bf16.gmra.mxu0 %v2301
        %v2392 = vpop.f32.mrf.mxu0
        %v2393 = vadd.f32 0.0, %v2392
        %v2394 = vpop.f32.mrf.mxu0
        %v2395 = vadd.f32 0.0, %v2394
        %2396 = vmatmul.bf16.gmra.mxu0 %v2304
        %v2397 = vpop.f32.mrf.mxu0
        %v2398 = vadd.f32 0.0, %v2397
        %v2399 = vpop.f32.mrf.mxu0
        %v2400 = vadd.f32 0.0, %v2399
        %2401 = vmatmul.bf16.gmra.mxu0 %v2307
        %v2402 = vpop.f32.mrf.mxu0
        %v2403 = vadd.f32 0.0, %v2402
        %v2404 = vpop.f32.mrf.mxu0
        %v2405 = vadd.f32 0.0, %v2404
        %2406 = vdwg.mxu0
        %2407 = vmatpush.bf16.msra.mxu0 0
        %2408 = vmatpush.bf16.msra.mxu0 0
        %2409 = vmatpush.bf16.msra.mxu0 0
        %2410 = vmatpush.bf16.msra.mxu0 0
        %2411 = vmatpush.bf16.msra.mxu0 0
        %2412 = vmatpush.bf16.msra.mxu0 0
        %2413 = vmatpush.bf16.msra.mxu0 0
        %2414 = vmatpush.bf16.msra.mxu0 %v2313
        %2415 = vmatmul.bf16.gmra.mxu0 %v2262
        %v2416 = vpop.f32.mrf.mxu0
        %v2417 = vadd.f32 0.0, %v2416
        %v2418 = vpop.f32.mrf.mxu0
        %v2419 = vadd.f32 0.0, %v2418
        %2420 = vmatmul.bf16.gmra.mxu0 %v2265
        %v2421 = vpop.f32.mrf.mxu0
        %v2422 = vadd.f32 0.0, %v2421
        %v2423 = vpop.f32.mrf.mxu0
        %v2424 = vadd.f32 0.0, %v2423
        %2425 = vmatmul.bf16.gmra.mxu0 %v2268
        %v2426 = vpop.f32.mrf.mxu0
        %v2427 = vadd.f32 0.0, %v2426
        %v2428 = vpop.f32.mrf.mxu0
        %v2429 = vadd.f32 0.0, %v2428
        %2430 = vmatmul.bf16.gmra.mxu0 %v2271
        %v2431 = vpop.f32.mrf.mxu0
        %v2432 = vadd.f32 0.0, %v2431
        %v2433 = vpop.f32.mrf.mxu0
        %v2434 = vadd.f32 0.0, %v2433
        %2435 = vmatmul.bf16.gmra.mxu0 %v2274
        %v2436 = vpop.f32.mrf.mxu0
        %v2437 = vadd.f32 0.0, %v2436
        %v2438 = vpop.f32.mrf.mxu0
        %v2439 = vadd.f32 0.0, %v2438
        %2440 = vmatmul.bf16.gmra.mxu0 %v2277
        %v2441 = vpop.f32.mrf.mxu0
        %v2442 = vadd.f32 0.0, %v2441
        %v2443 = vpop.f32.mrf.mxu0
        %v2444 = vadd.f32 0.0, %v2443
        %2445 = vmatmul.bf16.gmra.mxu0 %v2280
        %v2446 = vpop.f32.mrf.mxu0
        %v2447 = vadd.f32 0.0, %v2446
        %v2448 = vpop.f32.mrf.mxu0
        %v2449 = vadd.f32 0.0, %v2448
        %2450 = vmatmul.bf16.gmra.mxu0 %v2283
        %v2451 = vpop.f32.mrf.mxu0
        %v2452 = vadd.f32 0.0, %v2451
        %v2453 = vpop.f32.mrf.mxu0
        %v2454 = vadd.f32 0.0, %v2453
        %2455 = vmatmul.bf16.gmra.mxu0 %v2286
        %v2456 = vpop.f32.mrf.mxu0
        %v2457 = vadd.f32 0.0, %v2456
        %v2458 = vpop.f32.mrf.mxu0
        %v2459 = vadd.f32 0.0, %v2458
        %2460 = vmatmul.bf16.gmra.mxu0 %v2289
        %v2461 = vpop.f32.mrf.mxu0
        %v2462 = vadd.f32 0.0, %v2461
        %v2463 = vpop.f32.mrf.mxu0
        %v2464 = vadd.f32 0.0, %v2463
        %2465 = vmatmul.bf16.gmra.mxu0 %v2292
        %v2466 = vpop.f32.mrf.mxu0
        %v2467 = vadd.f32 0.0, %v2466
        %v2468 = vpop.f32.mrf.mxu0
        %v2469 = vadd.f32 0.0, %v2468
        %2470 = vmatmul.bf16.gmra.mxu0 %v2295
        %v2471 = vpop.f32.mrf.mxu0
        %v2472 = vadd.f32 0.0, %v2471
        %v2473 = vpop.f32.mrf.mxu0
        %v2474 = vadd.f32 0.0, %v2473
        %2475 = vmatmul.bf16.gmra.mxu0 %v2298
        %v2476 = vpop.f32.mrf.mxu0
        %v2477 = vadd.f32 0.0, %v2476
        %v2478 = vpop.f32.mrf.mxu0
        %v2479 = vadd.f32 0.0, %v2478
        %2480 = vmatmul.bf16.gmra.mxu0 %v2301
        %v2481 = vpop.f32.mrf.mxu0
        %v2482 = vadd.f32 0.0, %v2481
        %v2483 = vpop.f32.mrf.mxu0
        %v2484 = vadd.f32 0.0, %v2483
        %2485 = vmatmul.bf16.gmra.mxu0 %v2304
        %v2486 = vpop.f32.mrf.mxu0
        %v2487 = vadd.f32 0.0, %v2486
        %v2488 = vpop.f32.mrf.mxu0
        %v2489 = vadd.f32 0.0, %v2488
        %2490 = vmatmul.bf16.gmra.mxu0 %v2307
        %v2491 = vpop.f32.mrf.mxu0
        %v2492 = vadd.f32 0.0, %v2491
        %v2493 = vpop.f32.mrf.mxu0
        %v2494 = vadd.f32 0.0, %v2493
        %2495 = vdwg.mxu0
        %2496 = vmatpush.bf16.msra.mxu0 0
        %2497 = vmatpush.bf16.msra.mxu0 0
        %2498 = vmatpush.bf16.msra.mxu0 0
        %2499 = vmatpush.bf16.msra.mxu0 0
        %2500 = vmatpush.bf16.msra.mxu0 0
        %2501 = vmatpush.bf16.msra.mxu0 0
        %2502 = vmatpush.bf16.msra.mxu0 0
        %2503 = vmatpush.bf16.msra.mxu0 %v2316
        %2504 = vmatmul.bf16.gmra.mxu0 %v2262
        %v2505 = vpop.f32.mrf.mxu0
        %v2506 = vadd.f32 0.0, %v2505
        %v2507 = vpop.f32.mrf.mxu0
        %v2508 = vadd.f32 0.0, %v2507
        %2509 = vmatmul.bf16.gmra.mxu0 %v2265
        %v2510 = vpop.f32.mrf.mxu0
        %v2511 = vadd.f32 0.0, %v2510
        %v2512 = vpop.f32.mrf.mxu0
        %v2513 = vadd.f32 0.0, %v2512
        %2514 = vmatmul.bf16.gmra.mxu0 %v2268
        %v2515 = vpop.f32.mrf.mxu0
        %v2516 = vadd.f32 0.0, %v2515
        %v2517 = vpop.f32.mrf.mxu0
        %v2518 = vadd.f32 0.0, %v2517
        %2519 = vmatmul.bf16.gmra.mxu0 %v2271
        %v2520 = vpop.f32.mrf.mxu0
        %v2521 = vadd.f32 0.0, %v2520
        %v2522 = vpop.f32.mrf.mxu0
        %v2523 = vadd.f32 0.0, %v2522
        %2524 = vmatmul.bf16.gmra.mxu0 %v2274
        %v2525 = vpop.f32.mrf.mxu0
        %v2526 = vadd.f32 0.0, %v2525
        %v2527 = vpop.f32.mrf.mxu0
        %v2528 = vadd.f32 0.0, %v2527
        %2529 = vmatmul.bf16.gmra.mxu0 %v2277
        %v2530 = vpop.f32.mrf.mxu0
        %v2531 = vadd.f32 0.0, %v2530
        %v2532 = vpop.f32.mrf.mxu0
        %v2533 = vadd.f32 0.0, %v2532
        %2534 = vmatmul.bf16.gmra.mxu0 %v2280
        %v2535 = vpop.f32.mrf.mxu0
        %v2536 = vadd.f32 0.0, %v2535
        %v2537 = vpop.f32.mrf.mxu0
        %v2538 = vadd.f32 0.0, %v2537
        %2539 = vmatmul.bf16.gmra.mxu0 %v2283
        %v2540 = vpop.f32.mrf.mxu0
        %v2541 = vadd.f32 0.0, %v2540
        %v2542 = vpop.f32.mrf.mxu0
        %v2543 = vadd.f32 0.0, %v2542
        %2544 = vmatmul.bf16.gmra.mxu0 %v2286
        %v2545 = vpop.f32.mrf.mxu0
        %v2546 = vadd.f32 0.0, %v2545
        %v2547 = vpop.f32.mrf.mxu0
        %v2548 = vadd.f32 0.0, %v2547
        %2549 = vmatmul.bf16.gmra.mxu0 %v2289
        %v2550 = vpop.f32.mrf.mxu0
        %v2551 = vadd.f32 0.0, %v2550
        %v2552 = vpop.f32.mrf.mxu0
        %v2553 = vadd.f32 0.0, %v2552
        %2554 = vmatmul.bf16.gmra.mxu0 %v2292
        %v2555 = vpop.f32.mrf.mxu0
        %v2556 = vadd.f32 0.0, %v2555
        %v2557 = vpop.f32.mrf.mxu0
        %v2558 = vadd.f32 0.0, %v2557
        %2559 = vmatmul.bf16.gmra.mxu0 %v2295
        %v2560 = vpop.f32.mrf.mxu0
        %v2561 = vadd.f32 0.0, %v2560
        %v2562 = vpop.f32.mrf.mxu0
        %v2563 = vadd.f32 0.0, %v2562
        %2564 = vmatmul.bf16.gmra.mxu0 %v2298
        %v2565 = vpop.f32.mrf.mxu0
        %v2566 = vadd.f32 0.0, %v2565
        %v2567 = vpop.f32.mrf.mxu0
        %v2568 = vadd.f32 0.0, %v2567
        %2569 = vmatmul.bf16.gmra.mxu0 %v2301
        %v2570 = vpop.f32.mrf.mxu0
        %v2571 = vadd.f32 0.0, %v2570
        %v2572 = vpop.f32.mrf.mxu0
        %v2573 = vadd.f32 0.0, %v2572
        %2574 = vmatmul.bf16.gmra.mxu0 %v2304
        %v2575 = vpop.f32.mrf.mxu0
        %v2576 = vadd.f32 0.0, %v2575
        %v2577 = vpop.f32.mrf.mxu0
        %v2578 = vadd.f32 0.0, %v2577
        %2579 = vmatmul.bf16.gmra.mxu0 %v2307
        %v2580 = vpop.f32.mrf.mxu0
        %v2581 = vadd.f32 0.0, %v2580
        %v2582 = vpop.f32.mrf.mxu0
        %v2583 = vadd.f32 0.0, %v2582
        %2584 = vdwg.mxu0
        %v2585 = vadd.f32 %v2034, %v2328
        %v2586 = vadd.f32 %v2035, %v2417
        %v2587 = vadd.f32 %v2036, %v2506
        %v2588 = vadd.f32 %v2037, %v2330
        %v2589 = vadd.f32 %v2038, %v2419
        %v2590 = vadd.f32 %v2039, %v2508
        %v2591 = vadd.f32 %v2040, %v2333
        %v2592 = vadd.f32 %v2041, %v2422
        %v2593 = vadd.f32 %v2042, %v2511
        %v2594 = vadd.f32 %v2043, %v2335
        %v2595 = vadd.f32 %v2044, %v2424
        %v2596 = vadd.f32 %v2045, %v2513
        %v2597 = vadd.f32 %v2046, %v2338
        %v2598 = vadd.f32 %v2047, %v2427
        %v2599 = vadd.f32 %v2048, %v2516
        %v2600 = vadd.f32 %v2049, %v2340
        %v2601 = vadd.f32 %v2050, %v2429
        %v2602 = vadd.f32 %v2051, %v2518
        %v2603 = vadd.f32 %v2052, %v2343
        %v2604 = vadd.f32 %v2053, %v2432
        %v2605 = vadd.f32 %v2054, %v2521
        %v2606 = vadd.f32 %v2055, %v2345
        %v2607 = vadd.f32 %v2056, %v2434
        %v2608 = vadd.f32 %v2057, %v2523
        %v2609 = vadd.f32 %v2058, %v2348
        %v2610 = vadd.f32 %v2059, %v2437
        %v2611 = vadd.f32 %v2060, %v2526
        %v2612 = vadd.f32 %v2061, %v2350
        %v2613 = vadd.f32 %v2062, %v2439
        %v2614 = vadd.f32 %v2063, %v2528
        %v2615 = vadd.f32 %v2064, %v2353
        %v2616 = vadd.f32 %v2065, %v2442
        %v2617 = vadd.f32 %v2066, %v2531
        %v2618 = vadd.f32 %v2067, %v2355
        %v2619 = vadd.f32 %v2068, %v2444
        %v2620 = vadd.f32 %v2069, %v2533
        %v2621 = vadd.f32 %v2070, %v2358
        %v2622 = vadd.f32 %v2071, %v2447
        %v2623 = vadd.f32 %v2072, %v2536
        %v2624 = vadd.f32 %v2073, %v2360
        %v2625 = vadd.f32 %v2074, %v2449
        %v2626 = vadd.f32 %v2075, %v2538
        %v2627 = vadd.f32 %v2076, %v2363
        %v2628 = vadd.f32 %v2077, %v2452
        %v2629 = vadd.f32 %v2078, %v2541
        %v2630 = vadd.f32 %v2079, %v2365
        %v2631 = vadd.f32 %v2080, %v2454
        %v2632 = vadd.f32 %v2081, %v2543
        %v2633 = vadd.f32 %v2082, %v2368
        %v2634 = vadd.f32 %v2083, %v2457
        %v2635 = vadd.f32 %v2084, %v2546
        %v2636 = vadd.f32 %v2085, %v2370
        %v2637 = vadd.f32 %v2086, %v2459
        %v2638 = vadd.f32 %v2087, %v2548
        %v2639 = vadd.f32 %v2088, %v2373
        %v2640 = vadd.f32 %v2089, %v2462
        %v2641 = vadd.f32 %v2090, %v2551
        %v2642 = vadd.f32 %v2091, %v2375
        %v2643 = vadd.f32 %v2092, %v2464
        %v2644 = vadd.f32 %v2093, %v2553
        %v2645 = vadd.f32 %v2094, %v2378
        %v2646 = vadd.f32 %v2095, %v2467
        %v2647 = vadd.f32 %v2096, %v2556
        %v2648 = vadd.f32 %v2097, %v2380
        %v2649 = vadd.f32 %v2098, %v2469
        %v2650 = vadd.f32 %v2099, %v2558
        %v2651 = vadd.f32 %v2100, %v2383
        %v2652 = vadd.f32 %v2101, %v2472
        %v2653 = vadd.f32 %v2102, %v2561
        %v2654 = vadd.f32 %v2103, %v2385
        %v2655 = vadd.f32 %v2104, %v2474
        %v2656 = vadd.f32 %v2105, %v2563
        %v2657 = vadd.f32 %v2106, %v2388
        %v2658 = vadd.f32 %v2107, %v2477
        %v2659 = vadd.f32 %v2108, %v2566
        %v2660 = vadd.f32 %v2109, %v2390
        %v2661 = vadd.f32 %v2110, %v2479
        %v2662 = vadd.f32 %v2111, %v2568
        %v2663 = vadd.f32 %v2112, %v2393
        %v2664 = vadd.f32 %v2113, %v2482
        %v2665 = vadd.f32 %v2114, %v2571
        %v2666 = vadd.f32 %v2115, %v2395
        %v2667 = vadd.f32 %v2116, %v2484
        %v2668 = vadd.f32 %v2117, %v2573
        %v2669 = vadd.f32 %v2118, %v2398
        %v2670 = vadd.f32 %v2119, %v2487
        %v2671 = vadd.f32 %v2120, %v2576
        %v2672 = vadd.f32 %v2121, %v2400
        %v2673 = vadd.f32 %v2122, %v2489
        %v2674 = vadd.f32 %v2123, %v2578
        %v2675 = vadd.f32 %v2124, %v2403
        %v2676 = vadd.f32 %v2125, %v2492
        %v2677 = vadd.f32 %v2126, %v2581
        %v2678 = vadd.f32 %v2127, %v2405
        %v2679 = vadd.f32 %v2128, %v2494
        %v2680 = vadd.f32 %v2129, %v2583
        %v2681 = vld [vmem:[%s288] sm:$0x3f]
        %s2682 = scalar_lea.vmem %s292, 512
        %v2683 = vld [vmem:[%s2682] sm:$0xf]
        %v2684 = vld [vmem:[%s2682 + $0x4] sm:$0xf]
        %v2685 = vld [vmem:[%s2682 + $0x8] sm:$0xf]
        %v2686 = vld [vmem:[%s2682 + $0xc] sm:$0xf]
        %v2687 = vld [vmem:[%s2682 + $0x10] sm:$0xf]
        %v2688 = vld [vmem:[%s2682 + $0x14] sm:$0xf]
        %v2689 = vld [vmem:[%s2682 + $0x18] sm:$0xf]
        %v2690 = vld [vmem:[%s2682 + $0x1c] sm:$0xf]
        %v2691 = vld [vmem:[%s2682 + $0x20] sm:$0xf]
        %v2692 = vld [vmem:[%s2682 + $0x24] sm:$0xf]
        %v2693 = vld [vmem:[%s2682 + $0x28] sm:$0xf]
        %v2694 = vld [vmem:[%s2682 + $0x2c] sm:$0xf]
        %v2695 = vld [vmem:[%s2682 + $0x30] sm:$0xf]
        %v2696 = vld [vmem:[%s2682 + $0x34] sm:$0xf]
        %v2697 = vld [vmem:[%s2682 + $0x38] sm:$0xf]
        %v2698 = vld [vmem:[%s2682 + $0x3c] sm:$0xf]
        %v2699 = vld [vmem:[%s2682 + $0x40] sm:$0xf]
        %v2700 = vld [vmem:[%s2682 + $0x44] sm:$0xf]
        %v2701 = vld [vmem:[%s2682 + $0x48] sm:$0xf]
        %v2702 = vld [vmem:[%s2682 + $0x4c] sm:$0xf]
        %v2703 = vld [vmem:[%s2682 + $0x50] sm:$0xf]
        %v2704 = vld [vmem:[%s2682 + $0x54] sm:$0xf]
        %v2705 = vld [vmem:[%s2682 + $0x58] sm:$0xf]
        %v2706 = vld [vmem:[%s2682 + $0x5c] sm:$0xf]
        %v2707 = vld [vmem:[%s2682 + $0x60] sm:$0xf]
        %v2708 = vld [vmem:[%s2682 + $0x64] sm:$0xf]
        %v2709 = vld [vmem:[%s2682 + $0x68] sm:$0xf]
        %v2710 = vld [vmem:[%s2682 + $0x6c] sm:$0xf]
        %v2711 = vld [vmem:[%s2682 + $0x70] sm:$0xf]
        %v2712 = vld [vmem:[%s2682 + $0x74] sm:$0xf]
        %v2713 = vld [vmem:[%s2682 + $0x78] sm:$0xf]
        %v2714 = vld [vmem:[%s2682 + $0x7c] sm:$0xf]
        %v2747 = vunpack.c.l.b16 %v2683
        %v2748 = vunpack.c.l.b16 %v2684
        %v2749 = vunpack.c.l.b16 %v2685
        %v2750 = vunpack.c.l.b16 %v2686
        %v2751 = vunpack.c.l.b16 %v2687
        %v2752 = vunpack.c.l.b16 %v2688
        %v2753 = vunpack.c.l.b16 %v2689
        %v2754 = vunpack.c.l.b16 %v2690
        %v2755 = vunpack.c.l.b16 %v2691
        %v2756 = vunpack.c.l.b16 %v2692
        %v2757 = vunpack.c.l.b16 %v2693
        %v2758 = vunpack.c.l.b16 %v2694
        %v2759 = vunpack.c.l.b16 %v2695
        %v2760 = vunpack.c.l.b16 %v2696
        %v2761 = vunpack.c.l.b16 %v2697
        %v2762 = vunpack.c.l.b16 %v2698
        %v2763 = vunpack.c.l.b16 %v2699
        %v2764 = vunpack.c.l.b16 %v2700
        %v2765 = vunpack.c.l.b16 %v2701
        %v2766 = vunpack.c.l.b16 %v2702
        %v2767 = vunpack.c.l.b16 %v2703
        %v2768 = vunpack.c.l.b16 %v2704
        %v2769 = vunpack.c.l.b16 %v2705
        %v2770 = vunpack.c.l.b16 %v2706
        %v2771 = vunpack.c.l.b16 %v2707
        %v2772 = vunpack.c.l.b16 %v2708
        %v2773 = vunpack.c.l.b16 %v2709
        %v2774 = vunpack.c.l.b16 %v2710
        %v2775 = vunpack.c.l.b16 %v2711
        %v2776 = vunpack.c.l.b16 %v2712
        %v2777 = vunpack.c.l.b16 %v2713
        %v2778 = vunpack.c.l.b16 %v2714
        %v2779 = vpack.c.b16 %v2748, %v2747
        %v2780 = vpack.c.b16 %v2750, %v2749
        %v2781 = vpack.c.b16 %v2752, %v2751
        %v2782 = vpack.c.b16 %v2754, %v2753
        %v2783 = vpack.c.b16 %v2756, %v2755
        %v2784 = vpack.c.b16 %v2758, %v2757
        %v2785 = vpack.c.b16 %v2760, %v2759
        %v2786 = vpack.c.b16 %v2762, %v2761
        %v2787 = vpack.c.b16 %v2764, %v2763
        %v2788 = vpack.c.b16 %v2766, %v2765
        %v2789 = vpack.c.b16 %v2768, %v2767
        %v2790 = vpack.c.b16 %v2770, %v2769
        %v2791 = vpack.c.b16 %v2772, %v2771
        %v2792 = vpack.c.b16 %v2774, %v2773
        %v2793 = vpack.c.b16 %v2776, %v2775
        %v2794 = vpack.c.b16 %v2778, %v2777
        %2796 = vst [vmem:[#allocation1] ss:$4 sm:$0xff] %v2681
        %v2797 = vld.sshfl [vmem:[#allocation1] sm:$0xff pattern:$0x73625140]
        %v2799 = vld.sshfl [vmem:[#allocation1 + $0x8] sm:$0xff pattern:$0x73625140]
        %v2801 = vld.sshfl [vmem:[#allocation1 + $0x10] sm:$0xff pattern:$0x73625140]
        %2803 = vrot.lane.b32.xlu0 %v2797, 109
        %v2804 = vpop.permute.xlu0 %2803
        %2805 = vrot.lane.b32.xlu0 %v2799, 109
        %v2806 = vpop.permute.xlu0 %2805
        %2807 = vrot.lane.b32.xlu0 %v2801, 109
        %v2808 = vpop.permute.xlu0 %2807
        %vm2809 = vcmask 891904
        %v2810 = vsel %vm2809, %v2804, %v2806
        %v2811 = vsel %vm2809, %v2806, %v2808
        %v2813 = vsel %vm609, %v2779, 0
        %v2816 = vsel %vm609, %v2780, 0
        %v2819 = vsel %vm609, %v2781, 0
        %v2822 = vsel %vm609, %v2782, 0
        %v2825 = vsel %vm609, %v2783, 0
        %v2828 = vsel %vm609, %v2784, 0
        %v2831 = vsel %vm609, %v2785, 0
        %v2834 = vsel %vm609, %v2786, 0
        %v2837 = vsel %vm609, %v2787, 0
        %v2840 = vsel %vm609, %v2788, 0
        %v2843 = vsel %vm609, %v2789, 0
        %v2846 = vsel %vm609, %v2790, 0
        %v2849 = vsel %vm609, %v2791, 0
        %v2852 = vsel %vm609, %v2792, 0
        %v2855 = vsel %vm609, %v2793, 0
        %v2858 = vsel %vm609, %v2794, 0
        %v2861 = vsel %vm658, %v2810, 0
        %v2864 = vsel %vm658, %v2811, 0
        %v2867 = vsel %vm658, %v2808, 0
        %2869 = vmatpush.bf16.msra.mxu0 0
        %2870 = vmatpush.bf16.msra.mxu0 0
        %2871 = vmatpush.bf16.msra.mxu0 0
        %2872 = vmatpush.bf16.msra.mxu0 0
        %2873 = vmatpush.bf16.msra.mxu0 0
        %2874 = vmatpush.bf16.msra.mxu0 0
        %2875 = vmatpush.bf16.msra.mxu0 0
        %2876 = vmatpush.bf16.msra.mxu0 %v2861
        %2877 = vmatmul.bf16.gmra.mxu0 %v2813
        %v2878 = vpop.f32.mrf.mxu0
        %v2879 = vadd.f32 0.0, %v2878
        %v2880 = vpop.f32.mrf.mxu0
        %v2881 = vadd.f32 0.0, %v2880
        %2882 = vmatmul.bf16.gmra.mxu0 %v2816
        %v2883 = vpop.f32.mrf.mxu0
        %v2884 = vadd.f32 0.0, %v2883
        %v2885 = vpop.f32.mrf.mxu0
        %v2886 = vadd.f32 0.0, %v2885
        %2887 = vmatmul.bf16.gmra.mxu0 %v2819
        %v2888 = vpop.f32.mrf.mxu0
        %v2889 = vadd.f32 0.0, %v2888
        %v2890 = vpop.f32.mrf.mxu0
        %v2891 = vadd.f32 0.0, %v2890
        %2892 = vmatmul.bf16.gmra.mxu0 %v2822
        %v2893 = vpop.f32.mrf.mxu0
        %v2894 = vadd.f32 0.0, %v2893
        %v2895 = vpop.f32.mrf.mxu0
        %v2896 = vadd.f32 0.0, %v2895
        %2897 = vmatmul.bf16.gmra.mxu0 %v2825
        %v2898 = vpop.f32.mrf.mxu0
        %v2899 = vadd.f32 0.0, %v2898
        %v2900 = vpop.f32.mrf.mxu0
        %v2901 = vadd.f32 0.0, %v2900
        %2902 = vmatmul.bf16.gmra.mxu0 %v2828
        %v2903 = vpop.f32.mrf.mxu0
        %v2904 = vadd.f32 0.0, %v2903
        %v2905 = vpop.f32.mrf.mxu0
        %v2906 = vadd.f32 0.0, %v2905
        %2907 = vmatmul.bf16.gmra.mxu0 %v2831
        %v2908 = vpop.f32.mrf.mxu0
        %v2909 = vadd.f32 0.0, %v2908
        %v2910 = vpop.f32.mrf.mxu0
        %v2911 = vadd.f32 0.0, %v2910
        %2912 = vmatmul.bf16.gmra.mxu0 %v2834
        %v2913 = vpop.f32.mrf.mxu0
        %v2914 = vadd.f32 0.0, %v2913
        %v2915 = vpop.f32.mrf.mxu0
        %v2916 = vadd.f32 0.0, %v2915
        %2917 = vmatmul.bf16.gmra.mxu0 %v2837
        %v2918 = vpop.f32.mrf.mxu0
        %v2919 = vadd.f32 0.0, %v2918
        %v2920 = vpop.f32.mrf.mxu0
        %v2921 = vadd.f32 0.0, %v2920
        %2922 = vmatmul.bf16.gmra.mxu0 %v2840
        %v2923 = vpop.f32.mrf.mxu0
        %v2924 = vadd.f32 0.0, %v2923
        %v2925 = vpop.f32.mrf.mxu0
        %v2926 = vadd.f32 0.0, %v2925
        %2927 = vmatmul.bf16.gmra.mxu0 %v2843
        %v2928 = vpop.f32.mrf.mxu0
        %v2929 = vadd.f32 0.0, %v2928
        %v2930 = vpop.f32.mrf.mxu0
        %v2931 = vadd.f32 0.0, %v2930
        %2932 = vmatmul.bf16.gmra.mxu0 %v2846
        %v2933 = vpop.f32.mrf.mxu0
        %v2934 = vadd.f32 0.0, %v2933
        %v2935 = vpop.f32.mrf.mxu0
        %v2936 = vadd.f32 0.0, %v2935
        %2937 = vmatmul.bf16.gmra.mxu0 %v2849
        %v2938 = vpop.f32.mrf.mxu0
        %v2939 = vadd.f32 0.0, %v2938
        %v2940 = vpop.f32.mrf.mxu0
        %v2941 = vadd.f32 0.0, %v2940
        %2942 = vmatmul.bf16.gmra.mxu0 %v2852
        %v2943 = vpop.f32.mrf.mxu0
        %v2944 = vadd.f32 0.0, %v2943
        %v2945 = vpop.f32.mrf.mxu0
        %v2946 = vadd.f32 0.0, %v2945
        %2947 = vmatmul.bf16.gmra.mxu0 %v2855
        %v2948 = vpop.f32.mrf.mxu0
        %v2949 = vadd.f32 0.0, %v2948
        %v2950 = vpop.f32.mrf.mxu0
        %v2951 = vadd.f32 0.0, %v2950
        %2952 = vmatmul.bf16.gmra.mxu0 %v2858
        %v2953 = vpop.f32.mrf.mxu0
        %v2954 = vadd.f32 0.0, %v2953
        %v2955 = vpop.f32.mrf.mxu0
        %v2956 = vadd.f32 0.0, %v2955
        %2957 = vdwg.mxu0
        %2958 = vmatpush.bf16.msra.mxu0 0
        %2959 = vmatpush.bf16.msra.mxu0 0
        %2960 = vmatpush.bf16.msra.mxu0 0
        %2961 = vmatpush.bf16.msra.mxu0 0
        %2962 = vmatpush.bf16.msra.mxu0 0
        %2963 = vmatpush.bf16.msra.mxu0 0
        %2964 = vmatpush.bf16.msra.mxu0 0
        %2965 = vmatpush.bf16.msra.mxu0 %v2864
        %2966 = vmatmul.bf16.gmra.mxu0 %v2813
        %v2967 = vpop.f32.mrf.mxu0
        %v2968 = vadd.f32 0.0, %v2967
        %v2969 = vpop.f32.mrf.mxu0
        %v2970 = vadd.f32 0.0, %v2969
        %2971 = vmatmul.bf16.gmra.mxu0 %v2816
        %v2972 = vpop.f32.mrf.mxu0
        %v2973 = vadd.f32 0.0, %v2972
        %v2974 = vpop.f32.mrf.mxu0
        %v2975 = vadd.f32 0.0, %v2974
        %2976 = vmatmul.bf16.gmra.mxu0 %v2819
        %v2977 = vpop.f32.mrf.mxu0
        %v2978 = vadd.f32 0.0, %v2977
        %v2979 = vpop.f32.mrf.mxu0
        %v2980 = vadd.f32 0.0, %v2979
        %2981 = vmatmul.bf16.gmra.mxu0 %v2822
        %v2982 = vpop.f32.mrf.mxu0
        %v2983 = vadd.f32 0.0, %v2982
        %v2984 = vpop.f32.mrf.mxu0
        %v2985 = vadd.f32 0.0, %v2984
        %2986 = vmatmul.bf16.gmra.mxu0 %v2825
        %v2987 = vpop.f32.mrf.mxu0
        %v2988 = vadd.f32 0.0, %v2987
        %v2989 = vpop.f32.mrf.mxu0
        %v2990 = vadd.f32 0.0, %v2989
        %2991 = vmatmul.bf16.gmra.mxu0 %v2828
        %v2992 = vpop.f32.mrf.mxu0
        %v2993 = vadd.f32 0.0, %v2992
        %v2994 = vpop.f32.mrf.mxu0
        %v2995 = vadd.f32 0.0, %v2994
        %2996 = vmatmul.bf16.gmra.mxu0 %v2831
        %v2997 = vpop.f32.mrf.mxu0
        %v2998 = vadd.f32 0.0, %v2997
        %v2999 = vpop.f32.mrf.mxu0
        %v3000 = vadd.f32 0.0, %v2999
        %3001 = vmatmul.bf16.gmra.mxu0 %v2834
        %v3002 = vpop.f32.mrf.mxu0
        %v3003 = vadd.f32 0.0, %v3002
        %v3004 = vpop.f32.mrf.mxu0
        %v3005 = vadd.f32 0.0, %v3004
        %3006 = vmatmul.bf16.gmra.mxu0 %v2837
        %v3007 = vpop.f32.mrf.mxu0
        %v3008 = vadd.f32 0.0, %v3007
        %v3009 = vpop.f32.mrf.mxu0
        %v3010 = vadd.f32 0.0, %v3009
        %3011 = vmatmul.bf16.gmra.mxu0 %v2840
        %v3012 = vpop.f32.mrf.mxu0
        %v3013 = vadd.f32 0.0, %v3012
        %v3014 = vpop.f32.mrf.mxu0
        %v3015 = vadd.f32 0.0, %v3014
        %3016 = vmatmul.bf16.gmra.mxu0 %v2843
        %v3017 = vpop.f32.mrf.mxu0
        %v3018 = vadd.f32 0.0, %v3017
        %v3019 = vpop.f32.mrf.mxu0
        %v3020 = vadd.f32 0.0, %v3019
        %3021 = vmatmul.bf16.gmra.mxu0 %v2846
        %v3022 = vpop.f32.mrf.mxu0
        %v3023 = vadd.f32 0.0, %v3022
        %v3024 = vpop.f32.mrf.mxu0
        %v3025 = vadd.f32 0.0, %v3024
        %3026 = vmatmul.bf16.gmra.mxu0 %v2849
        %v3027 = vpop.f32.mrf.mxu0
        %v3028 = vadd.f32 0.0, %v3027
        %v3029 = vpop.f32.mrf.mxu0
        %v3030 = vadd.f32 0.0, %v3029
        %3031 = vmatmul.bf16.gmra.mxu0 %v2852
        %v3032 = vpop.f32.mrf.mxu0
        %v3033 = vadd.f32 0.0, %v3032
        %v3034 = vpop.f32.mrf.mxu0
        %v3035 = vadd.f32 0.0, %v3034
        %3036 = vmatmul.bf16.gmra.mxu0 %v2855
        %v3037 = vpop.f32.mrf.mxu0
        %v3038 = vadd.f32 0.0, %v3037
        %v3039 = vpop.f32.mrf.mxu0
        %v3040 = vadd.f32 0.0, %v3039
        %3041 = vmatmul.bf16.gmra.mxu0 %v2858
        %v3042 = vpop.f32.mrf.mxu0
        %v3043 = vadd.f32 0.0, %v3042
        %v3044 = vpop.f32.mrf.mxu0
        %v3045 = vadd.f32 0.0, %v3044
        %3046 = vdwg.mxu0
        %3047 = vmatpush.bf16.msra.mxu0 0
        %3048 = vmatpush.bf16.msra.mxu0 0
        %3049 = vmatpush.bf16.msra.mxu0 0
        %3050 = vmatpush.bf16.msra.mxu0 0
        %3051 = vmatpush.bf16.msra.mxu0 0
        %3052 = vmatpush.bf16.msra.mxu0 0
        %3053 = vmatpush.bf16.msra.mxu0 0
        %3054 = vmatpush.bf16.msra.mxu0 %v2867
        %3055 = vmatmul.bf16.gmra.mxu0 %v2813
        %v3056 = vpop.f32.mrf.mxu0
        %v3057 = vadd.f32 0.0, %v3056
        %v3058 = vpop.f32.mrf.mxu0
        %v3059 = vadd.f32 0.0, %v3058
        %3060 = vmatmul.bf16.gmra.mxu0 %v2816
        %v3061 = vpop.f32.mrf.mxu0
        %v3062 = vadd.f32 0.0, %v3061
        %v3063 = vpop.f32.mrf.mxu0
        %v3064 = vadd.f32 0.0, %v3063
        %3065 = vmatmul.bf16.gmra.mxu0 %v2819
        %v3066 = vpop.f32.mrf.mxu0
        %v3067 = vadd.f32 0.0, %v3066
        %v3068 = vpop.f32.mrf.mxu0
        %v3069 = vadd.f32 0.0, %v3068
        %3070 = vmatmul.bf16.gmra.mxu0 %v2822
        %v3071 = vpop.f32.mrf.mxu0
        %v3072 = vadd.f32 0.0, %v3071
        %v3073 = vpop.f32.mrf.mxu0
        %v3074 = vadd.f32 0.0, %v3073
        %3075 = vmatmul.bf16.gmra.mxu0 %v2825
        %v3076 = vpop.f32.mrf.mxu0
        %v3077 = vadd.f32 0.0, %v3076
        %v3078 = vpop.f32.mrf.mxu0
        %v3079 = vadd.f32 0.0, %v3078
        %3080 = vmatmul.bf16.gmra.mxu0 %v2828
        %v3081 = vpop.f32.mrf.mxu0
        %v3082 = vadd.f32 0.0, %v3081
        %v3083 = vpop.f32.mrf.mxu0
        %v3084 = vadd.f32 0.0, %v3083
        %3085 = vmatmul.bf16.gmra.mxu0 %v2831
        %v3086 = vpop.f32.mrf.mxu0
        %v3087 = vadd.f32 0.0, %v3086
        %v3088 = vpop.f32.mrf.mxu0
        %v3089 = vadd.f32 0.0, %v3088
        %3090 = vmatmul.bf16.gmra.mxu0 %v2834
        %v3091 = vpop.f32.mrf.mxu0
        %v3092 = vadd.f32 0.0, %v3091
        %v3093 = vpop.f32.mrf.mxu0
        %v3094 = vadd.f32 0.0, %v3093
        %3095 = vmatmul.bf16.gmra.mxu0 %v2837
        %v3096 = vpop.f32.mrf.mxu0
        %v3097 = vadd.f32 0.0, %v3096
        %v3098 = vpop.f32.mrf.mxu0
        %v3099 = vadd.f32 0.0, %v3098
        %3100 = vmatmul.bf16.gmra.mxu0 %v2840
        %v3101 = vpop.f32.mrf.mxu0
        %v3102 = vadd.f32 0.0, %v3101
        %v3103 = vpop.f32.mrf.mxu0
        %v3104 = vadd.f32 0.0, %v3103
        %3105 = vmatmul.bf16.gmra.mxu0 %v2843
        %v3106 = vpop.f32.mrf.mxu0
        %v3107 = vadd.f32 0.0, %v3106
        %v3108 = vpop.f32.mrf.mxu0
        %v3109 = vadd.f32 0.0, %v3108
        %3110 = vmatmul.bf16.gmra.mxu0 %v2846
        %v3111 = vpop.f32.mrf.mxu0
        %v3112 = vadd.f32 0.0, %v3111
        %v3113 = vpop.f32.mrf.mxu0
        %v3114 = vadd.f32 0.0, %v3113
        %3115 = vmatmul.bf16.gmra.mxu0 %v2849
        %v3116 = vpop.f32.mrf.mxu0
        %v3117 = vadd.f32 0.0, %v3116
        %v3118 = vpop.f32.mrf.mxu0
        %v3119 = vadd.f32 0.0, %v3118
        %3120 = vmatmul.bf16.gmra.mxu0 %v2852
        %v3121 = vpop.f32.mrf.mxu0
        %v3122 = vadd.f32 0.0, %v3121
        %v3123 = vpop.f32.mrf.mxu0
        %v3124 = vadd.f32 0.0, %v3123
        %3125 = vmatmul.bf16.gmra.mxu0 %v2855
        %v3126 = vpop.f32.mrf.mxu0
        %v3127 = vadd.f32 0.0, %v3126
        %v3128 = vpop.f32.mrf.mxu0
        %v3129 = vadd.f32 0.0, %v3128
        %3130 = vmatmul.bf16.gmra.mxu0 %v2858
        %v3131 = vpop.f32.mrf.mxu0
        %v3132 = vadd.f32 0.0, %v3131
        %v3133 = vpop.f32.mrf.mxu0
        %v3134 = vadd.f32 0.0, %v3133
        %3135 = vdwg.mxu0
        %v3136 = vadd.f32 %v2585, %v2879
        %v3137 = vadd.f32 %v2586, %v2968
        %v3138 = vadd.f32 %v2587, %v3057
        %v3139 = vadd.f32 %v2588, %v2881
        %v3140 = vadd.f32 %v2589, %v2970
        %v3141 = vadd.f32 %v2590, %v3059
        %v3142 = vadd.f32 %v2591, %v2884
        %v3143 = vadd.f32 %v2592, %v2973
        %v3144 = vadd.f32 %v2593, %v3062
        %v3145 = vadd.f32 %v2594, %v2886
        %v3146 = vadd.f32 %v2595, %v2975
        %v3147 = vadd.f32 %v2596, %v3064
        %v3148 = vadd.f32 %v2597, %v2889
        %v3149 = vadd.f32 %v2598, %v2978
        %v3150 = vadd.f32 %v2599, %v3067
        %v3151 = vadd.f32 %v2600, %v2891
        %v3152 = vadd.f32 %v2601, %v2980
        %v3153 = vadd.f32 %v2602, %v3069
        %v3154 = vadd.f32 %v2603, %v2894
        %v3155 = vadd.f32 %v2604, %v2983
        %v3156 = vadd.f32 %v2605, %v3072
        %v3157 = vadd.f32 %v2606, %v2896
        %v3158 = vadd.f32 %v2607, %v2985
        %v3159 = vadd.f32 %v2608, %v3074
        %v3160 = vadd.f32 %v2609, %v2899
        %v3161 = vadd.f32 %v2610, %v2988
        %v3162 = vadd.f32 %v2611, %v3077
        %v3163 = vadd.f32 %v2612, %v2901
        %v3164 = vadd.f32 %v2613, %v2990
        %v3165 = vadd.f32 %v2614, %v3079
        %v3166 = vadd.f32 %v2615, %v2904
        %v3167 = vadd.f32 %v2616, %v2993
        %v3168 = vadd.f32 %v2617, %v3082
        %v3169 = vadd.f32 %v2618, %v2906
        %v3170 = vadd.f32 %v2619, %v2995
        %v3171 = vadd.f32 %v2620, %v3084
        %v3172 = vadd.f32 %v2621, %v2909
        %v3173 = vadd.f32 %v2622, %v2998
        %v3174 = vadd.f32 %v2623, %v3087
        %v3175 = vadd.f32 %v2624, %v2911
        %v3176 = vadd.f32 %v2625, %v3000
        %v3177 = vadd.f32 %v2626, %v3089
        %v3178 = vadd.f32 %v2627, %v2914
        %v3179 = vadd.f32 %v2628, %v3003
        %v3180 = vadd.f32 %v2629, %v3092
        %v3181 = vadd.f32 %v2630, %v2916
        %v3182 = vadd.f32 %v2631, %v3005
        %v3183 = vadd.f32 %v2632, %v3094
        %v3184 = vadd.f32 %v2633, %v2919
        %v3185 = vadd.f32 %v2634, %v3008
        %v3186 = vadd.f32 %v2635, %v3097
        %v3187 = vadd.f32 %v2636, %v2921
        %v3188 = vadd.f32 %v2637, %v3010
        %v3189 = vadd.f32 %v2638, %v3099
        %v3190 = vadd.f32 %v2639, %v2924
        %v3191 = vadd.f32 %v2640, %v3013
        %v3192 = vadd.f32 %v2641, %v3102
        %v3193 = vadd.f32 %v2642, %v2926
        %v3194 = vadd.f32 %v2643, %v3015
        %v3195 = vadd.f32 %v2644, %v3104
        %v3196 = vadd.f32 %v2645, %v2929
        %v3197 = vadd.f32 %v2646, %v3018
        %v3198 = vadd.f32 %v2647, %v3107
        %v3199 = vadd.f32 %v2648, %v2931
        %v3200 = vadd.f32 %v2649, %v3020
        %v3201 = vadd.f32 %v2650, %v3109
        %v3202 = vadd.f32 %v2651, %v2934
        %v3203 = vadd.f32 %v2652, %v3023
        %v3204 = vadd.f32 %v2653, %v3112
        %v3205 = vadd.f32 %v2654, %v2936
        %v3206 = vadd.f32 %v2655, %v3025
        %v3207 = vadd.f32 %v2656, %v3114
        %v3208 = vadd.f32 %v2657, %v2939
        %v3209 = vadd.f32 %v2658, %v3028
        %v3210 = vadd.f32 %v2659, %v3117
        %v3211 = vadd.f32 %v2660, %v2941
        %v3212 = vadd.f32 %v2661, %v3030
        %v3213 = vadd.f32 %v2662, %v3119
        %v3214 = vadd.f32 %v2663, %v2944
        %v3215 = vadd.f32 %v2664, %v3033
        %v3216 = vadd.f32 %v2665, %v3122
        %v3217 = vadd.f32 %v2666, %v2946
        %v3218 = vadd.f32 %v2667, %v3035
        %v3219 = vadd.f32 %v2668, %v3124
        %v3220 = vadd.f32 %v2669, %v2949
        %v3221 = vadd.f32 %v2670, %v3038
        %v3222 = vadd.f32 %v2671, %v3127
        %v3223 = vadd.f32 %v2672, %v2951
        %v3224 = vadd.f32 %v2673, %v3040
        %v3225 = vadd.f32 %v2674, %v3129
        %v3226 = vadd.f32 %v2675, %v2954
        %v3227 = vadd.f32 %v2676, %v3043
        %v3228 = vadd.f32 %v2677, %v3132
        %v3229 = vadd.f32 %v2678, %v2956
        %v3230 = vadd.f32 %v2679, %v3045
        %v3231 = vadd.f32 %v2680, %v3134
        %v3232 = vld [vmem:[%s288] sm:$0x3f]
        %s3233 = scalar_lea.vmem %s292, 640
        %v3234 = vld [vmem:[%s3233] sm:$0xf]
        %v3235 = vld [vmem:[%s3233 + $0x4] sm:$0xf]
        %v3236 = vld [vmem:[%s3233 + $0x8] sm:$0xf]
        %v3237 = vld [vmem:[%s3233 + $0xc] sm:$0xf]
        %v3238 = vld [vmem:[%s3233 + $0x10] sm:$0xf]
        %v3239 = vld [vmem:[%s3233 + $0x14] sm:$0xf]
        %v3240 = vld [vmem:[%s3233 + $0x18] sm:$0xf]
        %v3241 = vld [vmem:[%s3233 + $0x1c] sm:$0xf]
        %v3242 = vld [vmem:[%s3233 + $0x20] sm:$0xf]
        %v3243 = vld [vmem:[%s3233 + $0x24] sm:$0xf]
        %v3244 = vld [vmem:[%s3233 + $0x28] sm:$0xf]
        %v3245 = vld [vmem:[%s3233 + $0x2c] sm:$0xf]
        %v3246 = vld [vmem:[%s3233 + $0x30] sm:$0xf]
        %v3247 = vld [vmem:[%s3233 + $0x34] sm:$0xf]
        %v3248 = vld [vmem:[%s3233 + $0x38] sm:$0xf]
        %v3249 = vld [vmem:[%s3233 + $0x3c] sm:$0xf]
        %v3250 = vld [vmem:[%s3233 + $0x40] sm:$0xf]
        %v3251 = vld [vmem:[%s3233 + $0x44] sm:$0xf]
        %v3252 = vld [vmem:[%s3233 + $0x48] sm:$0xf]
        %v3253 = vld [vmem:[%s3233 + $0x4c] sm:$0xf]
        %v3254 = vld [vmem:[%s3233 + $0x50] sm:$0xf]
        %v3255 = vld [vmem:[%s3233 + $0x54] sm:$0xf]
        %v3256 = vld [vmem:[%s3233 + $0x58] sm:$0xf]
        %v3257 = vld [vmem:[%s3233 + $0x5c] sm:$0xf]
        %v3258 = vld [vmem:[%s3233 + $0x60] sm:$0xf]
        %v3259 = vld [vmem:[%s3233 + $0x64] sm:$0xf]
        %v3260 = vld [vmem:[%s3233 + $0x68] sm:$0xf]
        %v3261 = vld [vmem:[%s3233 + $0x6c] sm:$0xf]
        %v3262 = vld [vmem:[%s3233 + $0x70] sm:$0xf]
        %v3263 = vld [vmem:[%s3233 + $0x74] sm:$0xf]
        %v3264 = vld [vmem:[%s3233 + $0x78] sm:$0xf]
        %v3265 = vld [vmem:[%s3233 + $0x7c] sm:$0xf]
        %v3298 = vunpack.c.l.b16 %v3234
        %v3299 = vunpack.c.l.b16 %v3235
        %v3300 = vunpack.c.l.b16 %v3236
        %v3301 = vunpack.c.l.b16 %v3237
        %v3302 = vunpack.c.l.b16 %v3238
        %v3303 = vunpack.c.l.b16 %v3239
        %v3304 = vunpack.c.l.b16 %v3240
        %v3305 = vunpack.c.l.b16 %v3241
        %v3306 = vunpack.c.l.b16 %v3242
        %v3307 = vunpack.c.l.b16 %v3243
        %v3308 = vunpack.c.l.b16 %v3244
        %v3309 = vunpack.c.l.b16 %v3245
        %v3310 = vunpack.c.l.b16 %v3246
        %v3311 = vunpack.c.l.b16 %v3247
        %v3312 = vunpack.c.l.b16 %v3248
        %v3313 = vunpack.c.l.b16 %v3249
        %v3314 = vunpack.c.l.b16 %v3250
        %v3315 = vunpack.c.l.b16 %v3251
        %v3316 = vunpack.c.l.b16 %v3252
        %v3317 = vunpack.c.l.b16 %v3253
        %v3318 = vunpack.c.l.b16 %v3254
        %v3319 = vunpack.c.l.b16 %v3255
        %v3320 = vunpack.c.l.b16 %v3256
        %v3321 = vunpack.c.l.b16 %v3257
        %v3322 = vunpack.c.l.b16 %v3258
        %v3323 = vunpack.c.l.b16 %v3259
        %v3324 = vunpack.c.l.b16 %v3260
        %v3325 = vunpack.c.l.b16 %v3261
        %v3326 = vunpack.c.l.b16 %v3262
        %v3327 = vunpack.c.l.b16 %v3263
        %v3328 = vunpack.c.l.b16 %v3264
        %v3329 = vunpack.c.l.b16 %v3265
        %v3330 = vpack.c.b16 %v3299, %v3298
        %v3331 = vpack.c.b16 %v3301, %v3300
        %v3332 = vpack.c.b16 %v3303, %v3302
        %v3333 = vpack.c.b16 %v3305, %v3304
        %v3334 = vpack.c.b16 %v3307, %v3306
        %v3335 = vpack.c.b16 %v3309, %v3308
        %v3336 = vpack.c.b16 %v3311, %v3310
        %v3337 = vpack.c.b16 %v3313, %v3312
        %v3338 = vpack.c.b16 %v3315, %v3314
        %v3339 = vpack.c.b16 %v3317, %v3316
        %v3340 = vpack.c.b16 %v3319, %v3318
        %v3341 = vpack.c.b16 %v3321, %v3320
        %v3342 = vpack.c.b16 %v3323, %v3322
        %v3343 = vpack.c.b16 %v3325, %v3324
        %v3344 = vpack.c.b16 %v3327, %v3326
        %v3345 = vpack.c.b16 %v3329, %v3328
        %3347 = vst [vmem:[#allocation1] ss:$4 sm:$0xff] %v3232
        %v3348 = vld.sshfl [vmem:[#allocation1] sm:$0xff pattern:$0x73625140]
        %v3350 = vld.sshfl [vmem:[#allocation1 + $0x8] sm:$0xff pattern:$0x73625140]
        %v3352 = vld.sshfl [vmem:[#allocation1 + $0x10] sm:$0xff pattern:$0x73625140]
        %3354 = vrot.lane.b32.xlu0 %v3348, 108
        %v3355 = vpop.permute.xlu0 %3354
        %3356 = vrot.lane.b32.xlu0 %v3350, 108
        %v3357 = vpop.permute.xlu0 %3356
        %3358 = vrot.lane.b32.xlu0 %v3352, 108
        %v3359 = vpop.permute.xlu0 %3358
        %vm3360 = vcmask 883712
        %v3361 = vsel %vm3360, %v3355, %v3357
        %v3362 = vsel %vm3360, %v3357, %v3359
        %v3364 = vsel %vm609, %v3330, 0
        %v3367 = vsel %vm609, %v3331, 0
        %v3370 = vsel %vm609, %v3332, 0
        %v3373 = vsel %vm609, %v3333, 0
        %v3376 = vsel %vm609, %v3334, 0
        %v3379 = vsel %vm609, %v3335, 0
        %v3382 = vsel %vm609, %v3336, 0
        %v3385 = vsel %vm609, %v3337, 0
        %v3388 = vsel %vm609, %v3338, 0
        %v3391 = vsel %vm609, %v3339, 0
        %v3394 = vsel %vm609, %v3340, 0
        %v3397 = vsel %vm609, %v3341, 0
        %v3400 = vsel %vm609, %v3342, 0
        %v3403 = vsel %vm609, %v3343, 0
        %v3406 = vsel %vm609, %v3344, 0
        %v3409 = vsel %vm609, %v3345, 0
        %v3412 = vsel %vm658, %v3361, 0
        %v3415 = vsel %vm658, %v3362, 0
        %v3418 = vsel %vm658, %v3359, 0
        %3420 = vmatpush.bf16.msra.mxu0 0
        %3421 = vmatpush.bf16.msra.mxu0 0
        %3422 = vmatpush.bf16.msra.mxu0 0
        %3423 = vmatpush.bf16.msra.mxu0 0
        %3424 = vmatpush.bf16.msra.mxu0 0
        %3425 = vmatpush.bf16.msra.mxu0 0
        %3426 = vmatpush.bf16.msra.mxu0 0
        %3427 = vmatpush.bf16.msra.mxu0 %v3412
        %3428 = vmatmul.bf16.gmra.mxu0 %v3364
        %v3429 = vpop.f32.mrf.mxu0
        %v3430 = vadd.f32 0.0, %v3429
        %v3431 = vpop.f32.mrf.mxu0
        %v3432 = vadd.f32 0.0, %v3431
        %3433 = vmatmul.bf16.gmra.mxu0 %v3367
        %v3434 = vpop.f32.mrf.mxu0
        %v3435 = vadd.f32 0.0, %v3434
        %v3436 = vpop.f32.mrf.mxu0
        %v3437 = vadd.f32 0.0, %v3436
        %3438 = vmatmul.bf16.gmra.mxu0 %v3370
        %v3439 = vpop.f32.mrf.mxu0
        %v3440 = vadd.f32 0.0, %v3439
        %v3441 = vpop.f32.mrf.mxu0
        %v3442 = vadd.f32 0.0, %v3441
        %3443 = vmatmul.bf16.gmra.mxu0 %v3373
        %v3444 = vpop.f32.mrf.mxu0
        %v3445 = vadd.f32 0.0, %v3444
        %v3446 = vpop.f32.mrf.mxu0
        %v3447 = vadd.f32 0.0, %v3446
        %3448 = vmatmul.bf16.gmra.mxu0 %v3376
        %v3449 = vpop.f32.mrf.mxu0
        %v3450 = vadd.f32 0.0, %v3449
        %v3451 = vpop.f32.mrf.mxu0
        %v3452 = vadd.f32 0.0, %v3451
        %3453 = vmatmul.bf16.gmra.mxu0 %v3379
        %v3454 = vpop.f32.mrf.mxu0
        %v3455 = vadd.f32 0.0, %v3454
        %v3456 = vpop.f32.mrf.mxu0
        %v3457 = vadd.f32 0.0, %v3456
        %3458 = vmatmul.bf16.gmra.mxu0 %v3382
        %v3459 = vpop.f32.mrf.mxu0
        %v3460 = vadd.f32 0.0, %v3459
        %v3461 = vpop.f32.mrf.mxu0
        %v3462 = vadd.f32 0.0, %v3461
        %3463 = vmatmul.bf16.gmra.mxu0 %v3385
        %v3464 = vpop.f32.mrf.mxu0
        %v3465 = vadd.f32 0.0, %v3464
        %v3466 = vpop.f32.mrf.mxu0
        %v3467 = vadd.f32 0.0, %v3466
        %3468 = vmatmul.bf16.gmra.mxu0 %v3388
        %v3469 = vpop.f32.mrf.mxu0
        %v3470 = vadd.f32 0.0, %v3469
        %v3471 = vpop.f32.mrf.mxu0
        %v3472 = vadd.f32 0.0, %v3471
        %3473 = vmatmul.bf16.gmra.mxu0 %v3391
        %v3474 = vpop.f32.mrf.mxu0
        %v3475 = vadd.f32 0.0, %v3474
        %v3476 = vpop.f32.mrf.mxu0
        %v3477 = vadd.f32 0.0, %v3476
        %3478 = vmatmul.bf16.gmra.mxu0 %v3394
        %v3479 = vpop.f32.mrf.mxu0
        %v3480 = vadd.f32 0.0, %v3479
        %v3481 = vpop.f32.mrf.mxu0
        %v3482 = vadd.f32 0.0, %v3481
        %3483 = vmatmul.bf16.gmra.mxu0 %v3397
        %v3484 = vpop.f32.mrf.mxu0
        %v3485 = vadd.f32 0.0, %v3484
        %v3486 = vpop.f32.mrf.mxu0
        %v3487 = vadd.f32 0.0, %v3486
        %3488 = vmatmul.bf16.gmra.mxu0 %v3400
        %v3489 = vpop.f32.mrf.mxu0
        %v3490 = vadd.f32 0.0, %v3489
        %v3491 = vpop.f32.mrf.mxu0
        %v3492 = vadd.f32 0.0, %v3491
        %3493 = vmatmul.bf16.gmra.mxu0 %v3403
        %v3494 = vpop.f32.mrf.mxu0
        %v3495 = vadd.f32 0.0, %v3494
        %v3496 = vpop.f32.mrf.mxu0
        %v3497 = vadd.f32 0.0, %v3496
        %3498 = vmatmul.bf16.gmra.mxu0 %v3406
        %v3499 = vpop.f32.mrf.mxu0
        %v3500 = vadd.f32 0.0, %v3499
        %v3501 = vpop.f32.mrf.mxu0
        %v3502 = vadd.f32 0.0, %v3501
        %3503 = vmatmul.bf16.gmra.mxu0 %v3409
        %v3504 = vpop.f32.mrf.mxu0
        %v3505 = vadd.f32 0.0, %v3504
        %v3506 = vpop.f32.mrf.mxu0
        %v3507 = vadd.f32 0.0, %v3506
        %3508 = vdwg.mxu0
        %3509 = vmatpush.bf16.msra.mxu0 0
        %3510 = vmatpush.bf16.msra.mxu0 0
        %3511 = vmatpush.bf16.msra.mxu0 0
        %3512 = vmatpush.bf16.msra.mxu0 0
        %3513 = vmatpush.bf16.msra.mxu0 0
        %3514 = vmatpush.bf16.msra.mxu0 0
        %3515 = vmatpush.bf16.msra.mxu0 0
        %3516 = vmatpush.bf16.msra.mxu0 %v3415
        %3517 = vmatmul.bf16.gmra.mxu0 %v3364
        %v3518 = vpop.f32.mrf.mxu0
        %v3519 = vadd.f32 0.0, %v3518
        %v3520 = vpop.f32.mrf.mxu0
        %v3521 = vadd.f32 0.0, %v3520
        %3522 = vmatmul.bf16.gmra.mxu0 %v3367
        %v3523 = vpop.f32.mrf.mxu0
        %v3524 = vadd.f32 0.0, %v3523
        %v3525 = vpop.f32.mrf.mxu0
        %v3526 = vadd.f32 0.0, %v3525
        %3527 = vmatmul.bf16.gmra.mxu0 %v3370
        %v3528 = vpop.f32.mrf.mxu0
        %v3529 = vadd.f32 0.0, %v3528
        %v3530 = vpop.f32.mrf.mxu0
        %v3531 = vadd.f32 0.0, %v3530
        %3532 = vmatmul.bf16.gmra.mxu0 %v3373
        %v3533 = vpop.f32.mrf.mxu0
        %v3534 = vadd.f32 0.0, %v3533
        %v3535 = vpop.f32.mrf.mxu0
        %v3536 = vadd.f32 0.0, %v3535
        %3537 = vmatmul.bf16.gmra.mxu0 %v3376
        %v3538 = vpop.f32.mrf.mxu0
        %v3539 = vadd.f32 0.0, %v3538
        %v3540 = vpop.f32.mrf.mxu0
        %v3541 = vadd.f32 0.0, %v3540
        %3542 = vmatmul.bf16.gmra.mxu0 %v3379
        %v3543 = vpop.f32.mrf.mxu0
        %v3544 = vadd.f32 0.0, %v3543
        %v3545 = vpop.f32.mrf.mxu0
        %v3546 = vadd.f32 0.0, %v3545
        %3547 = vmatmul.bf16.gmra.mxu0 %v3382
        %v3548 = vpop.f32.mrf.mxu0
        %v3549 = vadd.f32 0.0, %v3548
        %v3550 = vpop.f32.mrf.mxu0
        %v3551 = vadd.f32 0.0, %v3550
        %3552 = vmatmul.bf16.gmra.mxu0 %v3385
        %v3553 = vpop.f32.mrf.mxu0
        %v3554 = vadd.f32 0.0, %v3553
        %v3555 = vpop.f32.mrf.mxu0
        %v3556 = vadd.f32 0.0, %v3555
        %3557 = vmatmul.bf16.gmra.mxu0 %v3388
        %v3558 = vpop.f32.mrf.mxu0
        %v3559 = vadd.f32 0.0, %v3558
        %v3560 = vpop.f32.mrf.mxu0
        %v3561 = vadd.f32 0.0, %v3560
        %3562 = vmatmul.bf16.gmra.mxu0 %v3391
        %v3563 = vpop.f32.mrf.mxu0
        %v3564 = vadd.f32 0.0, %v3563
        %v3565 = vpop.f32.mrf.mxu0
        %v3566 = vadd.f32 0.0, %v3565
        %3567 = vmatmul.bf16.gmra.mxu0 %v3394
        %v3568 = vpop.f32.mrf.mxu0
        %v3569 = vadd.f32 0.0, %v3568
        %v3570 = vpop.f32.mrf.mxu0
        %v3571 = vadd.f32 0.0, %v3570
        %3572 = vmatmul.bf16.gmra.mxu0 %v3397
        %v3573 = vpop.f32.mrf.mxu0
        %v3574 = vadd.f32 0.0, %v3573
        %v3575 = vpop.f32.mrf.mxu0
        %v3576 = vadd.f32 0.0, %v3575
        %3577 = vmatmul.bf16.gmra.mxu0 %v3400
        %v3578 = vpop.f32.mrf.mxu0
        %v3579 = vadd.f32 0.0, %v3578
        %v3580 = vpop.f32.mrf.mxu0
        %v3581 = vadd.f32 0.0, %v3580
        %3582 = vmatmul.bf16.gmra.mxu0 %v3403
        %v3583 = vpop.f32.mrf.mxu0
        %v3584 = vadd.f32 0.0, %v3583
        %v3585 = vpop.f32.mrf.mxu0
        %v3586 = vadd.f32 0.0, %v3585
        %3587 = vmatmul.bf16.gmra.mxu0 %v3406
        %v3588 = vpop.f32.mrf.mxu0
        %v3589 = vadd.f32 0.0, %v3588
        %v3590 = vpop.f32.mrf.mxu0
        %v3591 = vadd.f32 0.0, %v3590
        %3592 = vmatmul.bf16.gmra.mxu0 %v3409
        %v3593 = vpop.f32.mrf.mxu0
        %v3594 = vadd.f32 0.0, %v3593
        %v3595 = vpop.f32.mrf.mxu0
        %v3596 = vadd.f32 0.0, %v3595
        %3597 = vdwg.mxu0
        %3598 = vmatpush.bf16.msra.mxu0 0
        %3599 = vmatpush.bf16.msra.mxu0 0
        %3600 = vmatpush.bf16.msra.mxu0 0
        %3601 = vmatpush.bf16.msra.mxu0 0
        %3602 = vmatpush.bf16.msra.mxu0 0
        %3603 = vmatpush.bf16.msra.mxu0 0
        %3604 = vmatpush.bf16.msra.mxu0 0
        %3605 = vmatpush.bf16.msra.mxu0 %v3418
        %3606 = vmatmul.bf16.gmra.mxu0 %v3364
        %v3607 = vpop.f32.mrf.mxu0
        %v3608 = vadd.f32 0.0, %v3607
        %v3609 = vpop.f32.mrf.mxu0
        %v3610 = vadd.f32 0.0, %v3609
        %3611 = vmatmul.bf16.gmra.mxu0 %v3367
        %v3612 = vpop.f32.mrf.mxu0
        %v3613 = vadd.f32 0.0, %v3612
        %v3614 = vpop.f32.mrf.mxu0
        %v3615 = vadd.f32 0.0, %v3614
        %3616 = vmatmul.bf16.gmra.mxu0 %v3370
        %v3617 = vpop.f32.mrf.mxu0
        %v3618 = vadd.f32 0.0, %v3617
        %v3619 = vpop.f32.mrf.mxu0
        %v3620 = vadd.f32 0.0, %v3619
        %3621 = vmatmul.bf16.gmra.mxu0 %v3373
        %v3622 = vpop.f32.mrf.mxu0
        %v3623 = vadd.f32 0.0, %v3622
        %v3624 = vpop.f32.mrf.mxu0
        %v3625 = vadd.f32 0.0, %v3624
        %3626 = vmatmul.bf16.gmra.mxu0 %v3376
        %v3627 = vpop.f32.mrf.mxu0
        %v3628 = vadd.f32 0.0, %v3627
        %v3629 = vpop.f32.mrf.mxu0
        %v3630 = vadd.f32 0.0, %v3629
        %3631 = vmatmul.bf16.gmra.mxu0 %v3379
        %v3632 = vpop.f32.mrf.mxu0
        %v3633 = vadd.f32 0.0, %v3632
        %v3634 = vpop.f32.mrf.mxu0
        %v3635 = vadd.f32 0.0, %v3634
        %3636 = vmatmul.bf16.gmra.mxu0 %v3382
        %v3637 = vpop.f32.mrf.mxu0
        %v3638 = vadd.f32 0.0, %v3637
        %v3639 = vpop.f32.mrf.mxu0
        %v3640 = vadd.f32 0.0, %v3639
        %3641 = vmatmul.bf16.gmra.mxu0 %v3385
        %v3642 = vpop.f32.mrf.mxu0
        %v3643 = vadd.f32 0.0, %v3642
        %v3644 = vpop.f32.mrf.mxu0
        %v3645 = vadd.f32 0.0, %v3644
        %3646 = vmatmul.bf16.gmra.mxu0 %v3388
        %v3647 = vpop.f32.mrf.mxu0
        %v3648 = vadd.f32 0.0, %v3647
        %v3649 = vpop.f32.mrf.mxu0
        %v3650 = vadd.f32 0.0, %v3649
        %3651 = vmatmul.bf16.gmra.mxu0 %v3391
        %v3652 = vpop.f32.mrf.mxu0
        %v3653 = vadd.f32 0.0, %v3652
        %v3654 = vpop.f32.mrf.mxu0
        %v3655 = vadd.f32 0.0, %v3654
        %3656 = vmatmul.bf16.gmra.mxu0 %v3394
        %v3657 = vpop.f32.mrf.mxu0
        %v3658 = vadd.f32 0.0, %v3657
        %v3659 = vpop.f32.mrf.mxu0
        %v3660 = vadd.f32 0.0, %v3659
        %3661 = vmatmul.bf16.gmra.mxu0 %v3397
        %v3662 = vpop.f32.mrf.mxu0
        %v3663 = vadd.f32 0.0, %v3662
        %v3664 = vpop.f32.mrf.mxu0
        %v3665 = vadd.f32 0.0, %v3664
        %3666 = vmatmul.bf16.gmra.mxu0 %v3400
        %v3667 = vpop.f32.mrf.mxu0
        %v3668 = vadd.f32 0.0, %v3667
        %v3669 = vpop.f32.mrf.mxu0
        %v3670 = vadd.f32 0.0, %v3669
        %3671 = vmatmul.bf16.gmra.mxu0 %v3403
        %v3672 = vpop.f32.mrf.mxu0
        %v3673 = vadd.f32 0.0, %v3672
        %v3674 = vpop.f32.mrf.mxu0
        %v3675 = vadd.f32 0.0, %v3674
        %3676 = vmatmul.bf16.gmra.mxu0 %v3406
        %v3677 = vpop.f32.mrf.mxu0
        %v3678 = vadd.f32 0.0, %v3677
        %v3679 = vpop.f32.mrf.mxu0
        %v3680 = vadd.f32 0.0, %v3679
        %3681 = vmatmul.bf16.gmra.mxu0 %v3409
        %v3682 = vpop.f32.mrf.mxu0
        %v3683 = vadd.f32 0.0, %v3682
        %v3684 = vpop.f32.mrf.mxu0
        %v3685 = vadd.f32 0.0, %v3684
        %3686 = vdwg.mxu0
        %v3687 = vadd.f32 %v3136, %v3430
        %v3688 = vadd.f32 %v3137, %v3519
        %v3689 = vadd.f32 %v3138, %v3608
        %v3690 = vadd.f32 %v3139, %v3432
        %v3691 = vadd.f32 %v3140, %v3521
        %v3692 = vadd.f32 %v3141, %v3610
        %v3693 = vadd.f32 %v3142, %v3435
        %v3694 = vadd.f32 %v3143, %v3524
        %v3695 = vadd.f32 %v3144, %v3613
        %v3696 = vadd.f32 %v3145, %v3437
        %v3697 = vadd.f32 %v3146, %v3526
        %v3698 = vadd.f32 %v3147, %v3615
        %v3699 = vadd.f32 %v3148, %v3440
        %v3700 = vadd.f32 %v3149, %v3529
        %v3701 = vadd.f32 %v3150, %v3618
        %v3702 = vadd.f32 %v3151, %v3442
        %v3703 = vadd.f32 %v3152, %v3531
        %v3704 = vadd.f32 %v3153, %v3620
        %v3705 = vadd.f32 %v3154, %v3445
        %v3706 = vadd.f32 %v3155, %v3534
        %v3707 = vadd.f32 %v3156, %v3623
        %v3708 = vadd.f32 %v3157, %v3447
        %v3709 = vadd.f32 %v3158, %v3536
        %v3710 = vadd.f32 %v3159, %v3625
        %v3711 = vadd.f32 %v3160, %v3450
        %v3712 = vadd.f32 %v3161, %v3539
        %v3713 = vadd.f32 %v3162, %v3628
        %v3714 = vadd.f32 %v3163, %v3452
        %v3715 = vadd.f32 %v3164, %v3541
        %v3716 = vadd.f32 %v3165, %v3630
        %v3717 = vadd.f32 %v3166, %v3455
        %v3718 = vadd.f32 %v3167, %v3544
        %v3719 = vadd.f32 %v3168, %v3633
        %v3720 = vadd.f32 %v3169, %v3457
        %v3721 = vadd.f32 %v3170, %v3546
        %v3722 = vadd.f32 %v3171, %v3635
        %v3723 = vadd.f32 %v3172, %v3460
        %v3724 = vadd.f32 %v3173, %v3549
        %v3725 = vadd.f32 %v3174, %v3638
        %v3726 = vadd.f32 %v3175, %v3462
        %v3727 = vadd.f32 %v3176, %v3551
        %v3728 = vadd.f32 %v3177, %v3640
        %v3729 = vadd.f32 %v3178, %v3465
        %v3730 = vadd.f32 %v3179, %v3554
        %v3731 = vadd.f32 %v3180, %v3643
        %v3732 = vadd.f32 %v3181, %v3467
        %v3733 = vadd.f32 %v3182, %v3556
        %v3734 = vadd.f32 %v3183, %v3645
        %v3735 = vadd.f32 %v3184, %v3470
        %v3736 = vadd.f32 %v3185, %v3559
        %v3737 = vadd.f32 %v3186, %v3648
        %v3738 = vadd.f32 %v3187, %v3472
        %v3739 = vadd.f32 %v3188, %v3561
        %v3740 = vadd.f32 %v3189, %v3650
        %v3741 = vadd.f32 %v3190, %v3475
        %v3742 = vadd.f32 %v3191, %v3564
        %v3743 = vadd.f32 %v3192, %v3653
        %v3744 = vadd.f32 %v3193, %v3477
        %v3745 = vadd.f32 %v3194, %v3566
        %v3746 = vadd.f32 %v3195, %v3655
        %v3747 = vadd.f32 %v3196, %v3480
        %v3748 = vadd.f32 %v3197, %v3569
        %v3749 = vadd.f32 %v3198, %v3658
        %v3750 = vadd.f32 %v3199, %v3482
        %v3751 = vadd.f32 %v3200, %v3571
        %v3752 = vadd.f32 %v3201, %v3660
        %v3753 = vadd.f32 %v3202, %v3485
        %v3754 = vadd.f32 %v3203, %v3574
        %v3755 = vadd.f32 %v3204, %v3663
        %v3756 = vadd.f32 %v3205, %v3487
        %v3757 = vadd.f32 %v3206, %v3576
        %v3758 = vadd.f32 %v3207, %v3665
        %v3759 = vadd.f32 %v3208, %v3490
        %v3760 = vadd.f32 %v3209, %v3579
        %v3761 = vadd.f32 %v3210, %v3668
        %v3762 = vadd.f32 %v3211, %v3492
        %v3763 = vadd.f32 %v3212, %v3581
        %v3764 = vadd.f32 %v3213, %v3670
        %v3765 = vadd.f32 %v3214, %v3495
        %v3766 = vadd.f32 %v3215, %v3584
        %v3767 = vadd.f32 %v3216, %v3673
        %v3768 = vadd.f32 %v3217, %v3497
        %v3769 = vadd.f32 %v3218, %v3586
        %v3770 = vadd.f32 %v3219, %v3675
        %v3771 = vadd.f32 %v3220, %v3500
        %v3772 = vadd.f32 %v3221, %v3589
        %v3773 = vadd.f32 %v3222, %v3678
        %v3774 = vadd.f32 %v3223, %v3502
        %v3775 = vadd.f32 %v3224, %v3591
        %v3776 = vadd.f32 %v3225, %v3680
        %v3777 = vadd.f32 %v3226, %v3505
        %v3778 = vadd.f32 %v3227, %v3594
        %v3779 = vadd.f32 %v3228, %v3683
        %v3780 = vadd.f32 %v3229, %v3507
        %v3781 = vadd.f32 %v3230, %v3596
        %v3782 = vadd.f32 %v3231, %v3685
        %v3783 = vld [vmem:[%s288] sm:$0x3f]
        %s3784 = scalar_lea.vmem %s292, 768
        %v3785 = vld [vmem:[%s3784] sm:$0xf]
        %v3786 = vld [vmem:[%s3784 + $0x4] sm:$0xf]
        %v3787 = vld [vmem:[%s3784 + $0x8] sm:$0xf]
        %v3788 = vld [vmem:[%s3784 + $0xc] sm:$0xf]
        %v3789 = vld [vmem:[%s3784 + $0x10] sm:$0xf]
        %v3790 = vld [vmem:[%s3784 + $0x14] sm:$0xf]
        %v3791 = vld [vmem:[%s3784 + $0x18] sm:$0xf]
        %v3792 = vld [vmem:[%s3784 + $0x1c] sm:$0xf]
        %v3793 = vld [vmem:[%s3784 + $0x20] sm:$0xf]
        %v3794 = vld [vmem:[%s3784 + $0x24] sm:$0xf]
        %v3795 = vld [vmem:[%s3784 + $0x28] sm:$0xf]
        %v3796 = vld [vmem:[%s3784 + $0x2c] sm:$0xf]
        %v3797 = vld [vmem:[%s3784 + $0x30] sm:$0xf]
        %v3798 = vld [vmem:[%s3784 + $0x34] sm:$0xf]
        %v3799 = vld [vmem:[%s3784 + $0x38] sm:$0xf]
        %v3800 = vld [vmem:[%s3784 + $0x3c] sm:$0xf]
        %v3801 = vld [vmem:[%s3784 + $0x40] sm:$0xf]
        %v3802 = vld [vmem:[%s3784 + $0x44] sm:$0xf]
        %v3803 = vld [vmem:[%s3784 + $0x48] sm:$0xf]
        %v3804 = vld [vmem:[%s3784 + $0x4c] sm:$0xf]
        %v3805 = vld [vmem:[%s3784 + $0x50] sm:$0xf]
        %v3806 = vld [vmem:[%s3784 + $0x54] sm:$0xf]
        %v3807 = vld [vmem:[%s3784 + $0x58] sm:$0xf]
        %v3808 = vld [vmem:[%s3784 + $0x5c] sm:$0xf]
        %v3809 = vld [vmem:[%s3784 + $0x60] sm:$0xf]
        %v3810 = vld [vmem:[%s3784 + $0x64] sm:$0xf]
        %v3811 = vld [vmem:[%s3784 + $0x68] sm:$0xf]
        %v3812 = vld [vmem:[%s3784 + $0x6c] sm:$0xf]
        %v3813 = vld [vmem:[%s3784 + $0x70] sm:$0xf]
        %v3814 = vld [vmem:[%s3784 + $0x74] sm:$0xf]
        %v3815 = vld [vmem:[%s3784 + $0x78] sm:$0xf]
        %v3816 = vld [vmem:[%s3784 + $0x7c] sm:$0xf]
        %v3849 = vunpack.c.l.b16 %v3785
        %v3850 = vunpack.c.l.b16 %v3786
        %v3851 = vunpack.c.l.b16 %v3787
        %v3852 = vunpack.c.l.b16 %v3788
        %v3853 = vunpack.c.l.b16 %v3789
        %v3854 = vunpack.c.l.b16 %v3790
        %v3855 = vunpack.c.l.b16 %v3791
        %v3856 = vunpack.c.l.b16 %v3792
        %v3857 = vunpack.c.l.b16 %v3793
        %v3858 = vunpack.c.l.b16 %v3794
        %v3859 = vunpack.c.l.b16 %v3795
        %v3860 = vunpack.c.l.b16 %v3796
        %v3861 = vunpack.c.l.b16 %v3797
        %v3862 = vunpack.c.l.b16 %v3798
        %v3863 = vunpack.c.l.b16 %v3799
        %v3864 = vunpack.c.l.b16 %v3800
        %v3865 = vunpack.c.l.b16 %v3801
        %v3866 = vunpack.c.l.b16 %v3802
        %v3867 = vunpack.c.l.b16 %v3803
        %v3868 = vunpack.c.l.b16 %v3804
        %v3869 = vunpack.c.l.b16 %v3805
        %v3870 = vunpack.c.l.b16 %v3806
        %v3871 = vunpack.c.l.b16 %v3807
        %v3872 = vunpack.c.l.b16 %v3808
        %v3873 = vunpack.c.l.b16 %v3809
        %v3874 = vunpack.c.l.b16 %v3810
        %v3875 = vunpack.c.l.b16 %v3811
        %v3876 = vunpack.c.l.b16 %v3812
        %v3877 = vunpack.c.l.b16 %v3813
        %v3878 = vunpack.c.l.b16 %v3814
        %v3879 = vunpack.c.l.b16 %v3815
        %v3880 = vunpack.c.l.b16 %v3816
        %v3881 = vpack.c.b16 %v3850, %v3849
        %v3882 = vpack.c.b16 %v3852, %v3851
        %v3883 = vpack.c.b16 %v3854, %v3853
        %v3884 = vpack.c.b16 %v3856, %v3855
        %v3885 = vpack.c.b16 %v3858, %v3857
        %v3886 = vpack.c.b16 %v3860, %v3859
        %v3887 = vpack.c.b16 %v3862, %v3861
        %v3888 = vpack.c.b16 %v3864, %v3863
        %v3889 = vpack.c.b16 %v3866, %v3865
        %v3890 = vpack.c.b16 %v3868, %v3867
        %v3891 = vpack.c.b16 %v3870, %v3869
        %v3892 = vpack.c.b16 %v3872, %v3871
        %v3893 = vpack.c.b16 %v3874, %v3873
        %v3894 = vpack.c.b16 %v3876, %v3875
        %v3895 = vpack.c.b16 %v3878, %v3877
        %v3896 = vpack.c.b16 %v3880, %v3879
        %3898 = vst [vmem:[#allocation1] ss:$4 sm:$0xff] %v3783
        %v3899 = vld.sshfl [vmem:[#allocation1] sm:$0xff pattern:$0x73625140]
        %v3901 = vld.sshfl [vmem:[#allocation1 + $0x8] sm:$0xff pattern:$0x73625140]
        %v3903 = vld.sshfl [vmem:[#allocation1 + $0x10] sm:$0xff pattern:$0x73625140]
        %3905 = vrot.lane.b32.xlu0 %v3899, 92
        %v3906 = vpop.permute.xlu0 %3905
        %3907 = vrot.lane.b32.xlu0 %v3901, 92
        %v3908 = vpop.permute.xlu0 %3907
        %3909 = vrot.lane.b32.xlu0 %v3903, 92
        %v3910 = vpop.permute.xlu0 %3909
        %vm3911 = vcmask 752640
        %v3912 = vsel %vm3911, %v3906, %v3908
        %v3913 = vsel %vm3911, %v3908, %v3910
        %v3915 = vsel %vm609, %v3881, 0
        %v3918 = vsel %vm609, %v3882, 0
        %v3921 = vsel %vm609, %v3883, 0
        %v3924 = vsel %vm609, %v3884, 0
        %v3927 = vsel %vm609, %v3885, 0
        %v3930 = vsel %vm609, %v3886, 0
        %v3933 = vsel %vm609, %v3887, 0
        %v3936 = vsel %vm609, %v3888, 0
        %v3939 = vsel %vm609, %v3889, 0
        %v3942 = vsel %vm609, %v3890, 0
        %v3945 = vsel %vm609, %v3891, 0
        %v3948 = vsel %vm609, %v3892, 0
        %v3951 = vsel %vm609, %v3893, 0
        %v3954 = vsel %vm609, %v3894, 0
        %v3957 = vsel %vm609, %v3895, 0
        %v3960 = vsel %vm609, %v3896, 0
        %v3963 = vsel %vm658, %v3912, 0
        %v3966 = vsel %vm658, %v3913, 0
        %v3969 = vsel %vm658, %v3910, 0
        %3971 = vmatpush.bf16.msra.mxu0 0
        %3972 = vmatpush.bf16.msra.mxu0 0
        %3973 = vmatpush.bf16.msra.mxu0 0
        %3974 = vmatpush.bf16.msra.mxu0 0
        %3975 = vmatpush.bf16.msra.mxu0 0
        %3976 = vmatpush.bf16.msra.mxu0 0
        %3977 = vmatpush.bf16.msra.mxu0 0
        %3978 = vmatpush.bf16.msra.mxu0 %v3963
        %3979 = vmatmul.bf16.gmra.mxu0 %v3915
        %v3980 = vpop.f32.mrf.mxu0
        %v3981 = vadd.f32 0.0, %v3980
        %v3982 = vpop.f32.mrf.mxu0
        %v3983 = vadd.f32 0.0, %v3982
        %3984 = vmatmul.bf16.gmra.mxu0 %v3918
        %v3985 = vpop.f32.mrf.mxu0
        %v3986 = vadd.f32 0.0, %v3985
        %v3987 = vpop.f32.mrf.mxu0
        %v3988 = vadd.f32 0.0, %v3987
        %3989 = vmatmul.bf16.gmra.mxu0 %v3921
        %v3990 = vpop.f32.mrf.mxu0
        %v3991 = vadd.f32 0.0, %v3990
        %v3992 = vpop.f32.mrf.mxu0
        %v3993 = vadd.f32 0.0, %v3992
        %3994 = vmatmul.bf16.gmra.mxu0 %v3924
        %v3995 = vpop.f32.mrf.mxu0
        %v3996 = vadd.f32 0.0, %v3995
        %v3997 = vpop.f32.mrf.mxu0
        %v3998 = vadd.f32 0.0, %v3997
        %3999 = vmatmul.bf16.gmra.mxu0 %v3927
        %v4000 = vpop.f32.mrf.mxu0
        %v4001 = vadd.f32 0.0, %v4000
        %v4002 = vpop.f32.mrf.mxu0
        %v4003 = vadd.f32 0.0, %v4002
        %4004 = vmatmul.bf16.gmra.mxu0 %v3930
        %v4005 = vpop.f32.mrf.mxu0
        %v4006 = vadd.f32 0.0, %v4005
        %v4007 = vpop.f32.mrf.mxu0
        %v4008 = vadd.f32 0.0, %v4007
        %4009 = vmatmul.bf16.gmra.mxu0 %v3933
        %v4010 = vpop.f32.mrf.mxu0
        %v4011 = vadd.f32 0.0, %v4010
        %v4012 = vpop.f32.mrf.mxu0
        %v4013 = vadd.f32 0.0, %v4012
        %4014 = vmatmul.bf16.gmra.mxu0 %v3936
        %v4015 = vpop.f32.mrf.mxu0
        %v4016 = vadd.f32 0.0, %v4015
        %v4017 = vpop.f32.mrf.mxu0
        %v4018 = vadd.f32 0.0, %v4017
        %4019 = vmatmul.bf16.gmra.mxu0 %v3939
        %v4020 = vpop.f32.mrf.mxu0
        %v4021 = vadd.f32 0.0, %v4020
        %v4022 = vpop.f32.mrf.mxu0
        %v4023 = vadd.f32 0.0, %v4022
        %4024 = vmatmul.bf16.gmra.mxu0 %v3942
        %v4025 = vpop.f32.mrf.mxu0
        %v4026 = vadd.f32 0.0, %v4025
        %v4027 = vpop.f32.mrf.mxu0
        %v4028 = vadd.f32 0.0, %v4027
        %4029 = vmatmul.bf16.gmra.mxu0 %v3945
        %v4030 = vpop.f32.mrf.mxu0
        %v4031 = vadd.f32 0.0, %v4030
        %v4032 = vpop.f32.mrf.mxu0
        %v4033 = vadd.f32 0.0, %v4032
        %4034 = vmatmul.bf16.gmra.mxu0 %v3948
        %v4035 = vpop.f32.mrf.mxu0
        %v4036 = vadd.f32 0.0, %v4035
        %v4037 = vpop.f32.mrf.mxu0
        %v4038 = vadd.f32 0.0, %v4037
        %4039 = vmatmul.bf16.gmra.mxu0 %v3951
        %v4040 = vpop.f32.mrf.mxu0
        %v4041 = vadd.f32 0.0, %v4040
        %v4042 = vpop.f32.mrf.mxu0
        %v4043 = vadd.f32 0.0, %v4042
        %4044 = vmatmul.bf16.gmra.mxu0 %v3954
        %v4045 = vpop.f32.mrf.mxu0
        %v4046 = vadd.f32 0.0, %v4045
        %v4047 = vpop.f32.mrf.mxu0
        %v4048 = vadd.f32 0.0, %v4047
        %4049 = vmatmul.bf16.gmra.mxu0 %v3957
        %v4050 = vpop.f32.mrf.mxu0
        %v4051 = vadd.f32 0.0, %v4050
        %v4052 = vpop.f32.mrf.mxu0
        %v4053 = vadd.f32 0.0, %v4052
        %4054 = vmatmul.bf16.gmra.mxu0 %v3960
        %v4055 = vpop.f32.mrf.mxu0
        %v4056 = vadd.f32 0.0, %v4055
        %v4057 = vpop.f32.mrf.mxu0
        %v4058 = vadd.f32 0.0, %v4057
        %4059 = vdwg.mxu0
        %4060 = vmatpush.bf16.msra.mxu0 0
        %4061 = vmatpush.bf16.msra.mxu0 0
        %4062 = vmatpush.bf16.msra.mxu0 0
        %4063 = vmatpush.bf16.msra.mxu0 0
        %4064 = vmatpush.bf16.msra.mxu0 0
        %4065 = vmatpush.bf16.msra.mxu0 0
        %4066 = vmatpush.bf16.msra.mxu0 0
        %4067 = vmatpush.bf16.msra.mxu0 %v3966
        %4068 = vmatmul.bf16.gmra.mxu0 %v3915
        %v4069 = vpop.f32.mrf.mxu0
        %v4070 = vadd.f32 0.0, %v4069
        %v4071 = vpop.f32.mrf.mxu0
        %v4072 = vadd.f32 0.0, %v4071
        %4073 = vmatmul.bf16.gmra.mxu0 %v3918
        %v4074 = vpop.f32.mrf.mxu0
        %v4075 = vadd.f32 0.0, %v4074
        %v4076 = vpop.f32.mrf.mxu0
        %v4077 = vadd.f32 0.0, %v4076
        %4078 = vmatmul.bf16.gmra.mxu0 %v3921
        %v4079 = vpop.f32.mrf.mxu0
        %v4080 = vadd.f32 0.0, %v4079
        %v4081 = vpop.f32.mrf.mxu0
        %v4082 = vadd.f32 0.0, %v4081
        %4083 = vmatmul.bf16.gmra.mxu0 %v3924
        %v4084 = vpop.f32.mrf.mxu0
        %v4085 = vadd.f32 0.0, %v4084
        %v4086 = vpop.f32.mrf.mxu0
        %v4087 = vadd.f32 0.0, %v4086
        %4088 = vmatmul.bf16.gmra.mxu0 %v3927
        %v4089 = vpop.f32.mrf.mxu0
        %v4090 = vadd.f32 0.0, %v4089
        %v4091 = vpop.f32.mrf.mxu0
        %v4092 = vadd.f32 0.0, %v4091
        %4093 = vmatmul.bf16.gmra.mxu0 %v3930
        %v4094 = vpop.f32.mrf.mxu0
        %v4095 = vadd.f32 0.0, %v4094
        %v4096 = vpop.f32.mrf.mxu0
        %v4097 = vadd.f32 0.0, %v4096
        %4098 = vmatmul.bf16.gmra.mxu0 %v3933
        %v4099 = vpop.f32.mrf.mxu0
        %v4100 = vadd.f32 0.0, %v4099
        %v4101 = vpop.f32.mrf.mxu0
        %v4102 = vadd.f32 0.0, %v4101
        %4103 = vmatmul.bf16.gmra.mxu0 %v3936
        %v4104 = vpop.f32.mrf.mxu0
        %v4105 = vadd.f32 0.0, %v4104
        %v4106 = vpop.f32.mrf.mxu0
        %v4107 = vadd.f32 0.0, %v4106
        %4108 = vmatmul.bf16.gmra.mxu0 %v3939
        %v4109 = vpop.f32.mrf.mxu0
        %v4110 = vadd.f32 0.0, %v4109
        %v4111 = vpop.f32.mrf.mxu0
        %v4112 = vadd.f32 0.0, %v4111
        %4113 = vmatmul.bf16.gmra.mxu0 %v3942
        %v4114 = vpop.f32.mrf.mxu0
        %v4115 = vadd.f32 0.0, %v4114
        %v4116 = vpop.f32.mrf.mxu0
        %v4117 = vadd.f32 0.0, %v4116
        %4118 = vmatmul.bf16.gmra.mxu0 %v3945
        %v4119 = vpop.f32.mrf.mxu0
        %v4120 = vadd.f32 0.0, %v4119
        %v4121 = vpop.f32.mrf.mxu0
        %v4122 = vadd.f32 0.0, %v4121
        %4123 = vmatmul.bf16.gmra.mxu0 %v3948
        %v4124 = vpop.f32.mrf.mxu0
        %v4125 = vadd.f32 0.0, %v4124
        %v4126 = vpop.f32.mrf.mxu0
        %v4127 = vadd.f32 0.0, %v4126
        %4128 = vmatmul.bf16.gmra.mxu0 %v3951
        %v4129 = vpop.f32.mrf.mxu0
        %v4130 = vadd.f32 0.0, %v4129
        %v4131 = vpop.f32.mrf.mxu0
        %v4132 = vadd.f32 0.0, %v4131
        %4133 = vmatmul.bf16.gmra.mxu0 %v3954
        %v4134 = vpop.f32.mrf.mxu0
        %v4135 = vadd.f32 0.0, %v4134
        %v4136 = vpop.f32.mrf.mxu0
        %v4137 = vadd.f32 0.0, %v4136
        %4138 = vmatmul.bf16.gmra.mxu0 %v3957
        %v4139 = vpop.f32.mrf.mxu0
        %v4140 = vadd.f32 0.0, %v4139
        %v4141 = vpop.f32.mrf.mxu0
        %v4142 = vadd.f32 0.0, %v4141
        %4143 = vmatmul.bf16.gmra.mxu0 %v3960
        %v4144 = vpop.f32.mrf.mxu0
        %v4145 = vadd.f32 0.0, %v4144
        %v4146 = vpop.f32.mrf.mxu0
        %v4147 = vadd.f32 0.0, %v4146
        %4148 = vdwg.mxu0
        %4149 = vmatpush.bf16.msra.mxu0 0
        %4150 = vmatpush.bf16.msra.mxu0 0
        %4151 = vmatpush.bf16.msra.mxu0 0
        %4152 = vmatpush.bf16.msra.mxu0 0
        %4153 = vmatpush.bf16.msra.mxu0 0
        %4154 = vmatpush.bf16.msra.mxu0 0
        %4155 = vmatpush.bf16.msra.mxu0 0
        %4156 = vmatpush.bf16.msra.mxu0 %v3969
        %4157 = vmatmul.bf16.gmra.mxu0 %v3915
        %v4158 = vpop.f32.mrf.mxu0
        %v4159 = vadd.f32 0.0, %v4158
        %v4160 = vpop.f32.mrf.mxu0
        %v4161 = vadd.f32 0.0, %v4160
        %4162 = vmatmul.bf16.gmra.mxu0 %v3918
        %v4163 = vpop.f32.mrf.mxu0
        %v4164 = vadd.f32 0.0, %v4163
        %v4165 = vpop.f32.mrf.mxu0
        %v4166 = vadd.f32 0.0, %v4165
        %4167 = vmatmul.bf16.gmra.mxu0 %v3921
        %v4168 = vpop.f32.mrf.mxu0
        %v4169 = vadd.f32 0.0, %v4168
        %v4170 = vpop.f32.mrf.mxu0
        %v4171 = vadd.f32 0.0, %v4170
        %4172 = vmatmul.bf16.gmra.mxu0 %v3924
        %v4173 = vpop.f32.mrf.mxu0
        %v4174 = vadd.f32 0.0, %v4173
        %v4175 = vpop.f32.mrf.mxu0
        %v4176 = vadd.f32 0.0, %v4175
        %4177 = vmatmul.bf16.gmra.mxu0 %v3927
        %v4178 = vpop.f32.mrf.mxu0
        %v4179 = vadd.f32 0.0, %v4178
        %v4180 = vpop.f32.mrf.mxu0
        %v4181 = vadd.f32 0.0, %v4180
        %4182 = vmatmul.bf16.gmra.mxu0 %v3930
        %v4183 = vpop.f32.mrf.mxu0
        %v4184 = vadd.f32 0.0, %v4183
        %v4185 = vpop.f32.mrf.mxu0
        %v4186 = vadd.f32 0.0, %v4185
        %4187 = vmatmul.bf16.gmra.mxu0 %v3933
        %v4188 = vpop.f32.mrf.mxu0
        %v4189 = vadd.f32 0.0, %v4188
        %v4190 = vpop.f32.mrf.mxu0
        %v4191 = vadd.f32 0.0, %v4190
        %4192 = vmatmul.bf16.gmra.mxu0 %v3936
        %v4193 = vpop.f32.mrf.mxu0
        %v4194 = vadd.f32 0.0, %v4193
        %v4195 = vpop.f32.mrf.mxu0
        %v4196 = vadd.f32 0.0, %v4195
        %4197 = vmatmul.bf16.gmra.mxu0 %v3939
        %v4198 = vpop.f32.mrf.mxu0
        %v4199 = vadd.f32 0.0, %v4198
        %v4200 = vpop.f32.mrf.mxu0
        %v4201 = vadd.f32 0.0, %v4200
        %4202 = vmatmul.bf16.gmra.mxu0 %v3942
        %v4203 = vpop.f32.mrf.mxu0
        %v4204 = vadd.f32 0.0, %v4203
        %v4205 = vpop.f32.mrf.mxu0
        %v4206 = vadd.f32 0.0, %v4205
        %4207 = vmatmul.bf16.gmra.mxu0 %v3945
        %v4208 = vpop.f32.mrf.mxu0
        %v4209 = vadd.f32 0.0, %v4208
        %v4210 = vpop.f32.mrf.mxu0
        %v4211 = vadd.f32 0.0, %v4210
        %4212 = vmatmul.bf16.gmra.mxu0 %v3948
        %v4213 = vpop.f32.mrf.mxu0
        %v4214 = vadd.f32 0.0, %v4213
        %v4215 = vpop.f32.mrf.mxu0
        %v4216 = vadd.f32 0.0, %v4215
        %4217 = vmatmul.bf16.gmra.mxu0 %v3951
        %v4218 = vpop.f32.mrf.mxu0
        %v4219 = vadd.f32 0.0, %v4218
        %v4220 = vpop.f32.mrf.mxu0
        %v4221 = vadd.f32 0.0, %v4220
        %4222 = vmatmul.bf16.gmra.mxu0 %v3954
        %v4223 = vpop.f32.mrf.mxu0
        %v4224 = vadd.f32 0.0, %v4223
        %v4225 = vpop.f32.mrf.mxu0
        %v4226 = vadd.f32 0.0, %v4225
        %4227 = vmatmul.bf16.gmra.mxu0 %v3957
        %v4228 = vpop.f32.mrf.mxu0
        %v4229 = vadd.f32 0.0, %v4228
        %v4230 = vpop.f32.mrf.mxu0
        %v4231 = vadd.f32 0.0, %v4230
        %4232 = vmatmul.bf16.gmra.mxu0 %v3960
        %v4233 = vpop.f32.mrf.mxu0
        %v4234 = vadd.f32 0.0, %v4233
        %v4235 = vpop.f32.mrf.mxu0
        %v4236 = vadd.f32 0.0, %v4235
        %4237 = vdwg.mxu0
        %v4238 = vadd.f32 %v3687, %v3981
        %v4239 = vadd.f32 %v3688, %v4070
        %v4240 = vadd.f32 %v3689, %v4159
        %v4241 = vadd.f32 %v3690, %v3983
        %v4242 = vadd.f32 %v3691, %v4072
        %v4243 = vadd.f32 %v3692, %v4161
        %v4244 = vadd.f32 %v3693, %v3986
        %v4245 = vadd.f32 %v3694, %v4075
        %v4246 = vadd.f32 %v3695, %v4164
        %v4247 = vadd.f32 %v3696, %v3988
        %v4248 = vadd.f32 %v3697, %v4077
        %v4249 = vadd.f32 %v3698, %v4166
        %v4250 = vadd.f32 %v3699, %v3991
        %v4251 = vadd.f32 %v3700, %v4080
        %v4252 = vadd.f32 %v3701, %v4169
        %v4253 = vadd.f32 %v3702, %v3993
        %v4254 = vadd.f32 %v3703, %v4082
        %v4255 = vadd.f32 %v3704, %v4171
        %v4256 = vadd.f32 %v3705, %v3996
        %v4257 = vadd.f32 %v3706, %v4085
        %v4258 = vadd.f32 %v3707, %v4174
        %v4259 = vadd.f32 %v3708, %v3998
        %v4260 = vadd.f32 %v3709, %v4087
        %v4261 = vadd.f32 %v3710, %v4176
        %v4262 = vadd.f32 %v3711, %v4001
        %v4263 = vadd.f32 %v3712, %v4090
        %v4264 = vadd.f32 %v3713, %v4179
        %v4265 = vadd.f32 %v3714, %v4003
        %v4266 = vadd.f32 %v3715, %v4092
        %v4267 = vadd.f32 %v3716, %v4181
        %v4268 = vadd.f32 %v3717, %v4006
        %v4269 = vadd.f32 %v3718, %v4095
        %v4270 = vadd.f32 %v3719, %v4184
        %v4271 = vadd.f32 %v3720, %v4008
        %v4272 = vadd.f32 %v3721, %v4097
        %v4273 = vadd.f32 %v3722, %v4186
        %v4274 = vadd.f32 %v3723, %v4011
        %v4275 = vadd.f32 %v3724, %v4100
        %v4276 = vadd.f32 %v3725, %v4189
        %v4277 = vadd.f32 %v3726, %v4013
        %v4278 = vadd.f32 %v3727, %v4102
        %v4279 = vadd.f32 %v3728, %v4191
        %v4280 = vadd.f32 %v3729, %v4016
        %v4281 = vadd.f32 %v3730, %v4105
        %v4282 = vadd.f32 %v3731, %v4194
        %v4283 = vadd.f32 %v3732, %v4018
        %v4284 = vadd.f32 %v3733, %v4107
        %v4285 = vadd.f32 %v3734, %v4196
        %v4286 = vadd.f32 %v3735, %v4021
        %v4287 = vadd.f32 %v3736, %v4110
        %v4288 = vadd.f32 %v3737, %v4199
        %v4289 = vadd.f32 %v3738, %v4023
        %v4290 = vadd.f32 %v3739, %v4112
        %v4291 = vadd.f32 %v3740, %v4201
        %v4292 = vadd.f32 %v3741, %v4026
        %v4293 = vadd.f32 %v3742, %v4115
        %v4294 = vadd.f32 %v3743, %v4204
        %v4295 = vadd.f32 %v3744, %v4028
        %v4296 = vadd.f32 %v3745, %v4117
        %v4297 = vadd.f32 %v3746, %v4206
        %v4298 = vadd.f32 %v3747, %v4031
        %v4299 = vadd.f32 %v3748, %v4120
        %v4300 = vadd.f32 %v3749, %v4209
        %v4301 = vadd.f32 %v3750, %v4033
        %v4302 = vadd.f32 %v3751, %v4122
        %v4303 = vadd.f32 %v3752, %v4211
        %v4304 = vadd.f32 %v3753, %v4036
        %v4305 = vadd.f32 %v3754, %v4125
        %v4306 = vadd.f32 %v3755, %v4214
        %v4307 = vadd.f32 %v3756, %v4038
        %v4308 = vadd.f32 %v3757, %v4127
        %v4309 = vadd.f32 %v3758, %v4216
        %v4310 = vadd.f32 %v3759, %v4041
        %v4311 = vadd.f32 %v3760, %v4130
        %v4312 = vadd.f32 %v3761, %v4219
        %v4313 = vadd.f32 %v3762, %v4043
        %v4314 = vadd.f32 %v3763, %v4132
        %v4315 = vadd.f32 %v3764, %v4221
        %v4316 = vadd.f32 %v3765, %v4046
        %v4317 = vadd.f32 %v3766, %v4135
        %v4318 = vadd.f32 %v3767, %v4224
        %v4319 = vadd.f32 %v3768, %v4048
        %v4320 = vadd.f32 %v3769, %v4137
        %v4321 = vadd.f32 %v3770, %v4226
        %v4322 = vadd.f32 %v3771, %v4051
        %v4323 = vadd.f32 %v3772, %v4140
        %v4324 = vadd.f32 %v3773, %v4229
        %v4325 = vadd.f32 %v3774, %v4053
        %v4326 = vadd.f32 %v3775, %v4142
        %v4327 = vadd.f32 %v3776, %v4231
        %v4328 = vadd.f32 %v3777, %v4056
        %v4329 = vadd.f32 %v3778, %v4145
        %v4330 = vadd.f32 %v3779, %v4234
        %v4331 = vadd.f32 %v3780, %v4058
        %v4332 = vadd.f32 %v3781, %v4147
        %v4333 = vadd.f32 %v3782, %v4236
        %v4334 = vld [vmem:[%s288] sm:$0x3f]
        %s4335 = scalar_lea.vmem %s292, 896
        %v4336 = vld [vmem:[%s4335] sm:$0xf]
        %v4337 = vld [vmem:[%s4335 + $0x4] sm:$0xf]
        %v4338 = vld [vmem:[%s4335 + $0x8] sm:$0xf]
        %v4339 = vld [vmem:[%s4335 + $0xc] sm:$0xf]
        %v4340 = vld [vmem:[%s4335 + $0x10] sm:$0xf]
        %v4341 = vld [vmem:[%s4335 + $0x14] sm:$0xf]
        %v4342 = vld [vmem:[%s4335 + $0x18] sm:$0xf]
        %v4343 = vld [vmem:[%s4335 + $0x1c] sm:$0xf]
        %v4344 = vld [vmem:[%s4335 + $0x20] sm:$0xf]
        %v4345 = vld [vmem:[%s4335 + $0x24] sm:$0xf]
        %v4346 = vld [vmem:[%s4335 + $0x28] sm:$0xf]
        %v4347 = vld [vmem:[%s4335 + $0x2c] sm:$0xf]
        %v4348 = vld [vmem:[%s4335 + $0x30] sm:$0xf]
        %v4349 = vld [vmem:[%s4335 + $0x34] sm:$0xf]
        %v4350 = vld [vmem:[%s4335 + $0x38] sm:$0xf]
        %v4351 = vld [vmem:[%s4335 + $0x3c] sm:$0xf]
        %v4352 = vld [vmem:[%s4335 + $0x40] sm:$0xf]
        %v4353 = vld [vmem:[%s4335 + $0x44] sm:$0xf]
        %v4354 = vld [vmem:[%s4335 + $0x48] sm:$0xf]
        %v4355 = vld [vmem:[%s4335 + $0x4c] sm:$0xf]
        %v4356 = vld [vmem:[%s4335 + $0x50] sm:$0xf]
        %v4357 = vld [vmem:[%s4335 + $0x54] sm:$0xf]
        %v4358 = vld [vmem:[%s4335 + $0x58] sm:$0xf]
        %v4359 = vld [vmem:[%s4335 + $0x5c] sm:$0xf]
        %v4360 = vld [vmem:[%s4335 + $0x60] sm:$0xf]
        %v4361 = vld [vmem:[%s4335 + $0x64] sm:$0xf]
        %v4362 = vld [vmem:[%s4335 + $0x68] sm:$0xf]
        %v4363 = vld [vmem:[%s4335 + $0x6c] sm:$0xf]
        %v4364 = vld [vmem:[%s4335 + $0x70] sm:$0xf]
        %v4365 = vld [vmem:[%s4335 + $0x74] sm:$0xf]
        %v4366 = vld [vmem:[%s4335 + $0x78] sm:$0xf]
        %v4367 = vld [vmem:[%s4335 + $0x7c] sm:$0xf]
        %v4400 = vunpack.c.l.b16 %v4336
        %v4401 = vunpack.c.l.b16 %v4337
        %v4402 = vunpack.c.l.b16 %v4338
        %v4403 = vunpack.c.l.b16 %v4339
        %v4404 = vunpack.c.l.b16 %v4340
        %v4405 = vunpack.c.l.b16 %v4341
        %v4406 = vunpack.c.l.b16 %v4342
        %v4407 = vunpack.c.l.b16 %v4343
        %v4408 = vunpack.c.l.b16 %v4344
        %v4409 = vunpack.c.l.b16 %v4345
        %v4410 = vunpack.c.l.b16 %v4346
        %v4411 = vunpack.c.l.b16 %v4347
        %v4412 = vunpack.c.l.b16 %v4348
        %v4413 = vunpack.c.l.b16 %v4349
        %v4414 = vunpack.c.l.b16 %v4350
        %v4415 = vunpack.c.l.b16 %v4351
        %v4416 = vunpack.c.l.b16 %v4352
        %v4417 = vunpack.c.l.b16 %v4353
        %v4418 = vunpack.c.l.b16 %v4354
        %v4419 = vunpack.c.l.b16 %v4355
        %v4420 = vunpack.c.l.b16 %v4356
        %v4421 = vunpack.c.l.b16 %v4357
        %v4422 = vunpack.c.l.b16 %v4358
        %v4423 = vunpack.c.l.b16 %v4359
        %v4424 = vunpack.c.l.b16 %v4360
        %v4425 = vunpack.c.l.b16 %v4361
        %v4426 = vunpack.c.l.b16 %v4362
        %v4427 = vunpack.c.l.b16 %v4363
        %v4428 = vunpack.c.l.b16 %v4364
        %v4429 = vunpack.c.l.b16 %v4365
        %v4430 = vunpack.c.l.b16 %v4366
        %v4431 = vunpack.c.l.b16 %v4367
        %v4432 = vpack.c.b16 %v4401, %v4400
        %v4433 = vpack.c.b16 %v4403, %v4402
        %v4434 = vpack.c.b16 %v4405, %v4404
        %v4435 = vpack.c.b16 %v4407, %v4406
        %v4436 = vpack.c.b16 %v4409, %v4408
        %v4437 = vpack.c.b16 %v4411, %v4410
        %v4438 = vpack.c.b16 %v4413, %v4412
        %v4439 = vpack.c.b16 %v4415, %v4414
        %v4440 = vpack.c.b16 %v4417, %v4416
        %v4441 = vpack.c.b16 %v4419, %v4418
        %v4442 = vpack.c.b16 %v4421, %v4420
        %v4443 = vpack.c.b16 %v4423, %v4422
        %v4444 = vpack.c.b16 %v4425, %v4424
        %v4445 = vpack.c.b16 %v4427, %v4426
        %v4446 = vpack.c.b16 %v4429, %v4428
        %v4447 = vpack.c.b16 %v4431, %v4430
        %4449 = vst [vmem:[#allocation1] ss:$4 sm:$0xff] %v4334
        %v4450 = vld.sshfl [vmem:[#allocation1] sm:$0xff pattern:$0x73625140]
        %v4452 = vld.sshfl [vmem:[#allocation1 + $0x8] sm:$0xff pattern:$0x73625140]
        %v4454 = vld.sshfl [vmem:[#allocation1 + $0x10] sm:$0xff pattern:$0x73625140]
        %4456 = vrot.lane.b32.xlu0 %v4450, 91
        %v4457 = vpop.permute.xlu0 %4456
        %4458 = vrot.lane.b32.xlu0 %v4452, 91
        %v4459 = vpop.permute.xlu0 %4458
        %4460 = vrot.lane.b32.xlu0 %v4454, 91
        %v4461 = vpop.permute.xlu0 %4460
        %vm4462 = vcmask 744448
        %v4463 = vsel %vm4462, %v4457, %v4459
        %v4464 = vsel %vm4462, %v4459, %v4461
        %v4466 = vsel %vm609, %v4432, 0
        %v4469 = vsel %vm609, %v4433, 0
        %v4472 = vsel %vm609, %v4434, 0
        %v4475 = vsel %vm609, %v4435, 0
        %v4478 = vsel %vm609, %v4436, 0
        %v4481 = vsel %vm609, %v4437, 0
        %v4484 = vsel %vm609, %v4438, 0
        %v4487 = vsel %vm609, %v4439, 0
        %v4490 = vsel %vm609, %v4440, 0
        %v4493 = vsel %vm609, %v4441, 0
        %v4496 = vsel %vm609, %v4442, 0
        %v4499 = vsel %vm609, %v4443, 0
        %v4502 = vsel %vm609, %v4444, 0
        %v4505 = vsel %vm609, %v4445, 0
        %v4508 = vsel %vm609, %v4446, 0
        %v4511 = vsel %vm609, %v4447, 0
        %v4514 = vsel %vm658, %v4463, 0
        %v4517 = vsel %vm658, %v4464, 0
        %v4520 = vsel %vm658, %v4461, 0
        %4522 = vmatpush.bf16.msra.mxu0 0
        %4523 = vmatpush.bf16.msra.mxu0 0
        %4524 = vmatpush.bf16.msra.mxu0 0
        %4525 = vmatpush.bf16.msra.mxu0 0
        %4526 = vmatpush.bf16.msra.mxu0 0
        %4527 = vmatpush.bf16.msra.mxu0 0
        %4528 = vmatpush.bf16.msra.mxu0 0
        %4529 = vmatpush.bf16.msra.mxu0 %v4514
        %4530 = vmatmul.bf16.gmra.mxu0 %v4466
        %v4531 = vpop.f32.mrf.mxu0
        %v4532 = vadd.f32 0.0, %v4531
        %v4533 = vpop.f32.mrf.mxu0
        %v4534 = vadd.f32 0.0, %v4533
        %4535 = vmatmul.bf16.gmra.mxu0 %v4469
        %v4536 = vpop.f32.mrf.mxu0
        %v4537 = vadd.f32 0.0, %v4536
        %v4538 = vpop.f32.mrf.mxu0
        %v4539 = vadd.f32 0.0, %v4538
        %4540 = vmatmul.bf16.gmra.mxu0 %v4472
        %v4541 = vpop.f32.mrf.mxu0
        %v4542 = vadd.f32 0.0, %v4541
        %v4543 = vpop.f32.mrf.mxu0
        %v4544 = vadd.f32 0.0, %v4543
        %4545 = vmatmul.bf16.gmra.mxu0 %v4475
        %v4546 = vpop.f32.mrf.mxu0
        %v4547 = vadd.f32 0.0, %v4546
        %v4548 = vpop.f32.mrf.mxu0
        %v4549 = vadd.f32 0.0, %v4548
        %4550 = vmatmul.bf16.gmra.mxu0 %v4478
        %v4551 = vpop.f32.mrf.mxu0
        %v4552 = vadd.f32 0.0, %v4551
        %v4553 = vpop.f32.mrf.mxu0
        %v4554 = vadd.f32 0.0, %v4553
        %4555 = vmatmul.bf16.gmra.mxu0 %v4481
        %v4556 = vpop.f32.mrf.mxu0
        %v4557 = vadd.f32 0.0, %v4556
        %v4558 = vpop.f32.mrf.mxu0
        %v4559 = vadd.f32 0.0, %v4558
        %4560 = vmatmul.bf16.gmra.mxu0 %v4484
        %v4561 = vpop.f32.mrf.mxu0
        %v4562 = vadd.f32 0.0, %v4561
        %v4563 = vpop.f32.mrf.mxu0
        %v4564 = vadd.f32 0.0, %v4563
        %4565 = vmatmul.bf16.gmra.mxu0 %v4487
        %v4566 = vpop.f32.mrf.mxu0
        %v4567 = vadd.f32 0.0, %v4566
        %v4568 = vpop.f32.mrf.mxu0
        %v4569 = vadd.f32 0.0, %v4568
        %4570 = vmatmul.bf16.gmra.mxu0 %v4490
        %v4571 = vpop.f32.mrf.mxu0
        %v4572 = vadd.f32 0.0, %v4571
        %v4573 = vpop.f32.mrf.mxu0
        %v4574 = vadd.f32 0.0, %v4573
        %4575 = vmatmul.bf16.gmra.mxu0 %v4493
        %v4576 = vpop.f32.mrf.mxu0
        %v4577 = vadd.f32 0.0, %v4576
        %v4578 = vpop.f32.mrf.mxu0
        %v4579 = vadd.f32 0.0, %v4578
        %4580 = vmatmul.bf16.gmra.mxu0 %v4496
        %v4581 = vpop.f32.mrf.mxu0
        %v4582 = vadd.f32 0.0, %v4581
        %v4583 = vpop.f32.mrf.mxu0
        %v4584 = vadd.f32 0.0, %v4583
        %4585 = vmatmul.bf16.gmra.mxu0 %v4499
        %v4586 = vpop.f32.mrf.mxu0
        %v4587 = vadd.f32 0.0, %v4586
        %v4588 = vpop.f32.mrf.mxu0
        %v4589 = vadd.f32 0.0, %v4588
        %4590 = vmatmul.bf16.gmra.mxu0 %v4502
        %v4591 = vpop.f32.mrf.mxu0
        %v4592 = vadd.f32 0.0, %v4591
        %v4593 = vpop.f32.mrf.mxu0
        %v4594 = vadd.f32 0.0, %v4593
        %4595 = vmatmul.bf16.gmra.mxu0 %v4505
        %v4596 = vpop.f32.mrf.mxu0
        %v4597 = vadd.f32 0.0, %v4596
        %v4598 = vpop.f32.mrf.mxu0
        %v4599 = vadd.f32 0.0, %v4598
        %4600 = vmatmul.bf16.gmra.mxu0 %v4508
        %v4601 = vpop.f32.mrf.mxu0
        %v4602 = vadd.f32 0.0, %v4601
        %v4603 = vpop.f32.mrf.mxu0
        %v4604 = vadd.f32 0.0, %v4603
        %4605 = vmatmul.bf16.gmra.mxu0 %v4511
        %v4606 = vpop.f32.mrf.mxu0
        %v4607 = vadd.f32 0.0, %v4606
        %v4608 = vpop.f32.mrf.mxu0
        %v4609 = vadd.f32 0.0, %v4608
        %4610 = vdwg.mxu0
        %4611 = vmatpush.bf16.msra.mxu0 0
        %4612 = vmatpush.bf16.msra.mxu0 0
        %4613 = vmatpush.bf16.msra.mxu0 0
        %4614 = vmatpush.bf16.msra.mxu0 0
        %4615 = vmatpush.bf16.msra.mxu0 0
        %4616 = vmatpush.bf16.msra.mxu0 0
        %4617 = vmatpush.bf16.msra.mxu0 0
        %4618 = vmatpush.bf16.msra.mxu0 %v4517
        %4619 = vmatmul.bf16.gmra.mxu0 %v4466
        %v4620 = vpop.f32.mrf.mxu0
        %v4621 = vadd.f32 0.0, %v4620
        %v4622 = vpop.f32.mrf.mxu0
        %v4623 = vadd.f32 0.0, %v4622
        %4624 = vmatmul.bf16.gmra.mxu0 %v4469
        %v4625 = vpop.f32.mrf.mxu0
        %v4626 = vadd.f32 0.0, %v4625
        %v4627 = vpop.f32.mrf.mxu0
        %v4628 = vadd.f32 0.0, %v4627
        %4629 = vmatmul.bf16.gmra.mxu0 %v4472
        %v4630 = vpop.f32.mrf.mxu0
        %v4631 = vadd.f32 0.0, %v4630
        %v4632 = vpop.f32.mrf.mxu0
        %v4633 = vadd.f32 0.0, %v4632
        %4634 = vmatmul.bf16.gmra.mxu0 %v4475
        %v4635 = vpop.f32.mrf.mxu0
        %v4636 = vadd.f32 0.0, %v4635
        %v4637 = vpop.f32.mrf.mxu0
        %v4638 = vadd.f32 0.0, %v4637
        %4639 = vmatmul.bf16.gmra.mxu0 %v4478
        %v4640 = vpop.f32.mrf.mxu0
        %v4641 = vadd.f32 0.0, %v4640
        %v4642 = vpop.f32.mrf.mxu0
        %v4643 = vadd.f32 0.0, %v4642
        %4644 = vmatmul.bf16.gmra.mxu0 %v4481
        %v4645 = vpop.f32.mrf.mxu0
        %v4646 = vadd.f32 0.0, %v4645
        %v4647 = vpop.f32.mrf.mxu0
        %v4648 = vadd.f32 0.0, %v4647
        %4649 = vmatmul.bf16.gmra.mxu0 %v4484
        %v4650 = vpop.f32.mrf.mxu0
        %v4651 = vadd.f32 0.0, %v4650
        %v4652 = vpop.f32.mrf.mxu0
        %v4653 = vadd.f32 0.0, %v4652
        %4654 = vmatmul.bf16.gmra.mxu0 %v4487
        %v4655 = vpop.f32.mrf.mxu0
        %v4656 = vadd.f32 0.0, %v4655
        %v4657 = vpop.f32.mrf.mxu0
        %v4658 = vadd.f32 0.0, %v4657
        %4659 = vmatmul.bf16.gmra.mxu0 %v4490
        %v4660 = vpop.f32.mrf.mxu0
        %v4661 = vadd.f32 0.0, %v4660
        %v4662 = vpop.f32.mrf.mxu0
        %v4663 = vadd.f32 0.0, %v4662
        %4664 = vmatmul.bf16.gmra.mxu0 %v4493
        %v4665 = vpop.f32.mrf.mxu0
        %v4666 = vadd.f32 0.0, %v4665
        %v4667 = vpop.f32.mrf.mxu0
        %v4668 = vadd.f32 0.0, %v4667
        %4669 = vmatmul.bf16.gmra.mxu0 %v4496
        %v4670 = vpop.f32.mrf.mxu0
        %v4671 = vadd.f32 0.0, %v4670
        %v4672 = vpop.f32.mrf.mxu0
        %v4673 = vadd.f32 0.0, %v4672
        %4674 = vmatmul.bf16.gmra.mxu0 %v4499
        %v4675 = vpop.f32.mrf.mxu0
        %v4676 = vadd.f32 0.0, %v4675
        %v4677 = vpop.f32.mrf.mxu0
        %v4678 = vadd.f32 0.0, %v4677
        %4679 = vmatmul.bf16.gmra.mxu0 %v4502
        %v4680 = vpop.f32.mrf.mxu0
        %v4681 = vadd.f32 0.0, %v4680
        %v4682 = vpop.f32.mrf.mxu0
        %v4683 = vadd.f32 0.0, %v4682
        %4684 = vmatmul.bf16.gmra.mxu0 %v4505
        %v4685 = vpop.f32.mrf.mxu0
        %v4686 = vadd.f32 0.0, %v4685
        %v4687 = vpop.f32.mrf.mxu0
        %v4688 = vadd.f32 0.0, %v4687
        %4689 = vmatmul.bf16.gmra.mxu0 %v4508
        %v4690 = vpop.f32.mrf.mxu0
        %v4691 = vadd.f32 0.0, %v4690
        %v4692 = vpop.f32.mrf.mxu0
        %v4693 = vadd.f32 0.0, %v4692
        %4694 = vmatmul.bf16.gmra.mxu0 %v4511
        %v4695 = vpop.f32.mrf.mxu0
        %v4696 = vadd.f32 0.0, %v4695
        %v4697 = vpop.f32.mrf.mxu0
        %v4698 = vadd.f32 0.0, %v4697
        %4699 = vdwg.mxu0
        %4700 = vmatpush.bf16.msra.mxu0 0
        %4701 = vmatpush.bf16.msra.mxu0 0
        %4702 = vmatpush.bf16.msra.mxu0 0
        %4703 = vmatpush.bf16.msra.mxu0 0
        %4704 = vmatpush.bf16.msra.mxu0 0
        %4705 = vmatpush.bf16.msra.mxu0 0
        %4706 = vmatpush.bf16.msra.mxu0 0
        %4707 = vmatpush.bf16.msra.mxu0 %v4520
        %4708 = vmatmul.bf16.gmra.mxu0 %v4466
        %v4709 = vpop.f32.mrf.mxu0
        %v4710 = vadd.f32 0.0, %v4709
        %v4711 = vpop.f32.mrf.mxu0
        %v4712 = vadd.f32 0.0, %v4711
        %4713 = vmatmul.bf16.gmra.mxu0 %v4469
        %v4714 = vpop.f32.mrf.mxu0
        %v4715 = vadd.f32 0.0, %v4714
        %v4716 = vpop.f32.mrf.mxu0
        %v4717 = vadd.f32 0.0, %v4716
        %4718 = vmatmul.bf16.gmra.mxu0 %v4472
        %v4719 = vpop.f32.mrf.mxu0
        %v4720 = vadd.f32 0.0, %v4719
        %v4721 = vpop.f32.mrf.mxu0
        %v4722 = vadd.f32 0.0, %v4721
        %4723 = vmatmul.bf16.gmra.mxu0 %v4475
        %v4724 = vpop.f32.mrf.mxu0
        %v4725 = vadd.f32 0.0, %v4724
        %v4726 = vpop.f32.mrf.mxu0
        %v4727 = vadd.f32 0.0, %v4726
        %4728 = vmatmul.bf16.gmra.mxu0 %v4478
        %v4729 = vpop.f32.mrf.mxu0
        %v4730 = vadd.f32 0.0, %v4729
        %v4731 = vpop.f32.mrf.mxu0
        %v4732 = vadd.f32 0.0, %v4731
        %4733 = vmatmul.bf16.gmra.mxu0 %v4481
        %v4734 = vpop.f32.mrf.mxu0
        %v4735 = vadd.f32 0.0, %v4734
        %v4736 = vpop.f32.mrf.mxu0
        %v4737 = vadd.f32 0.0, %v4736
        %4738 = vmatmul.bf16.gmra.mxu0 %v4484
        %v4739 = vpop.f32.mrf.mxu0
        %v4740 = vadd.f32 0.0, %v4739
        %v4741 = vpop.f32.mrf.mxu0
        %v4742 = vadd.f32 0.0, %v4741
        %4743 = vmatmul.bf16.gmra.mxu0 %v4487
        %v4744 = vpop.f32.mrf.mxu0
        %v4745 = vadd.f32 0.0, %v4744
        %v4746 = vpop.f32.mrf.mxu0
        %v4747 = vadd.f32 0.0, %v4746
        %4748 = vmatmul.bf16.gmra.mxu0 %v4490
        %v4749 = vpop.f32.mrf.mxu0
        %v4750 = vadd.f32 0.0, %v4749
        %v4751 = vpop.f32.mrf.mxu0
        %v4752 = vadd.f32 0.0, %v4751
        %4753 = vmatmul.bf16.gmra.mxu0 %v4493
        %v4754 = vpop.f32.mrf.mxu0
        %v4755 = vadd.f32 0.0, %v4754
        %v4756 = vpop.f32.mrf.mxu0
        %v4757 = vadd.f32 0.0, %v4756
        %4758 = vmatmul.bf16.gmra.mxu0 %v4496
        %v4759 = vpop.f32.mrf.mxu0
        %v4760 = vadd.f32 0.0, %v4759
        %v4761 = vpop.f32.mrf.mxu0
        %v4762 = vadd.f32 0.0, %v4761
        %4763 = vmatmul.bf16.gmra.mxu0 %v4499
        %v4764 = vpop.f32.mrf.mxu0
        %v4765 = vadd.f32 0.0, %v4764
        %v4766 = vpop.f32.mrf.mxu0
        %v4767 = vadd.f32 0.0, %v4766
        %4768 = vmatmul.bf16.gmra.mxu0 %v4502
        %v4769 = vpop.f32.mrf.mxu0
        %v4770 = vadd.f32 0.0, %v4769
        %v4771 = vpop.f32.mrf.mxu0
        %v4772 = vadd.f32 0.0, %v4771
        %4773 = vmatmul.bf16.gmra.mxu0 %v4505
        %v4774 = vpop.f32.mrf.mxu0
        %v4775 = vadd.f32 0.0, %v4774
        %v4776 = vpop.f32.mrf.mxu0
        %v4777 = vadd.f32 0.0, %v4776
        %4778 = vmatmul.bf16.gmra.mxu0 %v4508
        %v4779 = vpop.f32.mrf.mxu0
        %v4780 = vadd.f32 0.0, %v4779
        %v4781 = vpop.f32.mrf.mxu0
        %v4782 = vadd.f32 0.0, %v4781
        %4783 = vmatmul.bf16.gmra.mxu0 %v4511
        %v4784 = vpop.f32.mrf.mxu0
        %v4785 = vadd.f32 0.0, %v4784
        %v4786 = vpop.f32.mrf.mxu0
        %v4787 = vadd.f32 0.0, %v4786
        %4788 = vdwg.mxu0
        %v4789 = vadd.f32 %v4238, %v4532
        %v4790 = vadd.f32 %v4239, %v4621
        %v4791 = vadd.f32 %v4240, %v4710
        %v4792 = vadd.f32 %v4241, %v4534
        %v4793 = vadd.f32 %v4242, %v4623
        %v4794 = vadd.f32 %v4243, %v4712
        %v4795 = vadd.f32 %v4244, %v4537
        %v4796 = vadd.f32 %v4245, %v4626
        %v4797 = vadd.f32 %v4246, %v4715
        %v4798 = vadd.f32 %v4247, %v4539
        %v4799 = vadd.f32 %v4248, %v4628
        %v4800 = vadd.f32 %v4249, %v4717
        %v4801 = vadd.f32 %v4250, %v4542
        %v4802 = vadd.f32 %v4251, %v4631
        %v4803 = vadd.f32 %v4252, %v4720
        %v4804 = vadd.f32 %v4253, %v4544
        %v4805 = vadd.f32 %v4254, %v4633
        %v4806 = vadd.f32 %v4255, %v4722
        %v4807 = vadd.f32 %v4256, %v4547
        %v4808 = vadd.f32 %v4257, %v4636
        %v4809 = vadd.f32 %v4258, %v4725
        %v4810 = vadd.f32 %v4259, %v4549
        %v4811 = vadd.f32 %v4260, %v4638
        %v4812 = vadd.f32 %v4261, %v4727
        %v4813 = vadd.f32 %v4262, %v4552
        %v4814 = vadd.f32 %v4263, %v4641
        %v4815 = vadd.f32 %v4264, %v4730
        %v4816 = vadd.f32 %v4265, %v4554
        %v4817 = vadd.f32 %v4266, %v4643
        %v4818 = vadd.f32 %v4267, %v4732
        %v4819 = vadd.f32 %v4268, %v4557
        %v4820 = vadd.f32 %v4269, %v4646
        %v4821 = vadd.f32 %v4270, %v4735
        %v4822 = vadd.f32 %v4271, %v4559
        %v4823 = vadd.f32 %v4272, %v4648
        %v4824 = vadd.f32 %v4273, %v4737
        %v4825 = vadd.f32 %v4274, %v4562
        %v4826 = vadd.f32 %v4275, %v4651
        %v4827 = vadd.f32 %v4276, %v4740
        %v4828 = vadd.f32 %v4277, %v4564
        %v4829 = vadd.f32 %v4278, %v4653
        %v4830 = vadd.f32 %v4279, %v4742
        %v4831 = vadd.f32 %v4280, %v4567
        %v4832 = vadd.f32 %v4281, %v4656
        %v4833 = vadd.f32 %v4282, %v4745
        %v4834 = vadd.f32 %v4283, %v4569
        %v4835 = vadd.f32 %v4284, %v4658
        %v4836 = vadd.f32 %v4285, %v4747
        %v4837 = vadd.f32 %v4286, %v4572
        %v4838 = vadd.f32 %v4287, %v4661
        %v4839 = vadd.f32 %v4288, %v4750
        %v4840 = vadd.f32 %v4289, %v4574
        %v4841 = vadd.f32 %v4290, %v4663
        %v4842 = vadd.f32 %v4291, %v4752
        %v4843 = vadd.f32 %v4292, %v4577
        %v4844 = vadd.f32 %v4293, %v4666
        %v4845 = vadd.f32 %v4294, %v4755
        %v4846 = vadd.f32 %v4295, %v4579
        %v4847 = vadd.f32 %v4296, %v4668
        %v4848 = vadd.f32 %v4297, %v4757
        %v4849 = vadd.f32 %v4298, %v4582
        %v4850 = vadd.f32 %v4299, %v4671
        %v4851 = vadd.f32 %v4300, %v4760
        %v4852 = vadd.f32 %v4301, %v4584
        %v4853 = vadd.f32 %v4302, %v4673
        %v4854 = vadd.f32 %v4303, %v4762
        %v4855 = vadd.f32 %v4304, %v4587
        %v4856 = vadd.f32 %v4305, %v4676
        %v4857 = vadd.f32 %v4306, %v4765
        %v4858 = vadd.f32 %v4307, %v4589
        %v4859 = vadd.f32 %v4308, %v4678
        %v4860 = vadd.f32 %v4309, %v4767
        %v4861 = vadd.f32 %v4310, %v4592
        %v4862 = vadd.f32 %v4311, %v4681
        %v4863 = vadd.f32 %v4312, %v4770
        %v4864 = vadd.f32 %v4313, %v4594
        %v4865 = vadd.f32 %v4314, %v4683
        %v4866 = vadd.f32 %v4315, %v4772
        %v4867 = vadd.f32 %v4316, %v4597
        %v4868 = vadd.f32 %v4317, %v4686
        %v4869 = vadd.f32 %v4318, %v4775
        %v4870 = vadd.f32 %v4319, %v4599
        %v4871 = vadd.f32 %v4320, %v4688
        %v4872 = vadd.f32 %v4321, %v4777
        %v4873 = vadd.f32 %v4322, %v4602
        %v4874 = vadd.f32 %v4323, %v4691
        %v4875 = vadd.f32 %v4324, %v4780
        %v4876 = vadd.f32 %v4325, %v4604
        %v4877 = vadd.f32 %v4326, %v4693
        %v4878 = vadd.f32 %v4327, %v4782
        %v4879 = vadd.f32 %v4328, %v4607
        %v4880 = vadd.f32 %v4329, %v4696
        %v4881 = vadd.f32 %v4330, %v4785
        %v4882 = vadd.f32 %v4331, %v4609
        %v4883 = vadd.f32 %v4332, %v4698
        %v4884 = vadd.f32 %v4333, %v4787
        %v4885 = vld [vmem:[%s288] sm:$0x3f]
        %s4886 = scalar_lea.vmem %s292, 1024
        %v4887 = vld [vmem:[%s4886] sm:$0xf]
        %v4888 = vld [vmem:[%s4886 + $0x4] sm:$0xf]
        %v4889 = vld [vmem:[%s4886 + $0x8] sm:$0xf]
        %v4890 = vld [vmem:[%s4886 + $0xc] sm:$0xf]
        %v4891 = vld [vmem:[%s4886 + $0x10] sm:$0xf]
        %v4892 = vld [vmem:[%s4886 + $0x14] sm:$0xf]
        %v4893 = vld [vmem:[%s4886 + $0x18] sm:$0xf]
        %v4894 = vld [vmem:[%s4886 + $0x1c] sm:$0xf]
        %v4895 = vld [vmem:[%s4886 + $0x20] sm:$0xf]
        %v4896 = vld [vmem:[%s4886 + $0x24] sm:$0xf]
        %v4897 = vld [vmem:[%s4886 + $0x28] sm:$0xf]
        %v4898 = vld [vmem:[%s4886 + $0x2c] sm:$0xf]
        %v4899 = vld [vmem:[%s4886 + $0x30] sm:$0xf]
        %v4900 = vld [vmem:[%s4886 + $0x34] sm:$0xf]
        %v4901 = vld [vmem:[%s4886 + $0x38] sm:$0xf]
        %v4902 = vld [vmem:[%s4886 + $0x3c] sm:$0xf]
        %v4903 = vld [vmem:[%s4886 + $0x40] sm:$0xf]
        %v4904 = vld [vmem:[%s4886 + $0x44] sm:$0xf]
        %v4905 = vld [vmem:[%s4886 + $0x48] sm:$0xf]
        %v4906 = vld [vmem:[%s4886 + $0x4c] sm:$0xf]
        %v4907 = vld [vmem:[%s4886 + $0x50] sm:$0xf]
        %v4908 = vld [vmem:[%s4886 + $0x54] sm:$0xf]
        %v4909 = vld [vmem:[%s4886 + $0x58] sm:$0xf]
        %v4910 = vld [vmem:[%s4886 + $0x5c] sm:$0xf]
        %v4911 = vld [vmem:[%s4886 + $0x60] sm:$0xf]
        %v4912 = vld [vmem:[%s4886 + $0x64] sm:$0xf]
        %v4913 = vld [vmem:[%s4886 + $0x68] sm:$0xf]
        %v4914 = vld [vmem:[%s4886 + $0x6c] sm:$0xf]
        %v4915 = vld [vmem:[%s4886 + $0x70] sm:$0xf]
        %v4916 = vld [vmem:[%s4886 + $0x74] sm:$0xf]
        %v4917 = vld [vmem:[%s4886 + $0x78] sm:$0xf]
        %v4918 = vld [vmem:[%s4886 + $0x7c] sm:$0xf]
        %v4951 = vunpack.c.l.b16 %v4887
        %v4952 = vunpack.c.l.b16 %v4888
        %v4953 = vunpack.c.l.b16 %v4889
        %v4954 = vunpack.c.l.b16 %v4890
        %v4955 = vunpack.c.l.b16 %v4891
        %v4956 = vunpack.c.l.b16 %v4892
        %v4957 = vunpack.c.l.b16 %v4893
        %v4958 = vunpack.c.l.b16 %v4894
        %v4959 = vunpack.c.l.b16 %v4895
        %v4960 = vunpack.c.l.b16 %v4896
        %v4961 = vunpack.c.l.b16 %v4897
        %v4962 = vunpack.c.l.b16 %v4898
        %v4963 = vunpack.c.l.b16 %v4899
        %v4964 = vunpack.c.l.b16 %v4900
        %v4965 = vunpack.c.l.b16 %v4901
        %v4966 = vunpack.c.l.b16 %v4902
        %v4967 = vunpack.c.l.b16 %v4903
        %v4968 = vunpack.c.l.b16 %v4904
        %v4969 = vunpack.c.l.b16 %v4905
        %v4970 = vunpack.c.l.b16 %v4906
        %v4971 = vunpack.c.l.b16 %v4907
        %v4972 = vunpack.c.l.b16 %v4908
        %v4973 = vunpack.c.l.b16 %v4909
        %v4974 = vunpack.c.l.b16 %v4910
        %v4975 = vunpack.c.l.b16 %v4911
        %v4976 = vunpack.c.l.b16 %v4912
        %v4977 = vunpack.c.l.b16 %v4913
        %v4978 = vunpack.c.l.b16 %v4914
        %v4979 = vunpack.c.l.b16 %v4915
        %v4980 = vunpack.c.l.b16 %v4916
        %v4981 = vunpack.c.l.b16 %v4917
        %v4982 = vunpack.c.l.b16 %v4918
        %v4983 = vpack.c.b16 %v4952, %v4951
        %v4984 = vpack.c.b16 %v4954, %v4953
        %v4985 = vpack.c.b16 %v4956, %v4955
        %v4986 = vpack.c.b16 %v4958, %v4957
        %v4987 = vpack.c.b16 %v4960, %v4959
        %v4988 = vpack.c.b16 %v4962, %v4961
        %v4989 = vpack.c.b16 %v4964, %v4963
        %v4990 = vpack.c.b16 %v4966, %v4965
        %v4991 = vpack.c.b16 %v4968, %v4967
        %v4992 = vpack.c.b16 %v4970, %v4969
        %v4993 = vpack.c.b16 %v4972, %v4971
        %v4994 = vpack.c.b16 %v4974, %v4973
        %v4995 = vpack.c.b16 %v4976, %v4975
        %v4996 = vpack.c.b16 %v4978, %v4977
        %v4997 = vpack.c.b16 %v4980, %v4979
        %v4998 = vpack.c.b16 %v4982, %v4981
        %5000 = vst [vmem:[#allocation1] ss:$4 sm:$0xff] %v4885
        %v5001 = vld.sshfl [vmem:[#allocation1] sm:$0xff pattern:$0x73625140]
        %v5003 = vld.sshfl [vmem:[#allocation1 + $0x8] sm:$0xff pattern:$0x73625140]
        %v5005 = vld.sshfl [vmem:[#allocation1 + $0x10] sm:$0xff pattern:$0x73625140]
        %5007 = vrot.lane.b32.xlu0 %v5001, 90
        %v5008 = vpop.permute.xlu0 %5007
        %5009 = vrot.lane.b32.xlu0 %v5003, 90
        %v5010 = vpop.permute.xlu0 %5009
        %5011 = vrot.lane.b32.xlu0 %v5005, 90
        %v5012 = vpop.permute.xlu0 %5011
        %vm5013 = vcmask 736256
        %v5014 = vsel %vm5013, %v5008, %v5010
        %v5015 = vsel %vm5013, %v5010, %v5012
        %v5017 = vsel %vm609, %v4983, 0
        %v5020 = vsel %vm609, %v4984, 0
        %v5023 = vsel %vm609, %v4985, 0
        %v5026 = vsel %vm609, %v4986, 0
        %v5029 = vsel %vm609, %v4987, 0
        %v5032 = vsel %vm609, %v4988, 0
        %v5035 = vsel %vm609, %v4989, 0
        %v5038 = vsel %vm609, %v4990, 0
        %v5041 = vsel %vm609, %v4991, 0
        %v5044 = vsel %vm609, %v4992, 0
        %v5047 = vsel %vm609, %v4993, 0
        %v5050 = vsel %vm609, %v4994, 0
        %v5053 = vsel %vm609, %v4995, 0
        %v5056 = vsel %vm609, %v4996, 0
        %v5059 = vsel %vm609, %v4997, 0
        %v5062 = vsel %vm609, %v4998, 0
        %v5065 = vsel %vm658, %v5014, 0
        %v5068 = vsel %vm658, %v5015, 0
        %v5071 = vsel %vm658, %v5012, 0
        %5073 = vmatpush.bf16.msra.mxu0 0
        %5074 = vmatpush.bf16.msra.mxu0 0
        %5075 = vmatpush.bf16.msra.mxu0 0
        %5076 = vmatpush.bf16.msra.mxu0 0
        %5077 = vmatpush.bf16.msra.mxu0 0
        %5078 = vmatpush.bf16.msra.mxu0 0
        %5079 = vmatpush.bf16.msra.mxu0 0
        %5080 = vmatpush.bf16.msra.mxu0 %v5065
        %5081 = vmatmul.bf16.gmra.mxu0 %v5017
        %v5082 = vpop.f32.mrf.mxu0
        %v5083 = vadd.f32 0.0, %v5082
        %v5084 = vpop.f32.mrf.mxu0
        %v5085 = vadd.f32 0.0, %v5084
        %5086 = vmatmul.bf16.gmra.mxu0 %v5020
        %v5087 = vpop.f32.mrf.mxu0
        %v5088 = vadd.f32 0.0, %v5087
        %v5089 = vpop.f32.mrf.mxu0
        %v5090 = vadd.f32 0.0, %v5089
        %5091 = vmatmul.bf16.gmra.mxu0 %v5023
        %v5092 = vpop.f32.mrf.mxu0
        %v5093 = vadd.f32 0.0, %v5092
        %v5094 = vpop.f32.mrf.mxu0
        %v5095 = vadd.f32 0.0, %v5094
        %5096 = vmatmul.bf16.gmra.mxu0 %v5026
        %v5097 = vpop.f32.mrf.mxu0
        %v5098 = vadd.f32 0.0, %v5097
        %v5099 = vpop.f32.mrf.mxu0
        %v5100 = vadd.f32 0.0, %v5099
        %5101 = vmatmul.bf16.gmra.mxu0 %v5029
        %v5102 = vpop.f32.mrf.mxu0
        %v5103 = vadd.f32 0.0, %v5102
        %v5104 = vpop.f32.mrf.mxu0
        %v5105 = vadd.f32 0.0, %v5104
        %5106 = vmatmul.bf16.gmra.mxu0 %v5032
        %v5107 = vpop.f32.mrf.mxu0
        %v5108 = vadd.f32 0.0, %v5107
        %v5109 = vpop.f32.mrf.mxu0
        %v5110 = vadd.f32 0.0, %v5109
        %5111 = vmatmul.bf16.gmra.mxu0 %v5035
        %v5112 = vpop.f32.mrf.mxu0
        %v5113 = vadd.f32 0.0, %v5112
        %v5114 = vpop.f32.mrf.mxu0
        %v5115 = vadd.f32 0.0, %v5114
        %5116 = vmatmul.bf16.gmra.mxu0 %v5038
        %v5117 = vpop.f32.mrf.mxu0
        %v5118 = vadd.f32 0.0, %v5117
        %v5119 = vpop.f32.mrf.mxu0
        %v5120 = vadd.f32 0.0, %v5119
        %5121 = vmatmul.bf16.gmra.mxu0 %v5041
        %v5122 = vpop.f32.mrf.mxu0
        %v5123 = vadd.f32 0.0, %v5122
        %v5124 = vpop.f32.mrf.mxu0
        %v5125 = vadd.f32 0.0, %v5124
        %5126 = vmatmul.bf16.gmra.mxu0 %v5044
        %v5127 = vpop.f32.mrf.mxu0
        %v5128 = vadd.f32 0.0, %v5127
        %v5129 = vpop.f32.mrf.mxu0
        %v5130 = vadd.f32 0.0, %v5129
        %5131 = vmatmul.bf16.gmra.mxu0 %v5047
        %v5132 = vpop.f32.mrf.mxu0
        %v5133 = vadd.f32 0.0, %v5132
        %v5134 = vpop.f32.mrf.mxu0
        %v5135 = vadd.f32 0.0, %v5134
        %5136 = vmatmul.bf16.gmra.mxu0 %v5050
        %v5137 = vpop.f32.mrf.mxu0
        %v5138 = vadd.f32 0.0, %v5137
        %v5139 = vpop.f32.mrf.mxu0
        %v5140 = vadd.f32 0.0, %v5139
        %5141 = vmatmul.bf16.gmra.mxu0 %v5053
        %v5142 = vpop.f32.mrf.mxu0
        %v5143 = vadd.f32 0.0, %v5142
        %v5144 = vpop.f32.mrf.mxu0
        %v5145 = vadd.f32 0.0, %v5144
        %5146 = vmatmul.bf16.gmra.mxu0 %v5056
        %v5147 = vpop.f32.mrf.mxu0
        %v5148 = vadd.f32 0.0, %v5147
        %v5149 = vpop.f32.mrf.mxu0
        %v5150 = vadd.f32 0.0, %v5149
        %5151 = vmatmul.bf16.gmra.mxu0 %v5059
        %v5152 = vpop.f32.mrf.mxu0
        %v5153 = vadd.f32 0.0, %v5152
        %v5154 = vpop.f32.mrf.mxu0
        %v5155 = vadd.f32 0.0, %v5154
        %5156 = vmatmul.bf16.gmra.mxu0 %v5062
        %v5157 = vpop.f32.mrf.mxu0
        %v5158 = vadd.f32 0.0, %v5157
        %v5159 = vpop.f32.mrf.mxu0
        %v5160 = vadd.f32 0.0, %v5159
        %5161 = vdwg.mxu0
        %5162 = vmatpush.bf16.msra.mxu0 0
        %5163 = vmatpush.bf16.msra.mxu0 0
        %5164 = vmatpush.bf16.msra.mxu0 0
        %5165 = vmatpush.bf16.msra.mxu0 0
        %5166 = vmatpush.bf16.msra.mxu0 0
        %5167 = vmatpush.bf16.msra.mxu0 0
        %5168 = vmatpush.bf16.msra.mxu0 0
        %5169 = vmatpush.bf16.msra.mxu0 %v5068
        %5170 = vmatmul.bf16.gmra.mxu0 %v5017
        %v5171 = vpop.f32.mrf.mxu0
        %v5172 = vadd.f32 0.0, %v5171
        %v5173 = vpop.f32.mrf.mxu0
        %v5174 = vadd.f32 0.0, %v5173
        %5175 = vmatmul.bf16.gmra.mxu0 %v5020
        %v5176 = vpop.f32.mrf.mxu0
        %v5177 = vadd.f32 0.0, %v5176
        %v5178 = vpop.f32.mrf.mxu0
        %v5179 = vadd.f32 0.0, %v5178
        %5180 = vmatmul.bf16.gmra.mxu0 %v5023
        %v5181 = vpop.f32.mrf.mxu0
        %v5182 = vadd.f32 0.0, %v5181
        %v5183 = vpop.f32.mrf.mxu0
        %v5184 = vadd.f32 0.0, %v5183
        %5185 = vmatmul.bf16.gmra.mxu0 %v5026
        %v5186 = vpop.f32.mrf.mxu0
        %v5187 = vadd.f32 0.0, %v5186
        %v5188 = vpop.f32.mrf.mxu0
        %v5189 = vadd.f32 0.0, %v5188
        %5190 = vmatmul.bf16.gmra.mxu0 %v5029
        %v5191 = vpop.f32.mrf.mxu0
        %v5192 = vadd.f32 0.0, %v5191
        %v5193 = vpop.f32.mrf.mxu0
        %v5194 = vadd.f32 0.0, %v5193
        %5195 = vmatmul.bf16.gmra.mxu0 %v5032
        %v5196 = vpop.f32.mrf.mxu0
        %v5197 = vadd.f32 0.0, %v5196
        %v5198 = vpop.f32.mrf.mxu0
        %v5199 = vadd.f32 0.0, %v5198
        %5200 = vmatmul.bf16.gmra.mxu0 %v5035
        %v5201 = vpop.f32.mrf.mxu0
        %v5202 = vadd.f32 0.0, %v5201
        %v5203 = vpop.f32.mrf.mxu0
        %v5204 = vadd.f32 0.0, %v5203
        %5205 = vmatmul.bf16.gmra.mxu0 %v5038
        %v5206 = vpop.f32.mrf.mxu0
        %v5207 = vadd.f32 0.0, %v5206
        %v5208 = vpop.f32.mrf.mxu0
        %v5209 = vadd.f32 0.0, %v5208
        %5210 = vmatmul.bf16.gmra.mxu0 %v5041
        %v5211 = vpop.f32.mrf.mxu0
        %v5212 = vadd.f32 0.0, %v5211
        %v5213 = vpop.f32.mrf.mxu0
        %v5214 = vadd.f32 0.0, %v5213
        %5215 = vmatmul.bf16.gmra.mxu0 %v5044
        %v5216 = vpop.f32.mrf.mxu0
        %v5217 = vadd.f32 0.0, %v5216
        %v5218 = vpop.f32.mrf.mxu0
        %v5219 = vadd.f32 0.0, %v5218
        %5220 = vmatmul.bf16.gmra.mxu0 %v5047
        %v5221 = vpop.f32.mrf.mxu0
        %v5222 = vadd.f32 0.0, %v5221
        %v5223 = vpop.f32.mrf.mxu0
        %v5224 = vadd.f32 0.0, %v5223
        %5225 = vmatmul.bf16.gmra.mxu0 %v5050
        %v5226 = vpop.f32.mrf.mxu0
        %v5227 = vadd.f32 0.0, %v5226
        %v5228 = vpop.f32.mrf.mxu0
        %v5229 = vadd.f32 0.0, %v5228
        %5230 = vmatmul.bf16.gmra.mxu0 %v5053
        %v5231 = vpop.f32.mrf.mxu0
        %v5232 = vadd.f32 0.0, %v5231
        %v5233 = vpop.f32.mrf.mxu0
        %v5234 = vadd.f32 0.0, %v5233
        %5235 = vmatmul.bf16.gmra.mxu0 %v5056
        %v5236 = vpop.f32.mrf.mxu0
        %v5237 = vadd.f32 0.0, %v5236
        %v5238 = vpop.f32.mrf.mxu0
        %v5239 = vadd.f32 0.0, %v5238
        %5240 = vmatmul.bf16.gmra.mxu0 %v5059
        %v5241 = vpop.f32.mrf.mxu0
        %v5242 = vadd.f32 0.0, %v5241
        %v5243 = vpop.f32.mrf.mxu0
        %v5244 = vadd.f32 0.0, %v5243
        %5245 = vmatmul.bf16.gmra.mxu0 %v5062
        %v5246 = vpop.f32.mrf.mxu0
        %v5247 = vadd.f32 0.0, %v5246
        %v5248 = vpop.f32.mrf.mxu0
        %v5249 = vadd.f32 0.0, %v5248
        %5250 = vdwg.mxu0
        %5251 = vmatpush.bf16.msra.mxu0 0
        %5252 = vmatpush.bf16.msra.mxu0 0
        %5253 = vmatpush.bf16.msra.mxu0 0
        %5254 = vmatpush.bf16.msra.mxu0 0
        %5255 = vmatpush.bf16.msra.mxu0 0
        %5256 = vmatpush.bf16.msra.mxu0 0
        %5257 = vmatpush.bf16.msra.mxu0 0
        %5258 = vmatpush.bf16.msra.mxu0 %v5071
        %5259 = vmatmul.bf16.gmra.mxu0 %v5017
        %v5260 = vpop.f32.mrf.mxu0
        %v5261 = vadd.f32 0.0, %v5260
        %v5262 = vpop.f32.mrf.mxu0
        %v5263 = vadd.f32 0.0, %v5262
        %5264 = vmatmul.bf16.gmra.mxu0 %v5020
        %v5265 = vpop.f32.mrf.mxu0
        %v5266 = vadd.f32 0.0, %v5265
        %v5267 = vpop.f32.mrf.mxu0
        %v5268 = vadd.f32 0.0, %v5267
        %5269 = vmatmul.bf16.gmra.mxu0 %v5023
        %v5270 = vpop.f32.mrf.mxu0
        %v5271 = vadd.f32 0.0, %v5270
        %v5272 = vpop.f32.mrf.mxu0
        %v5273 = vadd.f32 0.0, %v5272
        %5274 = vmatmul.bf16.gmra.mxu0 %v5026
        %v5275 = vpop.f32.mrf.mxu0
        %v5276 = vadd.f32 0.0, %v5275
        %v5277 = vpop.f32.mrf.mxu0
        %v5278 = vadd.f32 0.0, %v5277
        %5279 = vmatmul.bf16.gmra.mxu0 %v5029
        %v5280 = vpop.f32.mrf.mxu0
        %v5281 = vadd.f32 0.0, %v5280
        %v5282 = vpop.f32.mrf.mxu0
        %v5283 = vadd.f32 0.0, %v5282
        %5284 = vmatmul.bf16.gmra.mxu0 %v5032
        %v5285 = vpop.f32.mrf.mxu0
        %v5286 = vadd.f32 0.0, %v5285
        %v5287 = vpop.f32.mrf.mxu0
        %v5288 = vadd.f32 0.0, %v5287
        %5289 = vmatmul.bf16.gmra.mxu0 %v5035
        %v5290 = vpop.f32.mrf.mxu0
        %v5291 = vadd.f32 0.0, %v5290
        %v5292 = vpop.f32.mrf.mxu0
        %v5293 = vadd.f32 0.0, %v5292
        %5294 = vmatmul.bf16.gmra.mxu0 %v5038
        %v5295 = vpop.f32.mrf.mxu0
        %v5296 = vadd.f32 0.0, %v5295
        %v5297 = vpop.f32.mrf.mxu0
        %v5298 = vadd.f32 0.0, %v5297
        %5299 = vmatmul.bf16.gmra.mxu0 %v5041
        %v5300 = vpop.f32.mrf.mxu0
        %v5301 = vadd.f32 0.0, %v5300
        %v5302 = vpop.f32.mrf.mxu0
        %v5303 = vadd.f32 0.0, %v5302
        %5304 = vmatmul.bf16.gmra.mxu0 %v5044
        %v5305 = vpop.f32.mrf.mxu0
        %v5306 = vadd.f32 0.0, %v5305
        %v5307 = vpop.f32.mrf.mxu0
        %v5308 = vadd.f32 0.0, %v5307
        %5309 = vmatmul.bf16.gmra.mxu0 %v5047
        %v5310 = vpop.f32.mrf.mxu0
        %v5311 = vadd.f32 0.0, %v5310
        %v5312 = vpop.f32.mrf.mxu0
        %v5313 = vadd.f32 0.0, %v5312
        %5314 = vmatmul.bf16.gmra.mxu0 %v5050
        %v5315 = vpop.f32.mrf.mxu0
        %v5316 = vadd.f32 0.0, %v5315
        %v5317 = vpop.f32.mrf.mxu0
        %v5318 = vadd.f32 0.0, %v5317
        %5319 = vmatmul.bf16.gmra.mxu0 %v5053
        %v5320 = vpop.f32.mrf.mxu0
        %v5321 = vadd.f32 0.0, %v5320
        %v5322 = vpop.f32.mrf.mxu0
        %v5323 = vadd.f32 0.0, %v5322
        %5324 = vmatmul.bf16.gmra.mxu0 %v5056
        %v5325 = vpop.f32.mrf.mxu0
        %v5326 = vadd.f32 0.0, %v5325
        %v5327 = vpop.f32.mrf.mxu0
        %v5328 = vadd.f32 0.0, %v5327
        %5329 = vmatmul.bf16.gmra.mxu0 %v5059
        %v5330 = vpop.f32.mrf.mxu0
        %v5331 = vadd.f32 0.0, %v5330
        %v5332 = vpop.f32.mrf.mxu0
        %v5333 = vadd.f32 0.0, %v5332
        %5334 = vmatmul.bf16.gmra.mxu0 %v5062
        %v5335 = vpop.f32.mrf.mxu0
        %v5336 = vadd.f32 0.0, %v5335
        %v5337 = vpop.f32.mrf.mxu0
        %v5338 = vadd.f32 0.0, %v5337
        %5339 = vdwg.mxu0
        %v5340 = vadd.f32 %v4789, %v5083
        %v5341 = vadd.f32 %v4790, %v5172
        %v5342 = vadd.f32 %v4791, %v5261
        %v5343 = vadd.f32 %v4792, %v5085
        %v5344 = vadd.f32 %v4793, %v5174
        %v5345 = vadd.f32 %v4794, %v5263
        %v5346 = vadd.f32 %v4795, %v5088
        %v5347 = vadd.f32 %v4796, %v5177
        %v5348 = vadd.f32 %v4797, %v5266
        %v5349 = vadd.f32 %v4798, %v5090
        %v5350 = vadd.f32 %v4799, %v5179
        %v5351 = vadd.f32 %v4800, %v5268
        %v5352 = vadd.f32 %v4801, %v5093
        %v5353 = vadd.f32 %v4802, %v5182
        %v5354 = vadd.f32 %v4803, %v5271
        %v5355 = vadd.f32 %v4804, %v5095
        %v5356 = vadd.f32 %v4805, %v5184
        %v5357 = vadd.f32 %v4806, %v5273
        %v5358 = vadd.f32 %v4807, %v5098
        %v5359 = vadd.f32 %v4808, %v5187
        %v5360 = vadd.f32 %v4809, %v5276
        %v5361 = vadd.f32 %v4810, %v5100
        %v5362 = vadd.f32 %v4811, %v5189
        %v5363 = vadd.f32 %v4812, %v5278
        %v5364 = vadd.f32 %v4813, %v5103
        %v5365 = vadd.f32 %v4814, %v5192
        %v5366 = vadd.f32 %v4815, %v5281
        %v5367 = vadd.f32 %v4816, %v5105
        %v5368 = vadd.f32 %v4817, %v5194
        %v5369 = vadd.f32 %v4818, %v5283
        %v5370 = vadd.f32 %v4819, %v5108
        %v5371 = vadd.f32 %v4820, %v5197
        %v5372 = vadd.f32 %v4821, %v5286
        %v5373 = vadd.f32 %v4822, %v5110
        %v5374 = vadd.f32 %v4823, %v5199
        %v5375 = vadd.f32 %v4824, %v5288
        %v5376 = vadd.f32 %v4825, %v5113
        %v5377 = vadd.f32 %v4826, %v5202
        %v5378 = vadd.f32 %v4827, %v5291
        %v5379 = vadd.f32 %v4828, %v5115
        %v5380 = vadd.f32 %v4829, %v5204
        %v5381 = vadd.f32 %v4830, %v5293
        %v5382 = vadd.f32 %v4831, %v5118
        %v5383 = vadd.f32 %v4832, %v5207
        %v5384 = vadd.f32 %v4833, %v5296
        %v5385 = vadd.f32 %v4834, %v5120
        %v5386 = vadd.f32 %v4835, %v5209
        %v5387 = vadd.f32 %v4836, %v5298
        %v5388 = vadd.f32 %v4837, %v5123
        %v5389 = vadd.f32 %v4838, %v5212
        %v5390 = vadd.f32 %v4839, %v5301
        %v5391 = vadd.f32 %v4840, %v5125
        %v5392 = vadd.f32 %v4841, %v5214
        %v5393 = vadd.f32 %v4842, %v5303
        %v5394 = vadd.f32 %v4843, %v5128
        %v5395 = vadd.f32 %v4844, %v5217
        %v5396 = vadd.f32 %v4845, %v5306
        %v5397 = vadd.f32 %v4846, %v5130
        %v5398 = vadd.f32 %v4847, %v5219
        %v5399 = vadd.f32 %v4848, %v5308
        %v5400 = vadd.f32 %v4849, %v5133
        %v5401 = vadd.f32 %v4850, %v5222
        %v5402 = vadd.f32 %v4851, %v5311
        %v5403 = vadd.f32 %v4852, %v5135
        %v5404 = vadd.f32 %v4853, %v5224
        %v5405 = vadd.f32 %v4854, %v5313
        %v5406 = vadd.f32 %v4855, %v5138
        %v5407 = vadd.f32 %v4856, %v5227
        %v5408 = vadd.f32 %v4857, %v5316
        %v5409 = vadd.f32 %v4858, %v5140
        %v5410 = vadd.f32 %v4859, %v5229
        %v5411 = vadd.f32 %v4860, %v5318
        %v5412 = vadd.f32 %v4861, %v5143
        %v5413 = vadd.f32 %v4862, %v5232
        %v5414 = vadd.f32 %v4863, %v5321
        %v5415 = vadd.f32 %v4864, %v5145
        %v5416 = vadd.f32 %v4865, %v5234
        %v5417 = vadd.f32 %v4866, %v5323
        %v5418 = vadd.f32 %v4867, %v5148
        %v5419 = vadd.f32 %v4868, %v5237
        %v5420 = vadd.f32 %v4869, %v5326
        %v5421 = vadd.f32 %v4870, %v5150
        %v5422 = vadd.f32 %v4871, %v5239
        %v5423 = vadd.f32 %v4872, %v5328
        %v5424 = vadd.f32 %v4873, %v5153
        %v5425 = vadd.f32 %v4874, %v5242
        %v5426 = vadd.f32 %v4875, %v5331
        %v5427 = vadd.f32 %v4876, %v5155
        %v5428 = vadd.f32 %v4877, %v5244
        %v5429 = vadd.f32 %v4878, %v5333
        %v5430 = vadd.f32 %v4879, %v5158
        %v5431 = vadd.f32 %v4880, %v5247
        %v5432 = vadd.f32 %v4881, %v5336
        %v5433 = vadd.f32 %v4882, %v5160
        %v5434 = vadd.f32 %v4883, %v5249
        %v5435 = vadd.f32 %v4884, %v5338
        %5436 = vst [vmem:[#allocation2] sm:$0xff] %v5340
        %5437 = vst [vmem:[#allocation2 + $0x8] sm:$0xff] %v5341
        %vm5438 = vcmask 261120
        %5439 = vst.msk [vmem:[#allocation2 + $0x10] sm:$0xff] %vm5438, %v5342
        %5440 = vst [vmem:[#allocation2 + $0x18] sm:$0xff] %v5343
        %5441 = vst [vmem:[#allocation2 + $0x20] sm:$0xff] %v5344
        %5442 = vst.msk [vmem:[#allocation2 + $0x28] sm:$0xff] %vm5438, %v5345
        %5443 = vst [vmem:[#allocation2 + $0x30] sm:$0xff] %v5346
        %5444 = vst [vmem:[#allocation2 + $0x38] sm:$0xff] %v5347
        %5445 = vst.msk [vmem:[#allocation2 + $0x40] sm:$0xff] %vm5438, %v5348
        %5446 = vst [vmem:[#allocation2 + $0x48] sm:$0xff] %v5349
        %5447 = vst [vmem:[#allocation2 + $0x50] sm:$0xff] %v5350
        %5448 = vst.msk [vmem:[#allocation2 + $0x58] sm:$0xff] %vm5438, %v5351
        %5449 = vst [vmem:[#allocation2 + $0x60] sm:$0xff] %v5352
        %5450 = vst [vmem:[#allocation2 + $0x68] sm:$0xff] %v5353
        %5451 = vst.msk [vmem:[#allocation2 + $0x70] sm:$0xff] %vm5438, %v5354
        %5452 = vst [vmem:[#allocation2 + $0x78] sm:$0xff] %v5355
        %5453 = vst [vmem:[#allocation2 + $0x80] sm:$0xff] %v5356
        %5454 = vst.msk [vmem:[#allocation2 + $0x88] sm:$0xff] %vm5438, %v5357
        %5455 = vst [vmem:[#allocation2 + $0x90] sm:$0xff] %v5358
        %5456 = vst [vmem:[#allocation2 + $0x98] sm:$0xff] %v5359
        %5457 = vst.msk [vmem:[#allocation2 + $0xa0] sm:$0xff] %vm5438, %v5360
        %5458 = vst [vmem:[#allocation2 + $0xa8] sm:$0xff] %v5361
        %5459 = vst [vmem:[#allocation2 + $0xb0] sm:$0xff] %v5362
        %5460 = vst.msk [vmem:[#allocation2 + $0xb8] sm:$0xff] %vm5438, %v5363
        %5461 = vst [vmem:[#allocation2 + $0xc0] sm:$0xff] %v5364
        %5462 = vst [vmem:[#allocation2 + $0xc8] sm:$0xff] %v5365
        %5463 = vst.msk [vmem:[#allocation2 + $0xd0] sm:$0xff] %vm5438, %v5366
        %5464 = vst [vmem:[#allocation2 + $0xd8] sm:$0xff] %v5367
        %5465 = vst [vmem:[#allocation2 + $0xe0] sm:$0xff] %v5368
        %5466 = vst.msk [vmem:[#allocation2 + $0xe8] sm:$0xff] %vm5438, %v5369
        %5467 = vst [vmem:[#allocation2 + $0xf0] sm:$0xff] %v5370
        %5468 = vst [vmem:[#allocation2 + $0xf8] sm:$0xff] %v5371
        %5469 = vst.msk [vmem:[#allocation2 + $0x100] sm:$0xff] %vm5438, %v5372
        %5470 = vst [vmem:[#allocation2 + $0x108] sm:$0xff] %v5373
        %5471 = vst [vmem:[#allocation2 + $0x110] sm:$0xff] %v5374
        %5472 = vst.msk [vmem:[#allocation2 + $0x118] sm:$0xff] %vm5438, %v5375
        %5473 = vst [vmem:[#allocation2 + $0x120] sm:$0xff] %v5376
        %5474 = vst [vmem:[#allocation2 + $0x128] sm:$0xff] %v5377
        %5475 = vst.msk [vmem:[#allocation2 + $0x130] sm:$0xff] %vm5438, %v5378
        %5476 = vst [vmem:[#allocation2 + $0x138] sm:$0xff] %v5379
        %5477 = vst [vmem:[#allocation2 + $0x140] sm:$0xff] %v5380
        %5478 = vst.msk [vmem:[#allocation2 + $0x148] sm:$0xff] %vm5438, %v5381
        %5479 = vst [vmem:[#allocation2 + $0x150] sm:$0xff] %v5382
        %5480 = vst [vmem:[#allocation2 + $0x158] sm:$0xff] %v5383
        %5481 = vst.msk [vmem:[#allocation2 + $0x160] sm:$0xff] %vm5438, %v5384
        %5482 = vst [vmem:[#allocation2 + $0x168] sm:$0xff] %v5385
        %5483 = vst [vmem:[#allocation2 + $0x170] sm:$0xff] %v5386
        %5484 = vst.msk [vmem:[#allocation2 + $0x178] sm:$0xff] %vm5438, %v5387
        %5485 = vst [vmem:[#allocation2 + $0x180] sm:$0xff] %v5388
        %5486 = vst [vmem:[#allocation2 + $0x188] sm:$0xff] %v5389
        %5487 = vst.msk [vmem:[#allocation2 + $0x190] sm:$0xff] %vm5438, %v5390
        %5488 = vst [vmem:[#allocation2 + $0x198] sm:$0xff] %v5391
        %5489 = vst [vmem:[#allocation2 + $0x1a0] sm:$0xff] %v5392
        %5490 = vst.msk [vmem:[#allocation2 + $0x1a8] sm:$0xff] %vm5438, %v5393
        %5491 = vst [vmem:[#allocation2 + $0x1b0] sm:$0xff] %v5394
        %5492 = vst [vmem:[#allocation2 + $0x1b8] sm:$0xff] %v5395
        %5493 = vst.msk [vmem:[#allocation2 + $0x1c0] sm:$0xff] %vm5438, %v5396
        %5494 = vst [vmem:[#allocation2 + $0x1c8] sm:$0xff] %v5397
        %5495 = vst [vmem:[#allocation2 + $0x1d0] sm:$0xff] %v5398
        %5496 = vst.msk [vmem:[#allocation2 + $0x1d8] sm:$0xff] %vm5438, %v5399
        %5497 = vst [vmem:[#allocation2 + $0x1e0] sm:$0xff] %v5400
        %5498 = vst [vmem:[#allocation2 + $0x1e8] sm:$0xff] %v5401
        %5499 = vst.msk [vmem:[#allocation2 + $0x1f0] sm:$0xff] %vm5438, %v5402
        %5500 = vst [vmem:[#allocation2 + $0x1f8] sm:$0xff] %v5403
        %5501 = vst [vmem:[#allocation2 + $0x200] sm:$0xff] %v5404
        %5502 = vst.msk [vmem:[#allocation2 + $0x208] sm:$0xff] %vm5438, %v5405
        %5503 = vst [vmem:[#allocation2 + $0x210] sm:$0xff] %v5406
        %5504 = vst [vmem:[#allocation2 + $0x218] sm:$0xff] %v5407
        %5505 = vst.msk [vmem:[#allocation2 + $0x220] sm:$0xff] %vm5438, %v5408
        %5506 = vst [vmem:[#allocation2 + $0x228] sm:$0xff] %v5409
        %5507 = vst [vmem:[#allocation2 + $0x230] sm:$0xff] %v5410
        %5508 = vst.msk [vmem:[#allocation2 + $0x238] sm:$0xff] %vm5438, %v5411
        %5509 = vst [vmem:[#allocation2 + $0x240] sm:$0xff] %v5412
        %5510 = vst [vmem:[#allocation2 + $0x248] sm:$0xff] %v5413
        %5511 = vst.msk [vmem:[#allocation2 + $0x250] sm:$0xff] %vm5438, %v5414
        %5512 = vst [vmem:[#allocation2 + $0x258] sm:$0xff] %v5415
        %5513 = vst [vmem:[#allocation2 + $0x260] sm:$0xff] %v5416
        %5514 = vst.msk [vmem:[#allocation2 + $0x268] sm:$0xff] %vm5438, %v5417
        %5515 = vst [vmem:[#allocation2 + $0x270] sm:$0xff] %v5418
        %5516 = vst [vmem:[#allocation2 + $0x278] sm:$0xff] %v5419
        %5517 = vst.msk [vmem:[#allocation2 + $0x280] sm:$0xff] %vm5438, %v5420
        %5518 = vst [vmem:[#allocation2 + $0x288] sm:$0xff] %v5421
        %5519 = vst [vmem:[#allocation2 + $0x290] sm:$0xff] %v5422
        %5520 = vst.msk [vmem:[#allocation2 + $0x298] sm:$0xff] %vm5438, %v5423
        %5521 = vst [vmem:[#allocation2 + $0x2a0] sm:$0xff] %v5424
        %5522 = vst [vmem:[#allocation2 + $0x2a8] sm:$0xff] %v5425
        %5523 = vst.msk [vmem:[#allocation2 + $0x2b0] sm:$0xff] %vm5438, %v5426
        %5524 = vst [vmem:[#allocation2 + $0x2b8] sm:$0xff] %v5427
        %5525 = vst [vmem:[#allocation2 + $0x2c0] sm:$0xff] %v5428
        %5526 = vst.msk [vmem:[#allocation2 + $0x2c8] sm:$0xff] %vm5438, %v5429
        %5527 = vst [vmem:[#allocation2 + $0x2d0] sm:$0xff] %v5430
        %5528 = vst [vmem:[#allocation2 + $0x2d8] sm:$0xff] %v5431
        %5529 = vst.msk [vmem:[#allocation2 + $0x2e0] sm:$0xff] %vm5438, %v5432
        %5530 = vst [vmem:[#allocation2 + $0x2e8] sm:$0xff] %v5433
        %5531 = vst [vmem:[#allocation2 + $0x2f0] sm:$0xff] %v5434
        %5532 = vst.msk [vmem:[#allocation2 + $0x2f8] sm:$0xff] %vm5438, %v5435
        // Predicated region
        $region49: #{tpu_custom_call.1} parent=43 // pred_check
          %p5533 = pneg %p294
        $region50: #{tpu_custom_call.1} parent=43 // pred_check_branch
          %5535 = sbr.rel (%p5533) target = $region52
        $region51: #{tpu_custom_call.1} parent=43 // pred_region
          %v5536 = vld [vmem:[#allocation2] sm:$0xff]
          %v5537 = vld [vmem:[#allocation2 + $0x8] sm:$0xff]
          %v5538 = vld [vmem:[#allocation2 + $0x10] sm:$0xff]
          %v5539 = vld [vmem:[#allocation2 + $0x18] sm:$0xff]
          %v5540 = vld [vmem:[#allocation2 + $0x20] sm:$0xff]
          %v5541 = vld [vmem:[#allocation2 + $0x28] sm:$0xff]
          %v5542 = vld [vmem:[#allocation2 + $0x30] sm:$0xff]
          %v5543 = vld [vmem:[#allocation2 + $0x38] sm:$0xff]
          %v5544 = vld [vmem:[#allocation2 + $0x40] sm:$0xff]
          %v5545 = vld [vmem:[#allocation2 + $0x48] sm:$0xff]
          %v5546 = vld [vmem:[#allocation2 + $0x50] sm:$0xff]
          %v5547 = vld [vmem:[#allocation2 + $0x58] sm:$0xff]
          %v5548 = vld [vmem:[#allocation2 + $0x60] sm:$0xff]
          %v5549 = vld [vmem:[#allocation2 + $0x68] sm:$0xff]
          %v5550 = vld [vmem:[#allocation2 + $0x70] sm:$0xff]
          %v5551 = vld [vmem:[#allocation2 + $0x78] sm:$0xff]
          %v5552 = vld [vmem:[#allocation2 + $0x80] sm:$0xff]
          %v5553 = vld [vmem:[#allocation2 + $0x88] sm:$0xff]
          %v5554 = vld [vmem:[#allocation2 + $0x90] sm:$0xff]
          %v5555 = vld [vmem:[#allocation2 + $0x98] sm:$0xff]
          %v5556 = vld [vmem:[#allocation2 + $0xa0] sm:$0xff]
          %v5557 = vld [vmem:[#allocation2 + $0xa8] sm:$0xff]
          %v5558 = vld [vmem:[#allocation2 + $0xb0] sm:$0xff]
          %v5559 = vld [vmem:[#allocation2 + $0xb8] sm:$0xff]
          %v5560 = vld [vmem:[#allocation2 + $0xc0] sm:$0xff]
          %v5561 = vld [vmem:[#allocation2 + $0xc8] sm:$0xff]
          %v5562 = vld [vmem:[#allocation2 + $0xd0] sm:$0xff]
          %v5563 = vld [vmem:[#allocation2 + $0xd8] sm:$0xff]
          %v5564 = vld [vmem:[#allocation2 + $0xe0] sm:$0xff]
          %v5565 = vld [vmem:[#allocation2 + $0xe8] sm:$0xff]
          %v5566 = vld [vmem:[#allocation2 + $0xf0] sm:$0xff]
          %v5567 = vld [vmem:[#allocation2 + $0xf8] sm:$0xff]
          %v5568 = vld [vmem:[#allocation2 + $0x100] sm:$0xff]
          %v5569 = vld [vmem:[#allocation2 + $0x108] sm:$0xff]
          %v5570 = vld [vmem:[#allocation2 + $0x110] sm:$0xff]
          %v5571 = vld [vmem:[#allocation2 + $0x118] sm:$0xff]
          %v5572 = vld [vmem:[#allocation2 + $0x120] sm:$0xff]
          %v5573 = vld [vmem:[#allocation2 + $0x128] sm:$0xff]
          %v5574 = vld [vmem:[#allocation2 + $0x130] sm:$0xff]
          %v5575 = vld [vmem:[#allocation2 + $0x138] sm:$0xff]
          %v5576 = vld [vmem:[#allocation2 + $0x140] sm:$0xff]
          %v5577 = vld [vmem:[#allocation2 + $0x148] sm:$0xff]
          %v5578 = vld [vmem:[#allocation2 + $0x150] sm:$0xff]
          %v5579 = vld [vmem:[#allocation2 + $0x158] sm:$0xff]
          %v5580 = vld [vmem:[#allocation2 + $0x160] sm:$0xff]
          %v5581 = vld [vmem:[#allocation2 + $0x168] sm:$0xff]
          %v5582 = vld [vmem:[#allocation2 + $0x170] sm:$0xff]
          %v5583 = vld [vmem:[#allocation2 + $0x178] sm:$0xff]
          %v5584 = vld [vmem:[#allocation2 + $0x180] sm:$0xff]
          %v5585 = vld [vmem:[#allocation2 + $0x188] sm:$0xff]
          %v5586 = vld [vmem:[#allocation2 + $0x190] sm:$0xff]
          %v5587 = vld [vmem:[#allocation2 + $0x198] sm:$0xff]
          %v5588 = vld [vmem:[#allocation2 + $0x1a0] sm:$0xff]
          %v5589 = vld [vmem:[#allocation2 + $0x1a8] sm:$0xff]
          %v5590 = vld [vmem:[#allocation2 + $0x1b0] sm:$0xff]
          %v5591 = vld [vmem:[#allocation2 + $0x1b8] sm:$0xff]
          %v5592 = vld [vmem:[#allocation2 + $0x1c0] sm:$0xff]
          %v5593 = vld [vmem:[#allocation2 + $0x1c8] sm:$0xff]
          %v5594 = vld [vmem:[#allocation2 + $0x1d0] sm:$0xff]
          %v5595 = vld [vmem:[#allocation2 + $0x1d8] sm:$0xff]
          %v5596 = vld [vmem:[#allocation2 + $0x1e0] sm:$0xff]
          %v5597 = vld [vmem:[#allocation2 + $0x1e8] sm:$0xff]
          %v5598 = vld [vmem:[#allocation2 + $0x1f0] sm:$0xff]
          %v5599 = vld [vmem:[#allocation2 + $0x1f8] sm:$0xff]
          %v5600 = vld [vmem:[#allocation2 + $0x200] sm:$0xff]
          %v5601 = vld [vmem:[#allocation2 + $0x208] sm:$0xff]
          %v5602 = vld [vmem:[#allocation2 + $0x210] sm:$0xff]
          %v5603 = vld [vmem:[#allocation2 + $0x218] sm:$0xff]
          %v5604 = vld [vmem:[#allocation2 + $0x220] sm:$0xff]
          %v5605 = vld [vmem:[#allocation2 + $0x228] sm:$0xff]
          %v5606 = vld [vmem:[#allocation2 + $0x230] sm:$0xff]
          %v5607 = vld [vmem:[#allocation2 + $0x238] sm:$0xff]
          %v5608 = vld [vmem:[#allocation2 + $0x240] sm:$0xff]
          %v5609 = vld [vmem:[#allocation2 + $0x248] sm:$0xff]
          %v5610 = vld [vmem:[#allocation2 + $0x250] sm:$0xff]
          %v5611 = vld [vmem:[#allocation2 + $0x258] sm:$0xff]
          %v5612 = vld [vmem:[#allocation2 + $0x260] sm:$0xff]
          %v5613 = vld [vmem:[#allocation2 + $0x268] sm:$0xff]
          %v5614 = vld [vmem:[#allocation2 + $0x270] sm:$0xff]
          %v5615 = vld [vmem:[#allocation2 + $0x278] sm:$0xff]
          %v5616 = vld [vmem:[#allocation2 + $0x280] sm:$0xff]
          %v5617 = vld [vmem:[#allocation2 + $0x288] sm:$0xff]
          %v5618 = vld [vmem:[#allocation2 + $0x290] sm:$0xff]
          %v5619 = vld [vmem:[#allocation2 + $0x298] sm:$0xff]
          %v5620 = vld [vmem:[#allocation2 + $0x2a0] sm:$0xff]
          %v5621 = vld [vmem:[#allocation2 + $0x2a8] sm:$0xff]
          %v5622 = vld [vmem:[#allocation2 + $0x2b0] sm:$0xff]
          %v5623 = vld [vmem:[#allocation2 + $0x2b8] sm:$0xff]
          %v5624 = vld [vmem:[#allocation2 + $0x2c0] sm:$0xff]
          %v5625 = vld [vmem:[#allocation2 + $0x2c8] sm:$0xff]
          %v5626 = vld [vmem:[#allocation2 + $0x2d0] sm:$0xff]
          %v5627 = vld [vmem:[#allocation2 + $0x2d8] sm:$0xff]
          %v5628 = vld [vmem:[#allocation2 + $0x2e0] sm:$0xff]
          %v5629 = vld [vmem:[#allocation2 + $0x2e8] sm:$0xff]
          %v5630 = vld [vmem:[#allocation2 + $0x2f0] sm:$0xff]
          %v5631 = vld [vmem:[#allocation2 + $0x2f8] sm:$0xff]
          %v5632 = vld [vmem:[%s2] sm:$0xff]
          %v5633 = vld [vmem:[%s2 + $0x8] sm:$0xff]
          %v5634 = vld [vmem:[%s2 + $0x10] sm:$0xff]
          %v5635 = vld [vmem:[%s2 + $0x18] sm:$0xff]
          %v5636 = vld [vmem:[%s2 + $0x20] sm:$0xff]
          %v5637 = vld [vmem:[%s2 + $0x28] sm:$0xff]
          %v5638 = vld [vmem:[%s2 + $0x30] sm:$0xff]
          %v5639 = vld [vmem:[%s2 + $0x38] sm:$0xff]
          %v5640 = vld [vmem:[%s2 + $0x40] sm:$0xff]
          %v5641 = vld [vmem:[%s2 + $0x48] sm:$0xff]
          %v5642 = vld [vmem:[%s2 + $0x50] sm:$0xff]
          %v5643 = vld [vmem:[%s2 + $0x58] sm:$0xff]
          %v5644 = vld [vmem:[%s2 + $0x60] sm:$0xff]
          %v5645 = vld [vmem:[%s2 + $0x68] sm:$0xff]
          %v5646 = vld [vmem:[%s2 + $0x70] sm:$0xff]
          %v5647 = vld [vmem:[%s2 + $0x78] sm:$0xff]
          %v5648 = vld [vmem:[%s2 + $0x80] sm:$0xff]
          %v5649 = vld [vmem:[%s2 + $0x88] sm:$0xff]
          %v5650 = vld [vmem:[%s2 + $0x90] sm:$0xff]
          %v5651 = vld [vmem:[%s2 + $0x98] sm:$0xff]
          %v5652 = vld [vmem:[%s2 + $0xa0] sm:$0xff]
          %v5653 = vld [vmem:[%s2 + $0xa8] sm:$0xff]
          %v5654 = vld [vmem:[%s2 + $0xb0] sm:$0xff]
          %v5655 = vld [vmem:[%s2 + $0xb8] sm:$0xff]
          %v5656 = vld [vmem:[%s2 + $0xc0] sm:$0xff]
          %v5657 = vld [vmem:[%s2 + $0xc8] sm:$0xff]
          %v5658 = vld [vmem:[%s2 + $0xd0] sm:$0xff]
          %v5659 = vld [vmem:[%s2 + $0xd8] sm:$0xff]
          %v5660 = vld [vmem:[%s2 + $0xe0] sm:$0xff]
          %v5661 = vld [vmem:[%s2 + $0xe8] sm:$0xff]
          %v5662 = vld [vmem:[%s2 + $0xf0] sm:$0xff]
          %v5663 = vld [vmem:[%s2 + $0xf8] sm:$0xff]
          %5665 = vset.pattern.permute.xlu0 0
          %5666 = vperm.xlu0 %5665, %v5632
          %v5667 = vpop.permute.xlu0 %5666
          %5670 = vset.pattern.permute.xlu0 0
          %5671 = vperm.xlu0 %5670, %v5633
          %v5672 = vpop.permute.xlu0 %5671
          %5675 = vset.pattern.permute.xlu0 0
          %5676 = vperm.xlu0 %5675, %v5634
          %v5677 = vpop.permute.xlu0 %5676
          %5680 = vset.pattern.permute.xlu0 0
          %5681 = vperm.xlu0 %5680, %v5635
          %v5682 = vpop.permute.xlu0 %5681
          %5685 = vset.pattern.permute.xlu0 0
          %5686 = vperm.xlu0 %5685, %v5636
          %v5687 = vpop.permute.xlu0 %5686
          %5690 = vset.pattern.permute.xlu0 0
          %5691 = vperm.xlu0 %5690, %v5637
          %v5692 = vpop.permute.xlu0 %5691
          %5695 = vset.pattern.permute.xlu0 0
          %5696 = vperm.xlu0 %5695, %v5638
          %v5697 = vpop.permute.xlu0 %5696
          %5700 = vset.pattern.permute.xlu0 0
          %5701 = vperm.xlu0 %5700, %v5639
          %v5702 = vpop.permute.xlu0 %5701
          %5705 = vset.pattern.permute.xlu0 0
          %5706 = vperm.xlu0 %5705, %v5640
          %v5707 = vpop.permute.xlu0 %5706
          %5710 = vset.pattern.permute.xlu0 0
          %5711 = vperm.xlu0 %5710, %v5641
          %v5712 = vpop.permute.xlu0 %5711
          %5715 = vset.pattern.permute.xlu0 0
          %5716 = vperm.xlu0 %5715, %v5642
          %v5717 = vpop.permute.xlu0 %5716
          %5720 = vset.pattern.permute.xlu0 0
          %5721 = vperm.xlu0 %5720, %v5643
          %v5722 = vpop.permute.xlu0 %5721
          %5725 = vset.pattern.permute.xlu0 0
          %5726 = vperm.xlu0 %5725, %v5644
          %v5727 = vpop.permute.xlu0 %5726
          %5730 = vset.pattern.permute.xlu0 0
          %5731 = vperm.xlu0 %5730, %v5645
          %v5732 = vpop.permute.xlu0 %5731
          %5735 = vset.pattern.permute.xlu0 0
          %5736 = vperm.xlu0 %5735, %v5646
          %v5737 = vpop.permute.xlu0 %5736
          %5740 = vset.pattern.permute.xlu0 0
          %5741 = vperm.xlu0 %5740, %v5647
          %v5742 = vpop.permute.xlu0 %5741
          %5745 = vset.pattern.permute.xlu0 0
          %5746 = vperm.xlu0 %5745, %v5648
          %v5747 = vpop.permute.xlu0 %5746
          %5750 = vset.pattern.permute.xlu0 0
          %5751 = vperm.xlu0 %5750, %v5649
          %v5752 = vpop.permute.xlu0 %5751
          %5755 = vset.pattern.permute.xlu0 0
          %5756 = vperm.xlu0 %5755, %v5650
          %v5757 = vpop.permute.xlu0 %5756
          %5760 = vset.pattern.permute.xlu0 0
          %5761 = vperm.xlu0 %5760, %v5651
          %v5762 = vpop.permute.xlu0 %5761
          %5765 = vset.pattern.permute.xlu0 0
          %5766 = vperm.xlu0 %5765, %v5652
          %v5767 = vpop.permute.xlu0 %5766
          %5770 = vset.pattern.permute.xlu0 0
          %5771 = vperm.xlu0 %5770, %v5653
          %v5772 = vpop.permute.xlu0 %5771
          %5775 = vset.pattern.permute.xlu0 0
          %5776 = vperm.xlu0 %5775, %v5654
          %v5777 = vpop.permute.xlu0 %5776
          %5780 = vset.pattern.permute.xlu0 0
          %5781 = vperm.xlu0 %5780, %v5655
          %v5782 = vpop.permute.xlu0 %5781
          %5785 = vset.pattern.permute.xlu0 0
          %5786 = vperm.xlu0 %5785, %v5656
          %v5787 = vpop.permute.xlu0 %5786
          %5790 = vset.pattern.permute.xlu0 0
          %5791 = vperm.xlu0 %5790, %v5657
          %v5792 = vpop.permute.xlu0 %5791
          %5795 = vset.pattern.permute.xlu0 0
          %5796 = vperm.xlu0 %5795, %v5658
          %v5797 = vpop.permute.xlu0 %5796
          %5800 = vset.pattern.permute.xlu0 0
          %5801 = vperm.xlu0 %5800, %v5659
          %v5802 = vpop.permute.xlu0 %5801
          %5805 = vset.pattern.permute.xlu0 0
          %5806 = vperm.xlu0 %5805, %v5660
          %v5807 = vpop.permute.xlu0 %5806
          %5810 = vset.pattern.permute.xlu0 0
          %5811 = vperm.xlu0 %5810, %v5661
          %v5812 = vpop.permute.xlu0 %5811
          %5815 = vset.pattern.permute.xlu0 0
          %5816 = vperm.xlu0 %5815, %v5662
          %v5817 = vpop.permute.xlu0 %5816
          %5820 = vset.pattern.permute.xlu0 0
          %5821 = vperm.xlu0 %5820, %v5663
          %v5822 = vpop.permute.xlu0 %5821
          %v5824 = vmul.f32 %v5536, %v5667
          %v5825 = vmul.f32 %v5537, %v5667
          %v5826 = vmul.f32 %v5538, %v5667
          %v5827 = vmul.f32 %v5539, %v5672
          %v5828 = vmul.f32 %v5540, %v5672
          %v5829 = vmul.f32 %v5541, %v5672
          %v5830 = vmul.f32 %v5542, %v5677
          %v5831 = vmul.f32 %v5543, %v5677
          %v5832 = vmul.f32 %v5544, %v5677
          %v5833 = vmul.f32 %v5545, %v5682
          %v5834 = vmul.f32 %v5546, %v5682
          %v5835 = vmul.f32 %v5547, %v5682
          %v5836 = vmul.f32 %v5548, %v5687
          %v5837 = vmul.f32 %v5549, %v5687
          %v5838 = vmul.f32 %v5550, %v5687
          %v5839 = vmul.f32 %v5551, %v5692
          %v5840 = vmul.f32 %v5552, %v5692
          %v5841 = vmul.f32 %v5553, %v5692
          %v5842 = vmul.f32 %v5554, %v5697
          %v5843 = vmul.f32 %v5555, %v5697
          %v5844 = vmul.f32 %v5556, %v5697
          %v5845 = vmul.f32 %v5557, %v5702
          %v5846 = vmul.f32 %v5558, %v5702
          %v5847 = vmul.f32 %v5559, %v5702
          %v5848 = vmul.f32 %v5560, %v5707
          %v5849 = vmul.f32 %v5561, %v5707
          %v5850 = vmul.f32 %v5562, %v5707
          %v5851 = vmul.f32 %v5563, %v5712
          %v5852 = vmul.f32 %v5564, %v5712
          %v5853 = vmul.f32 %v5565, %v5712
          %v5854 = vmul.f32 %v5566, %v5717
          %v5855 = vmul.f32 %v5567, %v5717
          %v5856 = vmul.f32 %v5568, %v5717
          %v5857 = vmul.f32 %v5569, %v5722
          %v5858 = vmul.f32 %v5570, %v5722
          %v5859 = vmul.f32 %v5571, %v5722
          %v5860 = vmul.f32 %v5572, %v5727
          %v5861 = vmul.f32 %v5573, %v5727
          %v5862 = vmul.f32 %v5574, %v5727
          %v5863 = vmul.f32 %v5575, %v5732
          %v5864 = vmul.f32 %v5576, %v5732
          %v5865 = vmul.f32 %v5577, %v5732
          %v5866 = vmul.f32 %v5578, %v5737
          %v5867 = vmul.f32 %v5579, %v5737
          %v5868 = vmul.f32 %v5580, %v5737
          %v5869 = vmul.f32 %v5581, %v5742
          %v5870 = vmul.f32 %v5582, %v5742
          %v5871 = vmul.f32 %v5583, %v5742
          %v5872 = vmul.f32 %v5584, %v5747
          %v5873 = vmul.f32 %v5585, %v5747
          %v5874 = vmul.f32 %v5586, %v5747
          %v5875 = vmul.f32 %v5587, %v5752
          %v5876 = vmul.f32 %v5588, %v5752
          %v5877 = vmul.f32 %v5589, %v5752
          %v5878 = vmul.f32 %v5590, %v5757
          %v5879 = vmul.f32 %v5591, %v5757
          %v5880 = vmul.f32 %v5592, %v5757
          %v5881 = vmul.f32 %v5593, %v5762
          %v5882 = vmul.f32 %v5594, %v5762
          %v5883 = vmul.f32 %v5595, %v5762
          %v5884 = vmul.f32 %v5596, %v5767
          %v5885 = vmul.f32 %v5597, %v5767
          %v5886 = vmul.f32 %v5598, %v5767
          %v5887 = vmul.f32 %v5599, %v5772
          %v5888 = vmul.f32 %v5600, %v5772
          %v5889 = vmul.f32 %v5601, %v5772
          %v5890 = vmul.f32 %v5602, %v5777
          %v5891 = vmul.f32 %v5603, %v5777
          %v5892 = vmul.f32 %v5604, %v5777
          %v5893 = vmul.f32 %v5605, %v5782
          %v5894 = vmul.f32 %v5606, %v5782
          %v5895 = vmul.f32 %v5607, %v5782
          %v5896 = vmul.f32 %v5608, %v5787
          %v5897 = vmul.f32 %v5609, %v5787
          %v5898 = vmul.f32 %v5610, %v5787
          %v5899 = vmul.f32 %v5611, %v5792
          %v5900 = vmul.f32 %v5612, %v5792
          %v5901 = vmul.f32 %v5613, %v5792
          %v5902 = vmul.f32 %v5614, %v5797
          %v5903 = vmul.f32 %v5615, %v5797
          %v5904 = vmul.f32 %v5616, %v5797
          %v5905 = vmul.f32 %v5617, %v5802
          %v5906 = vmul.f32 %v5618, %v5802
          %v5907 = vmul.f32 %v5619, %v5802
          %v5908 = vmul.f32 %v5620, %v5807
          %v5909 = vmul.f32 %v5621, %v5807
          %v5910 = vmul.f32 %v5622, %v5807
          %v5911 = vmul.f32 %v5623, %v5812
          %v5912 = vmul.f32 %v5624, %v5812
          %v5913 = vmul.f32 %v5625, %v5812
          %v5914 = vmul.f32 %v5626, %v5817
          %v5915 = vmul.f32 %v5627, %v5817
          %v5916 = vmul.f32 %v5628, %v5817
          %v5917 = vmul.f32 %v5629, %v5822
          %v5918 = vmul.f32 %v5630, %v5822
          %v5919 = vmul.f32 %v5631, %v5822
          %v5920 = vld [vmem:[%s3] sm:$0xff]
          %v5921 = vld [vmem:[%s3 + $0x8] sm:$0xff]
          %v5922 = vld [vmem:[%s3 + $0x10] sm:$0xff]
          %v5923 = vld [vmem:[%s3 + $0x18] sm:$0xff]
          %v5924 = vld [vmem:[%s3 + $0x20] sm:$0xff]
          %v5925 = vld [vmem:[%s3 + $0x28] sm:$0xff]
          %v5926 = vld [vmem:[%s3 + $0x30] sm:$0xff]
          %v5927 = vld [vmem:[%s3 + $0x38] sm:$0xff]
          %v5928 = vld [vmem:[%s3 + $0x40] sm:$0xff]
          %v5929 = vld [vmem:[%s3 + $0x48] sm:$0xff]
          %v5930 = vld [vmem:[%s3 + $0x50] sm:$0xff]
          %v5931 = vld [vmem:[%s3 + $0x58] sm:$0xff]
          %v5932 = vld [vmem:[%s3 + $0x60] sm:$0xff]
          %v5933 = vld [vmem:[%s3 + $0x68] sm:$0xff]
          %v5934 = vld [vmem:[%s3 + $0x70] sm:$0xff]
          %v5935 = vld [vmem:[%s3 + $0x78] sm:$0xff]
          %v5936 = vld [vmem:[%s3 + $0x80] sm:$0xff]
          %v5937 = vld [vmem:[%s3 + $0x88] sm:$0xff]
          %v5938 = vld [vmem:[%s3 + $0x90] sm:$0xff]
          %v5939 = vld [vmem:[%s3 + $0x98] sm:$0xff]
          %v5940 = vld [vmem:[%s3 + $0xa0] sm:$0xff]
          %v5941 = vld [vmem:[%s3 + $0xa8] sm:$0xff]
          %v5942 = vld [vmem:[%s3 + $0xb0] sm:$0xff]
          %v5943 = vld [vmem:[%s3 + $0xb8] sm:$0xff]
          %v5944 = vld [vmem:[%s3 + $0xc0] sm:$0xff]
          %v5945 = vld [vmem:[%s3 + $0xc8] sm:$0xff]
          %v5946 = vld [vmem:[%s3 + $0xd0] sm:$0xff]
          %v5947 = vld [vmem:[%s3 + $0xd8] sm:$0xff]
          %v5948 = vld [vmem:[%s3 + $0xe0] sm:$0xff]
          %v5949 = vld [vmem:[%s3 + $0xe8] sm:$0xff]
          %v5950 = vld [vmem:[%s3 + $0xf0] sm:$0xff]
          %v5951 = vld [vmem:[%s3 + $0xf8] sm:$0xff]
          %5953 = vset.pattern.permute.xlu0 0
          %5954 = vperm.xlu0 %5953, %v5920
          %v5955 = vpop.permute.xlu0 %5954
          %5958 = vset.pattern.permute.xlu0 0
          %5959 = vperm.xlu0 %5958, %v5921
          %v5960 = vpop.permute.xlu0 %5959
          %5963 = vset.pattern.permute.xlu0 0
          %5964 = vperm.xlu0 %5963, %v5922
          %v5965 = vpop.permute.xlu0 %5964
          %5968 = vset.pattern.permute.xlu0 0
          %5969 = vperm.xlu0 %5968, %v5923
          %v5970 = vpop.permute.xlu0 %5969
          %5973 = vset.pattern.permute.xlu0 0
          %5974 = vperm.xlu0 %5973, %v5924
          %v5975 = vpop.permute.xlu0 %5974
          %5978 = vset.pattern.permute.xlu0 0
          %5979 = vperm.xlu0 %5978, %v5925
          %v5980 = vpop.permute.xlu0 %5979
          %5983 = vset.pattern.permute.xlu0 0
          %5984 = vperm.xlu0 %5983, %v5926
          %v5985 = vpop.permute.xlu0 %5984
          %5988 = vset.pattern.permute.xlu0 0
          %5989 = vperm.xlu0 %5988, %v5927
          %v5990 = vpop.permute.xlu0 %5989
          %5993 = vset.pattern.permute.xlu0 0
          %5994 = vperm.xlu0 %5993, %v5928
          %v5995 = vpop.permute.xlu0 %5994
          %5998 = vset.pattern.permute.xlu0 0
          %5999 = vperm.xlu0 %5998, %v5929
          %v6000 = vpop.permute.xlu0 %5999
          %6003 = vset.pattern.permute.xlu0 0
          %6004 = vperm.xlu0 %6003, %v5930
          %v6005 = vpop.permute.xlu0 %6004
          %6008 = vset.pattern.permute.xlu0 0
          %6009 = vperm.xlu0 %6008, %v5931
          %v6010 = vpop.permute.xlu0 %6009
          %6013 = vset.pattern.permute.xlu0 0
          %6014 = vperm.xlu0 %6013, %v5932
          %v6015 = vpop.permute.xlu0 %6014
          %6018 = vset.pattern.permute.xlu0 0
          %6019 = vperm.xlu0 %6018, %v5933
          %v6020 = vpop.permute.xlu0 %6019
          %6023 = vset.pattern.permute.xlu0 0
          %6024 = vperm.xlu0 %6023, %v5934
          %v6025 = vpop.permute.xlu0 %6024
          %6028 = vset.pattern.permute.xlu0 0
          %6029 = vperm.xlu0 %6028, %v5935
          %v6030 = vpop.permute.xlu0 %6029
          %6033 = vset.pattern.permute.xlu0 0
          %6034 = vperm.xlu0 %6033, %v5936
          %v6035 = vpop.permute.xlu0 %6034
          %6038 = vset.pattern.permute.xlu0 0
          %6039 = vperm.xlu0 %6038, %v5937
          %v6040 = vpop.permute.xlu0 %6039
          %6043 = vset.pattern.permute.xlu0 0
          %6044 = vperm.xlu0 %6043, %v5938
          %v6045 = vpop.permute.xlu0 %6044
          %6048 = vset.pattern.permute.xlu0 0
          %6049 = vperm.xlu0 %6048, %v5939
          %v6050 = vpop.permute.xlu0 %6049
          %6053 = vset.pattern.permute.xlu0 0
          %6054 = vperm.xlu0 %6053, %v5940
          %v6055 = vpop.permute.xlu0 %6054
          %6058 = vset.pattern.permute.xlu0 0
          %6059 = vperm.xlu0 %6058, %v5941
          %v6060 = vpop.permute.xlu0 %6059
          %6063 = vset.pattern.permute.xlu0 0
          %6064 = vperm.xlu0 %6063, %v5942
          %v6065 = vpop.permute.xlu0 %6064
          %6068 = vset.pattern.permute.xlu0 0
          %6069 = vperm.xlu0 %6068, %v5943
          %v6070 = vpop.permute.xlu0 %6069
          %6073 = vset.pattern.permute.xlu0 0
          %6074 = vperm.xlu0 %6073, %v5944
          %v6075 = vpop.permute.xlu0 %6074
          %6078 = vset.pattern.permute.xlu0 0
          %6079 = vperm.xlu0 %6078, %v5945
          %v6080 = vpop.permute.xlu0 %6079
          %6083 = vset.pattern.permute.xlu0 0
          %6084 = vperm.xlu0 %6083, %v5946
          %v6085 = vpop.permute.xlu0 %6084
          %6088 = vset.pattern.permute.xlu0 0
          %6089 = vperm.xlu0 %6088, %v5947
          %v6090 = vpop.permute.xlu0 %6089
          %6093 = vset.pattern.permute.xlu0 0
          %6094 = vperm.xlu0 %6093, %v5948
          %v6095 = vpop.permute.xlu0 %6094
          %6098 = vset.pattern.permute.xlu0 0
          %6099 = vperm.xlu0 %6098, %v5949
          %v6100 = vpop.permute.xlu0 %6099
          %6103 = vset.pattern.permute.xlu0 0
          %6104 = vperm.xlu0 %6103, %v5950
          %v6105 = vpop.permute.xlu0 %6104
          %6108 = vset.pattern.permute.xlu0 0
          %6109 = vperm.xlu0 %6108, %v5951
          %v6110 = vpop.permute.xlu0 %6109
          %v6112 = vadd.f32 %v5824, %v5955
          %v6113 = vadd.f32 %v5825, %v5955
          %v6114 = vadd.f32 %v5826, %v5955
          %v6115 = vadd.f32 %v5827, %v5960
          %v6116 = vadd.f32 %v5828, %v5960
          %v6117 = vadd.f32 %v5829, %v5960
          %v6118 = vadd.f32 %v5830, %v5965
          %v6119 = vadd.f32 %v5831, %v5965
          %v6120 = vadd.f32 %v5832, %v5965
          %v6121 = vadd.f32 %v5833, %v5970
          %v6122 = vadd.f32 %v5834, %v5970
          %v6123 = vadd.f32 %v5835, %v5970
          %v6124 = vadd.f32 %v5836, %v5975
          %v6125 = vadd.f32 %v5837, %v5975
          %v6126 = vadd.f32 %v5838, %v5975
          %v6127 = vadd.f32 %v5839, %v5980
          %v6128 = vadd.f32 %v5840, %v5980
          %v6129 = vadd.f32 %v5841, %v5980
          %v6130 = vadd.f32 %v5842, %v5985
          %v6131 = vadd.f32 %v5843, %v5985
          %v6132 = vadd.f32 %v5844, %v5985
          %v6133 = vadd.f32 %v5845, %v5990
          %v6134 = vadd.f32 %v5846, %v5990
          %v6135 = vadd.f32 %v5847, %v5990
          %v6136 = vadd.f32 %v5848, %v5995
          %v6137 = vadd.f32 %v5849, %v5995
          %v6138 = vadd.f32 %v5850, %v5995
          %v6139 = vadd.f32 %v5851, %v6000
          %v6140 = vadd.f32 %v5852, %v6000
          %v6141 = vadd.f32 %v5853, %v6000
          %v6142 = vadd.f32 %v5854, %v6005
          %v6143 = vadd.f32 %v5855, %v6005
          %v6144 = vadd.f32 %v5856, %v6005
          %v6145 = vadd.f32 %v5857, %v6010
          %v6146 = vadd.f32 %v5858, %v6010
          %v6147 = vadd.f32 %v5859, %v6010
          %v6148 = vadd.f32 %v5860, %v6015
          %v6149 = vadd.f32 %v5861, %v6015
          %v6150 = vadd.f32 %v5862, %v6015
          %v6151 = vadd.f32 %v5863, %v6020
          %v6152 = vadd.f32 %v5864, %v6020
          %v6153 = vadd.f32 %v5865, %v6020
          %v6154 = vadd.f32 %v5866, %v6025
          %v6155 = vadd.f32 %v5867, %v6025
          %v6156 = vadd.f32 %v5868, %v6025
          %v6157 = vadd.f32 %v5869, %v6030
          %v6158 = vadd.f32 %v5870, %v6030
          %v6159 = vadd.f32 %v5871, %v6030
          %v6160 = vadd.f32 %v5872, %v6035
          %v6161 = vadd.f32 %v5873, %v6035
          %v6162 = vadd.f32 %v5874, %v6035
          %v6163 = vadd.f32 %v5875, %v6040
          %v6164 = vadd.f32 %v5876, %v6040
          %v6165 = vadd.f32 %v5877, %v6040
          %v6166 = vadd.f32 %v5878, %v6045
          %v6167 = vadd.f32 %v5879, %v6045
          %v6168 = vadd.f32 %v5880, %v6045
          %v6169 = vadd.f32 %v5881, %v6050
          %v6170 = vadd.f32 %v5882, %v6050
          %v6171 = vadd.f32 %v5883, %v6050
          %v6172 = vadd.f32 %v5884, %v6055
          %v6173 = vadd.f32 %v5885, %v6055
          %v6174 = vadd.f32 %v5886, %v6055
          %v6175 = vadd.f32 %v5887, %v6060
          %v6176 = vadd.f32 %v5888, %v6060
          %v6177 = vadd.f32 %v5889, %v6060
          %v6178 = vadd.f32 %v5890, %v6065
          %v6179 = vadd.f32 %v5891, %v6065
          %v6180 = vadd.f32 %v5892, %v6065
          %v6181 = vadd.f32 %v5893, %v6070
          %v6182 = vadd.f32 %v5894, %v6070
          %v6183 = vadd.f32 %v5895, %v6070
          %v6184 = vadd.f32 %v5896, %v6075
          %v6185 = vadd.f32 %v5897, %v6075
          %v6186 = vadd.f32 %v5898, %v6075
          %v6187 = vadd.f32 %v5899, %v6080
          %v6188 = vadd.f32 %v5900, %v6080
          %v6189 = vadd.f32 %v5901, %v6080
          %v6190 = vadd.f32 %v5902, %v6085
          %v6191 = vadd.f32 %v5903, %v6085
          %v6192 = vadd.f32 %v5904, %v6085
          %v6193 = vadd.f32 %v5905, %v6090
          %v6194 = vadd.f32 %v5906, %v6090
          %v6195 = vadd.f32 %v5907, %v6090
          %v6196 = vadd.f32 %v5908, %v6095
          %v6197 = vadd.f32 %v5909, %v6095
          %v6198 = vadd.f32 %v5910, %v6095
          %v6199 = vadd.f32 %v5911, %v6100
          %v6200 = vadd.f32 %v5912, %v6100
          %v6201 = vadd.f32 %v5913, %v6100
          %v6202 = vadd.f32 %v5914, %v6105
          %v6203 = vadd.f32 %v5915, %v6105
          %v6204 = vadd.f32 %v5916, %v6105
          %v6205 = vadd.f32 %v5917, %v6110
          %v6206 = vadd.f32 %v5918, %v6110
          %v6207 = vadd.f32 %v5919, %v6110
          %v6208 = vmax.f32 %v6112, 0.0
          %v6209 = vmax.f32 %v6113, 0.0
          %v6210 = vmax.f32 %v6114, 0.0
          %v6211 = vmax.f32 %v6115, 0.0
          %v6212 = vmax.f32 %v6116, 0.0
          %v6213 = vmax.f32 %v6117, 0.0
          %v6214 = vmax.f32 %v6118, 0.0
          %v6215 = vmax.f32 %v6119, 0.0
          %v6216 = vmax.f32 %v6120, 0.0
          %v6217 = vmax.f32 %v6121, 0.0
          %v6218 = vmax.f32 %v6122, 0.0
          %v6219 = vmax.f32 %v6123, 0.0
          %v6220 = vmax.f32 %v6124, 0.0
          %v6221 = vmax.f32 %v6125, 0.0
          %v6222 = vmax.f32 %v6126, 0.0
          %v6223 = vmax.f32 %v6127, 0.0
          %v6224 = vmax.f32 %v6128, 0.0
          %v6225 = vmax.f32 %v6129, 0.0
          %v6226 = vmax.f32 %v6130, 0.0
          %v6227 = vmax.f32 %v6131, 0.0
          %v6228 = vmax.f32 %v6132, 0.0
          %v6229 = vmax.f32 %v6133, 0.0
          %v6230 = vmax.f32 %v6134, 0.0
          %v6231 = vmax.f32 %v6135, 0.0
          %v6232 = vmax.f32 %v6136, 0.0
          %v6233 = vmax.f32 %v6137, 0.0
          %v6234 = vmax.f32 %v6138, 0.0
          %v6235 = vmax.f32 %v6139, 0.0
          %v6236 = vmax.f32 %v6140, 0.0
          %v6237 = vmax.f32 %v6141, 0.0
          %v6238 = vmax.f32 %v6142, 0.0
          %v6239 = vmax.f32 %v6143, 0.0
          %v6240 = vmax.f32 %v6144, 0.0
          %v6241 = vmax.f32 %v6145, 0.0
          %v6242 = vmax.f32 %v6146, 0.0
          %v6243 = vmax.f32 %v6147, 0.0
          %v6244 = vmax.f32 %v6148, 0.0
          %v6245 = vmax.f32 %v6149, 0.0
          %v6246 = vmax.f32 %v6150, 0.0
          %v6247 = vmax.f32 %v6151, 0.0
          %v6248 = vmax.f32 %v6152, 0.0
          %v6249 = vmax.f32 %v6153, 0.0
          %v6250 = vmax.f32 %v6154, 0.0
          %v6251 = vmax.f32 %v6155, 0.0
          %v6252 = vmax.f32 %v6156, 0.0
          %v6253 = vmax.f32 %v6157, 0.0
          %v6254 = vmax.f32 %v6158, 0.0
          %v6255 = vmax.f32 %v6159, 0.0
          %v6256 = vmax.f32 %v6160, 0.0
          %v6257 = vmax.f32 %v6161, 0.0
          %v6258 = vmax.f32 %v6162, 0.0
          %v6259 = vmax.f32 %v6163, 0.0
          %v6260 = vmax.f32 %v6164, 0.0
          %v6261 = vmax.f32 %v6165, 0.0
          %v6262 = vmax.f32 %v6166, 0.0
          %v6263 = vmax.f32 %v6167, 0.0
          %v6264 = vmax.f32 %v6168, 0.0
          %v6265 = vmax.f32 %v6169, 0.0
          %v6266 = vmax.f32 %v6170, 0.0
          %v6267 = vmax.f32 %v6171, 0.0
          %v6268 = vmax.f32 %v6172, 0.0
          %v6269 = vmax.f32 %v6173, 0.0
          %v6270 = vmax.f32 %v6174, 0.0
          %v6271 = vmax.f32 %v6175, 0.0
          %v6272 = vmax.f32 %v6176, 0.0
          %v6273 = vmax.f32 %v6177, 0.0
          %v6274 = vmax.f32 %v6178, 0.0
          %v6275 = vmax.f32 %v6179, 0.0
          %v6276 = vmax.f32 %v6180, 0.0
          %v6277 = vmax.f32 %v6181, 0.0
          %v6278 = vmax.f32 %v6182, 0.0
          %v6279 = vmax.f32 %v6183, 0.0
          %v6280 = vmax.f32 %v6184, 0.0
          %v6281 = vmax.f32 %v6185, 0.0
          %v6282 = vmax.f32 %v6186, 0.0
          %v6283 = vmax.f32 %v6187, 0.0
          %v6284 = vmax.f32 %v6188, 0.0
          %v6285 = vmax.f32 %v6189, 0.0
          %v6286 = vmax.f32 %v6190, 0.0
          %v6287 = vmax.f32 %v6191, 0.0
          %v6288 = vmax.f32 %v6192, 0.0
          %v6289 = vmax.f32 %v6193, 0.0
          %v6290 = vmax.f32 %v6194, 0.0
          %v6291 = vmax.f32 %v6195, 0.0
          %v6292 = vmax.f32 %v6196, 0.0
          %v6293 = vmax.f32 %v6197, 0.0
          %v6294 = vmax.f32 %v6198, 0.0
          %v6295 = vmax.f32 %v6199, 0.0
          %v6296 = vmax.f32 %v6200, 0.0
          %v6297 = vmax.f32 %v6201, 0.0
          %v6298 = vmax.f32 %v6202, 0.0
          %v6299 = vmax.f32 %v6203, 0.0
          %v6300 = vmax.f32 %v6204, 0.0
          %v6301 = vmax.f32 %v6205, 0.0
          %v6302 = vmax.f32 %v6206, 0.0
          %v6303 = vmax.f32 %v6207, 0.0
          %v6304 = vld [vmem:[%s4] sm:$0xff]
          %v6305 = vld [vmem:[%s4 + $0x8] sm:$0xff]
          %v6306 = vld [vmem:[%s5] sm:$0xff]
          %6308 = vset.pattern.permute.xlu0 0
          %6309 = vperm.xlu0 %6308, %v6306
          %v6310 = vpop.permute.xlu0 %6309
          %6312 = vmatpush.msra.mxu0 %v6253
          %6313 = vmatpush.msra.mxu0 %v6250
          %6314 = vmatpush.msra.mxu0 %v6247
          %6315 = vmatpush.msra.mxu0 %v6244
          %6316 = vmatpush.msra.mxu0 %v6241
          %6317 = vmatpush.msra.mxu0 %v6238
          %6318 = vmatpush.msra.mxu0 %v6235
          %6319 = vmatpush.msra.mxu0 %v6232
          %6320 = vmatpush.msra.mxu0 %v6229
          %6321 = vmatpush.msra.mxu0 %v6226
          %6322 = vmatpush.msra.mxu0 %v6223
          %6323 = vmatpush.msra.mxu0 %v6220
          %6324 = vmatpush.msra.mxu0 %v6217
          %6325 = vmatpush.msra.mxu0 %v6214
          %6326 = vmatpush.msra.mxu0 %v6211
          %6327 = vmatpush.msra.mxu0 %v6208
          %6328 = vmatmul.f32.gmra.mxu0 %v6304
          %v6329 = vpop.f32.mrf.mxu0
          %v6330 = vadd.f32 %v6310, %v6329
          %6331 = vdwg.mxu0
          %6332 = vmatpush.msra.mxu0 %v6301
          %6333 = vmatpush.msra.mxu0 %v6298
          %6334 = vmatpush.msra.mxu0 %v6295
          %6335 = vmatpush.msra.mxu0 %v6292
          %6336 = vmatpush.msra.mxu0 %v6289
          %6337 = vmatpush.msra.mxu0 %v6286
          %6338 = vmatpush.msra.mxu0 %v6283
          %6339 = vmatpush.msra.mxu0 %v6280
          %6340 = vmatpush.msra.mxu0 %v6277
          %6341 = vmatpush.msra.mxu0 %v6274
          %6342 = vmatpush.msra.mxu0 %v6271
          %6343 = vmatpush.msra.mxu0 %v6268
          %6344 = vmatpush.msra.mxu0 %v6265
          %6345 = vmatpush.msra.mxu0 %v6262
          %6346 = vmatpush.msra.mxu0 %v6259
          %6347 = vmatpush.msra.mxu0 %v6256
          %6348 = vmatmul.f32.gmra.mxu0 %v6305
          %v6349 = vpop.f32.mrf.mxu0
          %v6350 = vadd.f32 %v6330, %v6349
          %6351 = vdwg.mxu0
          %6352 = vmatpush.msra.mxu0 %v6254
          %6353 = vmatpush.msra.mxu0 %v6251
          %6354 = vmatpush.msra.mxu0 %v6248
          %6355 = vmatpush.msra.mxu0 %v6245
          %6356 = vmatpush.msra.mxu0 %v6242
          %6357 = vmatpush.msra.mxu0 %v6239
          %6358 = vmatpush.msra.mxu0 %v6236
          %6359 = vmatpush.msra.mxu0 %v6233
          %6360 = vmatpush.msra.mxu0 %v6230
          %6361 = vmatpush.msra.mxu0 %v6227
          %6362 = vmatpush.msra.mxu0 %v6224
          %6363 = vmatpush.msra.mxu0 %v6221
          %6364 = vmatpush.msra.mxu0 %v6218
          %6365 = vmatpush.msra.mxu0 %v6215
          %6366 = vmatpush.msra.mxu0 %v6212
          %6367 = vmatpush.msra.mxu0 %v6209
          %6368 = vmatmul.f32.gmra.mxu0 %v6304
          %v6369 = vpop.f32.mrf.mxu0
          %v6370 = vadd.f32 %v6310, %v6369
          %6371 = vdwg.mxu0
          %6372 = vmatpush.msra.mxu0 %v6302
          %6373 = vmatpush.msra.mxu0 %v6299
          %6374 = vmatpush.msra.mxu0 %v6296
          %6375 = vmatpush.msra.mxu0 %v6293
          %6376 = vmatpush.msra.mxu0 %v6290
          %6377 = vmatpush.msra.mxu0 %v6287
          %6378 = vmatpush.msra.mxu0 %v6284
          %6379 = vmatpush.msra.mxu0 %v6281
          %6380 = vmatpush.msra.mxu0 %v6278
          %6381 = vmatpush.msra.mxu0 %v6275
          %6382 = vmatpush.msra.mxu0 %v6272
          %6383 = vmatpush.msra.mxu0 %v6269
          %6384 = vmatpush.msra.mxu0 %v6266
          %6385 = vmatpush.msra.mxu0 %v6263
          %6386 = vmatpush.msra.mxu0 %v6260
          %6387 = vmatpush.msra.mxu0 %v6257
          %6388 = vmatmul.f32.gmra.mxu0 %v6305
          %v6389 = vpop.f32.mrf.mxu0
          %v6390 = vadd.f32 %v6370, %v6389
          %6391 = vdwg.mxu0
          %6392 = vmatpush.msra.mxu0 %v6255
          %6393 = vmatpush.msra.mxu0 %v6252
          %6394 = vmatpush.msra.mxu0 %v6249
          %6395 = vmatpush.msra.mxu0 %v6246
          %6396 = vmatpush.msra.mxu0 %v6243
          %6397 = vmatpush.msra.mxu0 %v6240
          %6398 = vmatpush.msra.mxu0 %v6237
          %6399 = vmatpush.msra.mxu0 %v6234
          %6400 = vmatpush.msra.mxu0 %v6231
          %6401 = vmatpush.msra.mxu0 %v6228
          %6402 = vmatpush.msra.mxu0 %v6225
          %6403 = vmatpush.msra.mxu0 %v6222
          %6404 = vmatpush.msra.mxu0 %v6219
          %6405 = vmatpush.msra.mxu0 %v6216
          %6406 = vmatpush.msra.mxu0 %v6213
          %6407 = vmatpush.msra.mxu0 %v6210
          %6408 = vmatmul.f32.gmra.mxu0 %v6304
          %v6409 = vpop.f32.mrf.mxu0
          %v6410 = vadd.f32 %v6310, %v6409
          %6411 = vdwg.mxu0
          %6412 = vmatpush.msra.mxu0 %v6303
          %6413 = vmatpush.msra.mxu0 %v6300
          %6414 = vmatpush.msra.mxu0 %v6297
          %6415 = vmatpush.msra.mxu0 %v6294
          %6416 = vmatpush.msra.mxu0 %v6291
          %6417 = vmatpush.msra.mxu0 %v6288
          %6418 = vmatpush.msra.mxu0 %v6285
          %6419 = vmatpush.msra.mxu0 %v6282
          %6420 = vmatpush.msra.mxu0 %v6279
          %6421 = vmatpush.msra.mxu0 %v6276
          %6422 = vmatpush.msra.mxu0 %v6273
          %6423 = vmatpush.msra.mxu0 %v6270
          %6424 = vmatpush.msra.mxu0 %v6267
          %6425 = vmatpush.msra.mxu0 %v6264
          %6426 = vmatpush.msra.mxu0 %v6261
          %6427 = vmatpush.msra.mxu0 %v6258
          %6428 = vmatmul.f32.gmra.mxu0 %v6305
          %v6429 = vpop.f32.mrf.mxu0
          %v6430 = vadd.f32 %v6410, %v6429
          %6431 = vdwg.mxu0
          %6432 = vst [vmem:[%s279] sm:$0xff] %v6350
          %6433 = vst [vmem:[%s279 + $0x8] sm:$0xff] %v6390
          %6434 = vst.msk [vmem:[%s279 + $0x10] sm:$0xff] %vm5438, %v6430
        $region52: #{tpu_custom_call.1} parent=43 // pred_fallthru
          _
        %s6435 = sand.u32 %s178, 1
        %s6436 = scalar_lea.sflag [#allocation4], %s6435
        %s6437 = sand.u32 %s178, 1
        %s6438 = smul.addr %s6437, 24
        %s6439 = scalar_lea.vmem [#allocation3], %s6438
        // Predicated region
        $region53: #{tpu_custom_call.1} parent=43 // pred_check
          %p6440 = pneg %p188
        $region54: #{tpu_custom_call.1} parent=43 // pred_check_branch
          %6442 = sbr.rel (%p6440) target = $region56
        $region55: #{tpu_custom_call.1} parent=43 // pred_region
          %6444 = vsyncadd %s6436, 0
          %s6445 = smul.addr %s24, 3
          %s6446 = smul.addr %s6445, 8
          %s6447 = scalar_lea.hbm %s6, %s6446
          %s6449 = sshll.u32 %s6439, 4
          %s6450 = int_to_ptr.vmem [resolvable:$true] %s6449
          %s6451 = sshll.u32 %s6447, 4
          %s6452 = int_to_ptr.hbm [resolvable:$true] %s6451
          %6454 = dma.vmem_to_hbm [thread:$0]  %s6450, 384, %s6452, %s6436
        $region56: #{tpu_custom_call.1} parent=43 // pred_fallthru
          _
      $region44: #{tpu_custom_call.1} parent=5 // pred_fallthru
        _
      %p6455 = scmp.le.s32.totalorder 2, %s15
      // Predicated region
      $region57: #{tpu_custom_call.1} parent=5 // pred_check
        %p6456 = pneg %p6455
      $region58: #{tpu_custom_call.1} parent=5 // pred_check_branch
        %6458 = sbr.rel (%p6456) target = $region60
      $region59: #{tpu_custom_call.1} parent=5 // pred_region
        %s6459 = ssub.s32 %s15, 2
        // Predicated region
        $region61: #{tpu_custom_call.1} parent=59 // pred_check
          %p6460 = pneg %p194
        $region62: #{tpu_custom_call.1} parent=59 // pred_check_branch
          %6462 = sbr.rel (%p6460) target = $region64
        $region63: #{tpu_custom_call.1} parent=59 // pred_region
          %s6463 = sand.u32 %s179, 1
          %s6464 = scalar_lea.sflag [#allocation4], %s6463
          %s6465 = sand.u32 %s179, 1
          %s6466 = smul.addr %s6465, 24
          %s6467 = scalar_lea.vmem [#allocation3], %s6466
          %6469 = dma.done %s6464, 384
        $region64: #{tpu_custom_call.1} parent=59 // pred_fallthru
          _
      $region60: #{tpu_custom_call.1} parent=5 // pred_fallthru
        _
    $region6: #{tpu_custom_call.1} parent=1 // loop_footer
      %s19 = sadd.s32 1, %s15
    $region7: #{tpu_custom_call.1} parent=1 // loop_footer_branch
      %14 = sbr.rel target = $region3
    $region8: #{tpu_custom_call.1} parent=1 // loop_exit
      _
    %6470 = vsyncpa [#allocation4], 1
    %s6471 = scalar_lea.sflag [#allocation4], 1
    %6472 = vsyncpa %s6471, 1

</llo_original>
